<compile_context>
chip_gen: v7x
topology: tpu7x:2x2x1
jax: 0.10.0
libtpu: 0.0.40
codegen_flags: <defaults>
</compile_context>

<pallas_src>
import functools

import jax
import jax.numpy as jnp
from jax.experimental import pallas as pl
from jax.experimental.pallas import tpu as pltpu


# ---------------------------------------------------------------------------
# Pallas kernels
# ---------------------------------------------------------------------------

def _fire_kernel(*refs, H, W, f, bypass_mode):
    """Fused FireBlock: entry(1x1+BN+ReLU) -> [exp1 || exp3](+BN+ReLU), plus an
    optional fused bypass residual.

    bypass_mode: 0 = none, 1 = identity residual, 2 = 1x1-conv residual.
    Ref shapes (f = squeeze filters):
      x:  (H*W, Cin) bf16   we: (Cin, f) bf16   se: (1, f)  f32
      wx: (9f, 8f)   bf16   sx: (1, 8f)  f32
      [byp: (H*W, Cb) bf16] [wb: (Cb, 8f) bf16, bb: (1, 8f) f32]
      out: (H*W, 8f) bf16
    """
    it = iter(refs)
    x_ref, we_ref, se_ref, wx_ref, sx_ref = (next(it) for _ in range(5))
    byp_ref = next(it) if bypass_mode else None
    if bypass_mode == 2:
        wb_ref, bb_ref = next(it), next(it)
    o_ref = next(it)

    HW = H * W

    # ---- entry: 1x1 conv + folded bias/BN + ReLU (single matmul) -----------
    x = x_ref[...]                                               # (HW, Cin)
    e = jnp.dot(x, we_ref[...], preferred_element_type=jnp.float32)
    e = jnp.maximum(e + se_ref[...], 0.0).astype(x.dtype)        # (HW, f) bf16

    # ---- in-VMEM im2col of the entry plane ('same' zero padding) -----------
    e3 = e.reshape(H, W, f)
    zc = jnp.zeros((H, 1, f), e3.dtype)
    ep = jnp.concatenate([zc, e3, zc], axis=1)                   # (H, W+2, f)
    zr = jnp.zeros((1, W + 2, f), e3.dtype)
    ep = jnp.concatenate([zr, ep, zr], axis=0)                   # (H+2, W+2, f)
    taps = [ep[dy:dy + H, dx:dx + W, :]
            for dy in range(3) for dx in range(3)]               # tap = dy*3+dx
    patch = jnp.concatenate(taps, axis=-1).reshape(HW, 9 * f)    # (HW, 9f)

    # ---- combined exp1||exp3 matmul (K = 9f) + folded bias/BN + ReLU --------
    acc = jnp.dot(patch, wx_ref[...], preferred_element_type=jnp.float32)
    out = jnp.maximum(acc + sx_ref[...], 0.0)                    # (HW, 8f) f32

    # ---- fused bypass residual (added after the ReLU, like the module) ------
    if bypass_mode == 1:
        out = out + byp_ref[...].astype(jnp.float32)
    elif bypass_mode == 2:
        out = out + bb_ref[...] + jnp.dot(
            byp_ref[...], wb_ref[...], preferred_element_type=jnp.float32)

    o_ref[...] = out.astype(o_ref.dtype)


def _pool_kernel(x_ref, o_ref):
    """2x2 / stride-2 max pool.  x_ref holds one row-parity slab (Ho, Wo, 2, C):
    the column pair is a sublane max-reduce; the two row parities are folded
    into the (resident) output block across the inner grid axis."""
    v = jnp.max(x_ref[...], axis=-2)                             # (Ho, Wo, C)

    @pl.when(pl.program_id(1) == 0)
    def _():
        o_ref[...] = v

    @pl.when(pl.program_id(1) > 0)
    def _():
        o_ref[...] = jnp.maximum(o_ref[...], v)


# ---------------------------------------------------------------------------
# Pallas wrappers
# ---------------------------------------------------------------------------

def fire_block(x, p, bypass=None, bypass_params=None):
    """Fused FireBlock on NHWC input: (N, H, W, Cin) -> (N, H, W, 8f)."""
    N, H, W, cin = x.shape
    f = p["we"].shape[1]
    cout = 8 * f
    HW = H * W

    inputs = [x.reshape(N, HW, cin), p["we"], p["se"], p["wx"], p["sx"]]
    in_specs = [
        pl.BlockSpec((None, HW, cin), lambda n: (n, 0, 0)),
        pl.BlockSpec((cin, f), lambda n: (0, 0)),
        pl.BlockSpec((1, f), lambda n: (0, 0)),
        pl.BlockSpec((9 * f, cout), lambda n: (0, 0)),
        pl.BlockSpec((1, cout), lambda n: (0, 0)),
    ]
    bypass_mode = 0
    if bypass is not None:
        cb = bypass.shape[-1]
        inputs.append(bypass.reshape(N, HW, cb))
        in_specs.append(pl.BlockSpec((None, HW, cb), lambda n: (n, 0, 0)))
        if bypass_params is not None:
            wb, bb = bypass_params
            inputs += [wb, bb]
            in_specs += [pl.BlockSpec((cb, cout), lambda n: (0, 0)),
                         pl.BlockSpec((1, cout), lambda n: (0, 0))]
            bypass_mode = 2
        else:
            bypass_mode = 1

    kernel = functools.partial(_fire_kernel, H=H, W=W, f=f,
                               bypass_mode=bypass_mode)
    out = pl.pallas_call(
        kernel,
        out_shape=jax.ShapeDtypeStruct((N, HW, cout), x.dtype),
        grid_spec=pltpu.PrefetchScalarGridSpec(
            num_scalar_prefetch=0,
            grid=(N,),
            in_specs=in_specs,
            out_specs=pl.BlockSpec((None, HW, cout), lambda n: (n, 0, 0)),
        ),
        compiler_params=pltpu.CompilerParams(
            dimension_semantics=("parallel",),
            vmem_limit_bytes=32 * 1024 * 1024,
        ),
    )(*inputs)
    return out.reshape(N, H, W, cout)


def maxpool2x2(x):
    """2x2 / stride-2 max pool on NHWC input (matches nn.MaxPool2d(2, 2))."""
    N, H, W, C = x.shape
    Ho, Wo = H // 2, W // 2
    x6 = x[:, :2 * Ho, :2 * Wo, :].reshape(N, Ho, 2, Wo, 2, C)
    return pl.pallas_call(
        _pool_kernel,
        out_shape=jax.ShapeDtypeStruct((N, Ho, Wo, C), x.dtype),
        grid_spec=pltpu.PrefetchScalarGridSpec(
            num_scalar_prefetch=0,
            grid=(N, 2),          # (image, row parity); output revisited over parity
            in_specs=[pl.BlockSpec((None, Ho, None, Wo, 2, C),
                                   lambda n, p: (n, 0, p, 0, 0, 0))],
            out_specs=pl.BlockSpec((None, Ho, Wo, C), lambda n, p: (n, 0, 0, 0)),
        ),
        compiler_params=pltpu.CompilerParams(
            dimension_semantics=("parallel", "arbitrary"),
            vmem_limit_bytes=32 * 1024 * 1024,
        ),
    )(x6)


# ---------------------------------------------------------------------------
# Deterministic parameter construction (synthetic, mirrors module __init__).
# Bias + BatchNorm are folded into the weights here (offline).
# NOTE: when porting real PyTorch weights ((Cout, Cin, kh, kw)), the 3x3 weight
# must be reordered to rows [tap*f:(tap+1)*f] with tap = kh*3 + kw, matching
# the in-kernel patch construction.
# ---------------------------------------------------------------------------

def make_conv_params(key, cin, cout, ksize, with_bn=True):
    k1, k2, k3, k4, k5, k6 = jax.random.split(key, 6)
    fan_in = cin * ksize * ksize
    w = jax.random.normal(k1, (fan_in, cout), jnp.float32) * (1.0 / (fan_in ** 0.5))
    b = jax.random.normal(k2, (cout,), jnp.float32) * 0.01
    if with_bn:
        gamma = 1.0 + 0.1 * jax.random.normal(k3, (cout,), jnp.float32)
        beta = 0.1 * jax.random.normal(k4, (cout,), jnp.float32)
        mean = 0.1 * jax.random.normal(k5, (cout,), jnp.float32)
        var = jnp.abs(jax.random.normal(k6, (cout,), jnp.float32)) + 0.5
        scale = gamma / jnp.sqrt(var + 1e-5)
        shift = beta - mean * scale
    else:
        scale = jnp.ones((cout,), jnp.float32)
        shift = jnp.zeros((cout,), jnp.float32)
    w_folded = w * scale[None, :]                       # fold BN scale into W
    shift_folded = (b * scale + shift).reshape(1, cout)  # fold bias + BN shift
    return w_folded, shift_folded


def fire_block_params(key, cin, f):
    k1, k2, k3 = jax.random.split(key, 3)
    we, se = make_conv_params(k1, cin, f, 1)
    w1, s1 = make_conv_params(k2, f, 4 * f, 1)          # exp1 (1x1)
    w3, s3 = make_conv_params(k3, f, 4 * f, 3)          # exp3 (3x3), tap-major rows
    wx = jnp.zeros((9 * f, 8 * f), jnp.float32)
    wx = wx.at[4 * f:5 * f, :4 * f].set(w1)             # 1x1 weights in centre tap
    wx = wx.at[:, 4 * f:].set(w3)
    sx = jnp.concatenate([s1, s3], axis=1)              # (1, 8f)
    return {"we": we.astype(jnp.bfloat16), "se": se,
            "wx": wx.astype(jnp.bfloat16), "sx": sx}


def build_squeezenet_body(key, layout, filters, in_channels):
    """Replicates SqueezeNetBody.__init__ channel bookkeeping."""
    if isinstance(filters, int):
        filters = [filters] * layout.count("f")
    params = {}
    c = in_channels
    bypass_c = None
    block_no = 0
    keys = jax.random.split(key, 2 * len(layout))
    for i, blk in enumerate(layout):
        if blk == "b":
            bypass_c = c
            continue
        if blk == "f":
            f = filters[block_no]
            block_no += 1
            params["fire%d" % i] = fire_block_params(keys[2 * i], c, f)
            c = f * 8                       # concat of two (4f)-channel branches
        elif blk == "m":
            pass                            # pooling keeps channel count
        if bypass_c is not None:
            if c != bypass_c:
                # ConvBlock(bypass, 'c', x_channels, kernel_size=1): conv only
                wb, bb = make_conv_params(keys[2 * i + 1], bypass_c, c, 1,
                                          with_bn=False)
                params["bypass%d" % (i - 1)] = (wb.astype(jnp.bfloat16), bb)
            else:
                params["bypass%d" % (i - 1)] = None
            bypass_c = None
    return params


# ---------------------------------------------------------------------------
# Forward pass (mirrors SqueezeNetBody.forward / FireBlock.forward)
# ---------------------------------------------------------------------------

def squeezenet_body(x, params, layout):
    """x: NHWC activations (bf16)."""
    bypass = None
    for i, blk in enumerate(layout):
        if blk == "b":
            bypass = x
            continue
        if blk == "f":
            if bypass is not None:
                bp = params["bypass%d" % (i - 1)]     # None -> identity residual
                x = fire_block(x, params["fire%d" % i], bypass=bypass,
                               bypass_params=bp)
                bypass = None
            else:
                x = fire_block(x, params["fire%d" % i])
        elif blk == "m":
            # TODO(synk): a bypass resolved right after a pooling block has
            # mismatched spatial shapes in the reference module too; unsupported.
            assert bypass is None
            x = maxpool2x2(x)
        else:
            raise ValueError("unknown layout block %r" % blk)
    return x


# ---------------------------------------------------------------------------

if __name__ == "__main__":
    key = jax.random.PRNGKey(0)
    kx, kp = jax.random.split(key)

    # NCHW input like the PyTorch module (spatial 32 so both pools stay
    # sublane-friendly: 32 -> 16 -> 8).
    N, C, H, W = 2, 4, 32, 32
    x_nchw = jax.random.normal(kx, (N, C, H, W), jnp.float32)

    # layout exercises: plain fire, max-pool, bypass with fused 1x1-conv
    # residual, a second pool and a final fire.
    layout = "fmbfmf"
    filters = [4, 8, 8]

    params = build_squeezenet_body(kp, layout, filters, C)

    x_nhwc = jnp.transpose(x_nchw, (0, 2, 3, 1)).astype(jnp.bfloat16)
    y_nhwc = squeezenet_body(x_nhwc, params, layout)
    y_nchw = jnp.transpose(y_nhwc, (0, 3, 1, 2)).astype(jnp.float32)

    jax.block_until_ready(y_nchw)
    assert y_nchw.shape == (N, filters[-1] * 8, H // 4, W // 4), y_nchw.shape
    print("KERNEL_OK")
</pallas_src>

<mosaic_0001>
module attributes {stable_mosaic.version = 11 : i64} {
  func.func @_fire_kernel(%arg0: i32, %arg1: memref<1x1024x4xbf16, #tpu.memory_space<vmem>>, %arg2: memref<4x4xbf16, #tpu.memory_space<vmem>>, %arg3: memref<1x4xf32, #tpu.memory_space<vmem>>, %arg4: memref<36x32xbf16, #tpu.memory_space<vmem>>, %arg5: memref<1x32xf32, #tpu.memory_space<vmem>>, %arg6: memref<1x1024x32xbf16, #tpu.memory_space<vmem>>) attributes {dimension_semantics = [#tpu.dimension_semantics<parallel>], iteration_bounds = array<i64: 2>, scalar_prefetch = 0 : i64, scratch_operands = 0 : i64, tpu.core_type = #tpu.core_type<tc>, window_params = [{transform_indices = @transform_0, window_bounds = array<i64: 1, 1024, 4>}, {pipeline_mode = #tpu.pipeline_mode<synchronous>, transform_indices = @transform_1, window_bounds = array<i64: 4, 4>}, {pipeline_mode = #tpu.pipeline_mode<synchronous>, transform_indices = @transform_2, window_bounds = array<i64: 1, 4>}, {pipeline_mode = #tpu.pipeline_mode<synchronous>, transform_indices = @transform_3, window_bounds = array<i64: 36, 32>}, {pipeline_mode = #tpu.pipeline_mode<synchronous>, transform_indices = @transform_4, window_bounds = array<i64: 1, 32>}, {transform_indices = @transform_5, window_bounds = array<i64: 1, 1024, 32>}]} {
    %c0 = arith.constant 0 : index
    %c0_0 = arith.constant 0 : index
    %c0_1 = arith.constant 0 : index
    %0 = vector.load %arg1[%c0, %c0_0, %c0_1] : memref<1x1024x4xbf16, #tpu.memory_space<vmem>>, vector<1x1024x4xbf16>
    %1 = vector.shape_cast %0 : vector<1x1024x4xbf16> to vector<1024x4xbf16>
    %c0_2 = arith.constant 0 : index
    %c0_3 = arith.constant 0 : index
    %2 = vector.load %arg2[%c0_2, %c0_3] : memref<4x4xbf16, #tpu.memory_space<vmem>>, vector<4x4xbf16>
    %cst = arith.constant dense<0.000000e+00> : vector<1024x4xf32>
    %3 = tpu.matmul %1, %2, %cst {dimension_numbers = #tpu.dot_dimension_numbers<[1], [0], [0], [1], [0, 0, 1, 1], [], []>} : vector<1024x4xbf16>, vector<4x4xbf16>, vector<1024x4xf32> -> vector<1024x4xf32>
    %c0_4 = arith.constant 0 : index
    %c0_5 = arith.constant 0 : index
    %4 = vector.load %arg3[%c0_4, %c0_5] : memref<1x4xf32, #tpu.memory_space<vmem>>, vector<1x4xf32>
    %5 = vector.broadcast %4 : vector<1x4xf32> to vector<1024x4xf32>
    %6 = arith.addf %3, %5 : vector<1024x4xf32>
    %cst_6 = arith.constant 0.000000e+00 : f32
    %7 = vector.broadcast %cst_6 : f32 to vector<1024x4xf32>
    %8 = arith.maximumf %6, %7 : vector<1024x4xf32>
    %9 = arith.truncf %8 : vector<1024x4xf32> to vector<1024x4xbf16>
    %10 = vector.shape_cast %9 : vector<1024x4xbf16> to vector<32x32x4xbf16>
    %cst_7 = arith.constant 0.000000e+00 : bf16
    %11 = vector.broadcast %cst_7 : bf16 to vector<32x1x4xbf16>
    %12 = tpu.concatenate %11, %10, %11 in 1 : vector<32x1x4xbf16>, vector<32x32x4xbf16>, vector<32x1x4xbf16> -> vector<32x34x4xbf16>
    %cst_8 = arith.constant 0.000000e+00 : bf16
    %13 = vector.broadcast %cst_8 : bf16 to vector<1x34x4xbf16>
    %14 = tpu.concatenate %13, %12, %13 in 0 : vector<1x34x4xbf16>, vector<32x34x4xbf16>, vector<1x34x4xbf16> -> vector<34x34x4xbf16>
    %15 = vector.extract_strided_slice %14 {offsets = [0, 0, 0], sizes = [32, 32, 4], strides = [1, 1, 1]} : vector<34x34x4xbf16> to vector<32x32x4xbf16>
    %16 = vector.extract_strided_slice %14 {offsets = [0, 1, 0], sizes = [32, 32, 4], strides = [1, 1, 1]} : vector<34x34x4xbf16> to vector<32x32x4xbf16>
    %17 = vector.extract_strided_slice %14 {offsets = [0, 2, 0], sizes = [32, 32, 4], strides = [1, 1, 1]} : vector<34x34x4xbf16> to vector<32x32x4xbf16>
    %18 = vector.extract_strided_slice %14 {offsets = [1, 0, 0], sizes = [32, 32, 4], strides = [1, 1, 1]} : vector<34x34x4xbf16> to vector<32x32x4xbf16>
    %19 = vector.extract_strided_slice %14 {offsets = [1, 1, 0], sizes = [32, 32, 4], strides = [1, 1, 1]} : vector<34x34x4xbf16> to vector<32x32x4xbf16>
    %20 = vector.extract_strided_slice %14 {offsets = [1, 2, 0], sizes = [32, 32, 4], strides = [1, 1, 1]} : vector<34x34x4xbf16> to vector<32x32x4xbf16>
    %21 = vector.extract_strided_slice %14 {offsets = [2, 0, 0], sizes = [32, 32, 4], strides = [1, 1, 1]} : vector<34x34x4xbf16> to vector<32x32x4xbf16>
    %22 = vector.extract_strided_slice %14 {offsets = [2, 1, 0], sizes = [32, 32, 4], strides = [1, 1, 1]} : vector<34x34x4xbf16> to vector<32x32x4xbf16>
    %23 = vector.extract_strided_slice %14 {offsets = [2, 2, 0], sizes = [32, 32, 4], strides = [1, 1, 1]} : vector<34x34x4xbf16> to vector<32x32x4xbf16>
    %24 = tpu.concatenate %15, %16, %17, %18, %19, %20, %21, %22, %23 in 2 : vector<32x32x4xbf16>, vector<32x32x4xbf16>, vector<32x32x4xbf16>, vector<32x32x4xbf16>, vector<32x32x4xbf16>, vector<32x32x4xbf16>, vector<32x32x4xbf16>, vector<32x32x4xbf16>, vector<32x32x4xbf16> -> vector<32x32x36xbf16>
    %25 = vector.shape_cast %24 : vector<32x32x36xbf16> to vector<1024x36xbf16>
    %c0_9 = arith.constant 0 : index
    %c0_10 = arith.constant 0 : index
    %26 = vector.load %arg4[%c0_9, %c0_10] : memref<36x32xbf16, #tpu.memory_space<vmem>>, vector<36x32xbf16>
    %cst_11 = arith.constant dense<0.000000e+00> : vector<1024x32xf32>
    %27 = tpu.matmul %25, %26, %cst_11 {dimension_numbers = #tpu.dot_dimension_numbers<[1], [0], [0], [1], [0, 0, 1, 1], [], []>} : vector<1024x36xbf16>, vector<36x32xbf16>, vector<1024x32xf32> -> vector<1024x32xf32>
    %c0_12 = arith.constant 0 : index
    %c0_13 = arith.constant 0 : index
    %28 = vector.load %arg5[%c0_12, %c0_13] : memref<1x32xf32, #tpu.memory_space<vmem>>, vector<1x32xf32>
    %29 = vector.broadcast %28 : vector<1x32xf32> to vector<1024x32xf32>
    %30 = arith.addf %27, %29 : vector<1024x32xf32>
    %cst_14 = arith.constant 0.000000e+00 : f32
    %31 = vector.broadcast %cst_14 : f32 to vector<1024x32xf32>
    %32 = arith.maximumf %30, %31 : vector<1024x32xf32>
    %33 = arith.truncf %32 : vector<1024x32xf32> to vector<1024x32xbf16>
    %c0_15 = arith.constant 0 : index
    %c0_16 = arith.constant 0 : index
    %c0_17 = arith.constant 0 : index
    %34 = vector.load %arg6[%c0_15, %c0_16, %c0_17] : memref<1x1024x32xbf16, #tpu.memory_space<vmem>>, vector<1x1024x32xbf16>
    %35 = vector.shape_cast %34 : vector<1x1024x32xbf16> to vector<1024x32xbf16>
    %36 = vector.shape_cast %33 : vector<1024x32xbf16> to vector<1x1024x32xbf16>
    tpu.vector_store %arg6[%c0_15, %c0_16, %c0_17], %36 {strides = array<i32>} : memref<1x1024x32xbf16, #tpu.memory_space<vmem>>, vector<1x1024x32xbf16>,
    return
  }
  func.func @transform_0(%arg0: i32) -> (i32, i32, i32) {
    %c0_i32 = arith.constant 0 : i32
    %c0_i32_0 = arith.constant 0 : i32
    %c0_i32_1 = arith.constant 0 : i32
    return %arg0, %c0_i32, %c0_i32_0 : i32, i32, i32
  }
  func.func @transform_1(%arg0: i32) -> (i32, i32) {
    %c0_i32 = arith.constant 0 : i32
    %c0_i32_0 = arith.constant 0 : i32
    %c0_i32_1 = arith.constant 0 : i32
    return %c0_i32, %c0_i32_0 : i32, i32
  }
  func.func @transform_2(%arg0: i32) -> (i32, i32) {
    %c0_i32 = arith.constant 0 : i32
    %c0_i32_0 = arith.constant 0 : i32
    %c0_i32_1 = arith.constant 0 : i32
    return %c0_i32, %c0_i32_0 : i32, i32
  }
  func.func @transform_3(%arg0: i32) -> (i32, i32) {
    %c0_i32 = arith.constant 0 : i32
    %c0_i32_0 = arith.constant 0 : i32
    %c0_i32_1 = arith.constant 0 : i32
    return %c0_i32, %c0_i32_0 : i32, i32
  }
  func.func @transform_4(%arg0: i32) -> (i32, i32) {
    %c0_i32 = arith.constant 0 : i32
    %c0_i32_0 = arith.constant 0 : i32
    %c0_i32_1 = arith.constant 0 : i32
    return %c0_i32, %c0_i32_0 : i32, i32
  }
  func.func @transform_5(%arg0: i32) -> (i32, i32, i32) {
    %c0_i32 = arith.constant 0 : i32
    %c0_i32_0 = arith.constant 0 : i32
    %c0_i32_1 = arith.constant 0 : i32
    return %arg0, %c0_i32, %c0_i32_0 : i32, i32, i32
  }
}

</mosaic_0001>

<llo_original>
// kernel: tpu_custom_call.1
$region0: #{tpu_custom_call.1}
  #allocation0 [shape = 'u32[]', space=smem, size = 0x4, offset = 0x4, fixed_abs, tag = 'smem constant byte address 0x4 - core index']
  #allocation1 [shape = 'u32[144,128]{1,0:T(1,128)}', space=vmem, size = 0x12000, scoped, tag = 'internal scratch']
  %s0 = inlined_call_operand.vmem [shape: bf16[2,1024,4], index: 0, kind: input, shape index: {}]
  %s1 = inlined_call_operand.vmem [shape: bf16[4,4], index: 1, kind: input, shape index: {}]
  %s2 = inlined_call_operand.vmem [shape: f32[1,4], index: 2, kind: input, shape index: {}]
  %s3 = inlined_call_operand.vmem [shape: bf16[36,32], index: 3, kind: input, shape index: {}]
  %s4 = inlined_call_operand.vmem [shape: f32[1,32], index: 4, kind: input, shape index: {}]
  %s5 = inlined_call_operand.vmem [shape: bf16[2,1024,32], index: 5, kind: output, shape index: {}]
  %s6 = sld [smem:[#allocation0]]
  $region53: #{tpu_custom_call.1} parent=0
    _
  %s8 = ssub.s32 1, %s6
  %s9 = scalar_select 0, %s8, %s6
  loop: start=0, step=1, limit=4
  $region2: #{tpu_custom_call.1} parent=0 // loop_pre_header
    _
  $region3: #{tpu_custom_call.1} parent=0 // loop_header
    %s11 = sphi 0, %s15
    %p12 = scmp.ge.s32.totalorder %s11, 4
    %s21 = sphi 0, %s23
    %s24 = sphi 0, %s21
    %s25 = sphi 0, %s24
    %s41 = sphi 0, %s25
    %s45 = sphi 0, %s45
    %s47 = sphi 0, %s45
    %s48 = sphi 0, %s47
    %s62 = sphi 0, %s48
    %s66 = sphi 0, %s66
    %s68 = sphi 0, %s66
    %s69 = sphi 0, %s68
    %s83 = sphi 0, %s69
    %s87 = sphi 0, %s87
    %s89 = sphi 0, %s87
    %s90 = sphi 0, %s89
    %s104 = sphi 0, %s90
    %s108 = sphi 0, %s108
    %s110 = sphi 0, %s108
    %s111 = sphi 0, %s110
    %s125 = sphi 0, %s111
    %s131 = sphi 0, %s133
    %s134 = sphi 0, %s131
    %s135 = sphi 0, %s134
    %s151 = sphi 0, %s135
  $region4: #{tpu_custom_call.1} parent=0 // loop_header_branch
    %14 = sbr.rel (%p12) target = $region8
  $region5: #{tpu_custom_call.1} parent=0 // loop_body
    %s16 = ssub.s32 %s11, 1
    %s17 = ssub.s32 %s11, 2
    %s18 = sadd.s32 %s11, 1
    %s19 = ssub.s32 %s11, %s18
    %p20 = scmp.eq.s32.totalorder %s19, 0
    %s22 = sadd.s32 %s21, 1
    %s23 = scalar_select %p20, %s21, %s22
    %p26 = pneg %p20
    %p27 = scmp.eq.s32.totalorder %s11, 1
    %p28 = por %p26, %p27
    %p29 = scmp.ne.s32.totalorder %s21, %s24
    %p30 = scmp.eq.s32.totalorder %s11, 0
    %p31 = por %p29, %p30
    %p32 = scmp.ne.s32.totalorder %s21, %s24
    %p33 = scmp.eq.s32.totalorder %s16, 1
    %p34 = por %p32, %p33
    %p35 = scmp.ne.s32.totalorder %s24, %s25
    %p36 = scmp.eq.s32.totalorder %s16, 0
    %p37 = por %p35, %p36
    %p38 = scmp.ne.s32.totalorder %s24, %s25
    %p39 = scmp.eq.s32.totalorder %s17, 1
    %p40 = por %p38, %p39
    %p42 = scmp.ne.s32.totalorder %s25, %s41
    %p43 = scmp.eq.s32.totalorder %s17, 0
    %p44 = por %p42, %p43
    %s46 = sadd.s32 %s45, 1
    %p49 = scmp.eq.s32.totalorder %s11, 1
    %p50 = scmp.ne.s32.totalorder %s45, %s47
    %p51 = scmp.eq.s32.totalorder %s11, 0
    %p52 = por %p50, %p51
    %p53 = scmp.ne.s32.totalorder %s45, %s47
    %p54 = scmp.eq.s32.totalorder %s16, 1
    %p55 = por %p53, %p54
    %p56 = scmp.ne.s32.totalorder %s47, %s48
    %p57 = scmp.eq.s32.totalorder %s16, 0
    %p58 = por %p56, %p57
    %p59 = scmp.ne.s32.totalorder %s47, %s48
    %p60 = scmp.eq.s32.totalorder %s17, 1
    %p61 = por %p59, %p60
    %p63 = scmp.ne.s32.totalorder %s48, %s62
    %p64 = scmp.eq.s32.totalorder %s17, 0
    %p65 = por %p63, %p64
    %s67 = sadd.s32 %s66, 1
    %p70 = scmp.eq.s32.totalorder %s11, 1
    %p71 = scmp.ne.s32.totalorder %s66, %s68
    %p72 = scmp.eq.s32.totalorder %s11, 0
    %p73 = por %p71, %p72
    %p74 = scmp.ne.s32.totalorder %s66, %s68
    %p75 = scmp.eq.s32.totalorder %s16, 1
    %p76 = por %p74, %p75
    %p77 = scmp.ne.s32.totalorder %s68, %s69
    %p78 = scmp.eq.s32.totalorder %s16, 0
    %p79 = por %p77, %p78
    %p80 = scmp.ne.s32.totalorder %s68, %s69
    %p81 = scmp.eq.s32.totalorder %s17, 1
    %p82 = por %p80, %p81
    %p84 = scmp.ne.s32.totalorder %s69, %s83
    %p85 = scmp.eq.s32.totalorder %s17, 0
    %p86 = por %p84, %p85
    %s88 = sadd.s32 %s87, 1
    %p91 = scmp.eq.s32.totalorder %s11, 1
    %p92 = scmp.ne.s32.totalorder %s87, %s89
    %p93 = scmp.eq.s32.totalorder %s11, 0
    %p94 = por %p92, %p93
    %p95 = scmp.ne.s32.totalorder %s87, %s89
    %p96 = scmp.eq.s32.totalorder %s16, 1
    %p97 = por %p95, %p96
    %p98 = scmp.ne.s32.totalorder %s89, %s90
    %p99 = scmp.eq.s32.totalorder %s16, 0
    %p100 = por %p98, %p99
    %p101 = scmp.ne.s32.totalorder %s89, %s90
    %p102 = scmp.eq.s32.totalorder %s17, 1
    %p103 = por %p101, %p102
    %p105 = scmp.ne.s32.totalorder %s90, %s104
    %p106 = scmp.eq.s32.totalorder %s17, 0
    %p107 = por %p105, %p106
    %s109 = sadd.s32 %s108, 1
    %p112 = scmp.eq.s32.totalorder %s11, 1
    %p113 = scmp.ne.s32.totalorder %s108, %s110
    %p114 = scmp.eq.s32.totalorder %s11, 0
    %p115 = por %p113, %p114
    %p116 = scmp.ne.s32.totalorder %s108, %s110
    %p117 = scmp.eq.s32.totalorder %s16, 1
    %p118 = por %p116, %p117
    %p119 = scmp.ne.s32.totalorder %s110, %s111
    %p120 = scmp.eq.s32.totalorder %s16, 0
    %p121 = por %p119, %p120
    %p122 = scmp.ne.s32.totalorder %s110, %s111
    %p123 = scmp.eq.s32.totalorder %s17, 1
    %p124 = por %p122, %p123
    %p126 = scmp.ne.s32.totalorder %s111, %s125
    %p127 = scmp.eq.s32.totalorder %s17, 0
    %p128 = por %p126, %p127
    %s129 = ssub.s32 %s11, %s18
    %p130 = scmp.eq.s32.totalorder %s129, 0
    %s132 = sadd.s32 %s131, 1
    %s133 = scalar_select %p130, %s131, %s132
    %p136 = pneg %p130
    %p137 = scmp.eq.s32.totalorder %s11, 1
    %p138 = por %p136, %p137
    %p139 = scmp.ne.s32.totalorder %s131, %s134
    %p140 = scmp.eq.s32.totalorder %s11, 0
    %p141 = por %p139, %p140
    %p142 = scmp.ne.s32.totalorder %s131, %s134
    %p143 = scmp.eq.s32.totalorder %s16, 1
    %p144 = por %p142, %p143
    %p145 = scmp.ne.s32.totalorder %s134, %s135
    %p146 = scmp.eq.s32.totalorder %s16, 0
    %p147 = por %p145, %p146
    %p148 = scmp.ne.s32.totalorder %s134, %s135
    %p149 = scmp.eq.s32.totalorder %s17, 1
    %p150 = por %p148, %p149
    %p152 = scmp.ne.s32.totalorder %s135, %s151
    %p153 = scmp.eq.s32.totalorder %s17, 0
    %p154 = por %p152, %p153
    %p155 = scmp.le.s32.totalorder 1, %s11
    %p156 = scmp.lt.s32.totalorder %s11, 3
    %p157 = pnand %p155, %p156
    %p158 = pneg %p157
    // Predicated region
    $region9: #{tpu_custom_call.1} parent=5 // pred_check
      _
    $region10: #{tpu_custom_call.1} parent=5 // pred_check_branch
      %160 = sbr.rel (%p157) target = $region12
    $region11: #{tpu_custom_call.1} parent=5 // pred_region
      %s161 = ssub.s32 %s11, 1
      // Predicated region
      $region13: #{tpu_custom_call.1} parent=11 // pred_check
        %p162 = pneg %p58
      $region14: #{tpu_custom_call.1} parent=11 // pred_check_branch
        %164 = sbr.rel (%p162) target = $region16
      $region15: #{tpu_custom_call.1} parent=11 // pred_region
        _
      $region16: #{tpu_custom_call.1} parent=11 // pred_fallthru
        _
      // Predicated region
      $region17: #{tpu_custom_call.1} parent=11 // pred_check
        %p165 = pneg %p79
      $region18: #{tpu_custom_call.1} parent=11 // pred_check_branch
        %167 = sbr.rel (%p165) target = $region20
      $region19: #{tpu_custom_call.1} parent=11 // pred_region
        _
      $region20: #{tpu_custom_call.1} parent=11 // pred_fallthru
        _
      // Predicated region
      $region21: #{tpu_custom_call.1} parent=11 // pred_check
        %p168 = pneg %p100
      $region22: #{tpu_custom_call.1} parent=11 // pred_check_branch
        %170 = sbr.rel (%p168) target = $region24
      $region23: #{tpu_custom_call.1} parent=11 // pred_region
        _
      $region24: #{tpu_custom_call.1} parent=11 // pred_fallthru
        _
      // Predicated region
      $region25: #{tpu_custom_call.1} parent=11 // pred_check
        %p171 = pneg %p121
      $region26: #{tpu_custom_call.1} parent=11 // pred_check_branch
        %173 = sbr.rel (%p171) target = $region28
      $region27: #{tpu_custom_call.1} parent=11 // pred_region
        _
      $region28: #{tpu_custom_call.1} parent=11 // pred_fallthru
        _
    $region12: #{tpu_custom_call.1} parent=5 // pred_fallthru
      _
    %p174 = scmp.lt.s32.totalorder %s11, 2
    // Predicated region
    $region29: #{tpu_custom_call.1} parent=5 // pred_check
      %p175 = pneg %p174
    $region30: #{tpu_custom_call.1} parent=5 // pred_check_branch
      %177 = sbr.rel (%p175) target = $region32
    $region31: #{tpu_custom_call.1} parent=5 // pred_region
      // Predicated region
      $region33: #{tpu_custom_call.1} parent=31 // pred_check
        %p178 = pneg %p31
      $region34: #{tpu_custom_call.1} parent=31 // pred_check_branch
        %180 = sbr.rel (%p178) target = $region36
      $region35: #{tpu_custom_call.1} parent=31 // pred_region
        %p181 = scmp.lt.s32.totalorder %s11, 1
        %s182 = scalar_select %p181, %s11, 1
        %s183 = smul.addr %s182, 128
        %s184 = smul.addr %s183, 4
        %s185 = scalar_lea.vmem %s0, %s184
      $region36: #{tpu_custom_call.1} parent=31 // pred_fallthru
        _
    $region32: #{tpu_custom_call.1} parent=5 // pred_fallthru
      _
    %p186 = scmp.le.s32.totalorder 1, %s11
    %p187 = scmp.lt.s32.totalorder %s11, 3
    %p188 = pnand %p186, %p187
    %p189 = pneg %p188
    // Predicated region
    $region37: #{tpu_custom_call.1} parent=5 // pred_check
      _
    $region38: #{tpu_custom_call.1} parent=5 // pred_check_branch
      %191 = sbr.rel (%p188) target = $region40
    $region39: #{tpu_custom_call.1} parent=5 // pred_region
      %s192 = ssub.s32 %s11, 1
      %p193 = scmp.lt.s32.totalorder %s16, 1
      %s194 = scalar_select %p193, %s16, 1
      %s195 = smul.addr %s194, 128
      %s196 = smul.addr %s195, 4
      %s197 = scalar_lea.vmem %s0, %s196
      %p198 = pneg %p37
      %p199 = pneg %p34
      %p200 = pneg %p58
      %p201 = pneg %p55
      %p202 = pneg %p79
      %p203 = pneg %p76
      %p204 = pneg %p100
      %p205 = pneg %p97
      %p206 = pneg %p121
      %p207 = pneg %p118
      %p208 = pneg %p147
      %p209 = pneg %p144
      %p210 = scmp.lt.s32.totalorder %s16, 1
      %s211 = scalar_select %p210, %s16, 1
      %s212 = smul.addr %s211, 128
      %s213 = smul.addr %s212, 4
      %s214 = scalar_lea.vmem %s5, %s213
      %p215 = scmp.lt.s32.totalorder %s16, 1
      %s216 = scalar_select %p215, %s16, 1
      %s217 = smul.addr %s216, 128
      %s218 = smul.addr %s217, 4
      %s219 = scalar_lea.vmem %s0, %s218
      %p220 = scmp.lt.s32.totalorder %s16, 1
      %s221 = scalar_select %p220, %s16, 1
      %s222 = smul.addr %s221, 128
      %s223 = smul.addr %s222, 4
      %s224 = scalar_lea.vmem %s5, %s223
      %v226 = vld [vmem:[%s219] sm:$0xf]
      %v227 = vld [vmem:[%s219 + $0x4] sm:$0xf]
      %v228 = vld [vmem:[%s219 + $0x8] sm:$0xf]
      %v229 = vld [vmem:[%s219 + $0xc] sm:$0xf]
      %v230 = vld [vmem:[%s219 + $0x10] sm:$0xf]
      %v231 = vld [vmem:[%s219 + $0x14] sm:$0xf]
      %v232 = vld [vmem:[%s219 + $0x18] sm:$0xf]
      %v233 = vld [vmem:[%s219 + $0x1c] sm:$0xf]
      %v234 = vld [vmem:[%s219 + $0x20] sm:$0xf]
      %v235 = vld [vmem:[%s219 + $0x24] sm:$0xf]
      %v236 = vld [vmem:[%s219 + $0x28] sm:$0xf]
      %v237 = vld [vmem:[%s219 + $0x2c] sm:$0xf]
      %v238 = vld [vmem:[%s219 + $0x30] sm:$0xf]
      %v239 = vld [vmem:[%s219 + $0x34] sm:$0xf]
      %v240 = vld [vmem:[%s219 + $0x38] sm:$0xf]
      %v241 = vld [vmem:[%s219 + $0x3c] sm:$0xf]
      %v242 = vld [vmem:[%s219 + $0x40] sm:$0xf]
      %v243 = vld [vmem:[%s219 + $0x44] sm:$0xf]
      %v244 = vld [vmem:[%s219 + $0x48] sm:$0xf]
      %v245 = vld [vmem:[%s219 + $0x4c] sm:$0xf]
      %v246 = vld [vmem:[%s219 + $0x50] sm:$0xf]
      %v247 = vld [vmem:[%s219 + $0x54] sm:$0xf]
      %v248 = vld [vmem:[%s219 + $0x58] sm:$0xf]
      %v249 = vld [vmem:[%s219 + $0x5c] sm:$0xf]
      %v250 = vld [vmem:[%s219 + $0x60] sm:$0xf]
      %v251 = vld [vmem:[%s219 + $0x64] sm:$0xf]
      %v252 = vld [vmem:[%s219 + $0x68] sm:$0xf]
      %v253 = vld [vmem:[%s219 + $0x6c] sm:$0xf]
      %v254 = vld [vmem:[%s219 + $0x70] sm:$0xf]
      %v255 = vld [vmem:[%s219 + $0x74] sm:$0xf]
      %v256 = vld [vmem:[%s219 + $0x78] sm:$0xf]
      %v257 = vld [vmem:[%s219 + $0x7c] sm:$0xf]
      %v258 = vld [vmem:[%s219 + $0x80] sm:$0xf]
      %v259 = vld [vmem:[%s219 + $0x84] sm:$0xf]
      %v260 = vld [vmem:[%s219 + $0x88] sm:$0xf]
      %v261 = vld [vmem:[%s219 + $0x8c] sm:$0xf]
      %v262 = vld [vmem:[%s219 + $0x90] sm:$0xf]
      %v263 = vld [vmem:[%s219 + $0x94] sm:$0xf]
      %v264 = vld [vmem:[%s219 + $0x98] sm:$0xf]
      %v265 = vld [vmem:[%s219 + $0x9c] sm:$0xf]
      %v266 = vld [vmem:[%s219 + $0xa0] sm:$0xf]
      %v267 = vld [vmem:[%s219 + $0xa4] sm:$0xf]
      %v268 = vld [vmem:[%s219 + $0xa8] sm:$0xf]
      %v269 = vld [vmem:[%s219 + $0xac] sm:$0xf]
      %v270 = vld [vmem:[%s219 + $0xb0] sm:$0xf]
      %v271 = vld [vmem:[%s219 + $0xb4] sm:$0xf]
      %v272 = vld [vmem:[%s219 + $0xb8] sm:$0xf]
      %v273 = vld [vmem:[%s219 + $0xbc] sm:$0xf]
      %v274 = vld [vmem:[%s219 + $0xc0] sm:$0xf]
      %v275 = vld [vmem:[%s219 + $0xc4] sm:$0xf]
      %v276 = vld [vmem:[%s219 + $0xc8] sm:$0xf]
      %v277 = vld [vmem:[%s219 + $0xcc] sm:$0xf]
      %v278 = vld [vmem:[%s219 + $0xd0] sm:$0xf]
      %v279 = vld [vmem:[%s219 + $0xd4] sm:$0xf]
      %v280 = vld [vmem:[%s219 + $0xd8] sm:$0xf]
      %v281 = vld [vmem:[%s219 + $0xdc] sm:$0xf]
      %v282 = vld [vmem:[%s219 + $0xe0] sm:$0xf]
      %v283 = vld [vmem:[%s219 + $0xe4] sm:$0xf]
      %v284 = vld [vmem:[%s219 + $0xe8] sm:$0xf]
      %v285 = vld [vmem:[%s219 + $0xec] sm:$0xf]
      %v286 = vld [vmem:[%s219 + $0xf0] sm:$0xf]
      %v287 = vld [vmem:[%s219 + $0xf4] sm:$0xf]
      %v288 = vld [vmem:[%s219 + $0xf8] sm:$0xf]
      %v289 = vld [vmem:[%s219 + $0xfc] sm:$0xf]
      %v290 = vld [vmem:[%s219 + $0x100] sm:$0xf]
      %v291 = vld [vmem:[%s219 + $0x104] sm:$0xf]
      %v292 = vld [vmem:[%s219 + $0x108] sm:$0xf]
      %v293 = vld [vmem:[%s219 + $0x10c] sm:$0xf]
      %v294 = vld [vmem:[%s219 + $0x110] sm:$0xf]
      %v295 = vld [vmem:[%s219 + $0x114] sm:$0xf]
      %v296 = vld [vmem:[%s219 + $0x118] sm:$0xf]
      %v297 = vld [vmem:[%s219 + $0x11c] sm:$0xf]
      %v298 = vld [vmem:[%s219 + $0x120] sm:$0xf]
      %v299 = vld [vmem:[%s219 + $0x124] sm:$0xf]
      %v300 = vld [vmem:[%s219 + $0x128] sm:$0xf]
      %v301 = vld [vmem:[%s219 + $0x12c] sm:$0xf]
      %v302 = vld [vmem:[%s219 + $0x130] sm:$0xf]
      %v303 = vld [vmem:[%s219 + $0x134] sm:$0xf]
      %v304 = vld [vmem:[%s219 + $0x138] sm:$0xf]
      %v305 = vld [vmem:[%s219 + $0x13c] sm:$0xf]
      %v306 = vld [vmem:[%s219 + $0x140] sm:$0xf]
      %v307 = vld [vmem:[%s219 + $0x144] sm:$0xf]
      %v308 = vld [vmem:[%s219 + $0x148] sm:$0xf]
      %v309 = vld [vmem:[%s219 + $0x14c] sm:$0xf]
      %v310 = vld [vmem:[%s219 + $0x150] sm:$0xf]
      %v311 = vld [vmem:[%s219 + $0x154] sm:$0xf]
      %v312 = vld [vmem:[%s219 + $0x158] sm:$0xf]
      %v313 = vld [vmem:[%s219 + $0x15c] sm:$0xf]
      %v314 = vld [vmem:[%s219 + $0x160] sm:$0xf]
      %v315 = vld [vmem:[%s219 + $0x164] sm:$0xf]
      %v316 = vld [vmem:[%s219 + $0x168] sm:$0xf]
      %v317 = vld [vmem:[%s219 + $0x16c] sm:$0xf]
      %v318 = vld [vmem:[%s219 + $0x170] sm:$0xf]
      %v319 = vld [vmem:[%s219 + $0x174] sm:$0xf]
      %v320 = vld [vmem:[%s219 + $0x178] sm:$0xf]
      %v321 = vld [vmem:[%s219 + $0x17c] sm:$0xf]
      %v322 = vld [vmem:[%s219 + $0x180] sm:$0xf]
      %v323 = vld [vmem:[%s219 + $0x184] sm:$0xf]
      %v324 = vld [vmem:[%s219 + $0x188] sm:$0xf]
      %v325 = vld [vmem:[%s219 + $0x18c] sm:$0xf]
      %v326 = vld [vmem:[%s219 + $0x190] sm:$0xf]
      %v327 = vld [vmem:[%s219 + $0x194] sm:$0xf]
      %v328 = vld [vmem:[%s219 + $0x198] sm:$0xf]
      %v329 = vld [vmem:[%s219 + $0x19c] sm:$0xf]
      %v330 = vld [vmem:[%s219 + $0x1a0] sm:$0xf]
      %v331 = vld [vmem:[%s219 + $0x1a4] sm:$0xf]
      %v332 = vld [vmem:[%s219 + $0x1a8] sm:$0xf]
      %v333 = vld [vmem:[%s219 + $0x1ac] sm:$0xf]
      %v334 = vld [vmem:[%s219 + $0x1b0] sm:$0xf]
      %v335 = vld [vmem:[%s219 + $0x1b4] sm:$0xf]
      %v336 = vld [vmem:[%s219 + $0x1b8] sm:$0xf]
      %v337 = vld [vmem:[%s219 + $0x1bc] sm:$0xf]
      %v338 = vld [vmem:[%s219 + $0x1c0] sm:$0xf]
      %v339 = vld [vmem:[%s219 + $0x1c4] sm:$0xf]
      %v340 = vld [vmem:[%s219 + $0x1c8] sm:$0xf]
      %v341 = vld [vmem:[%s219 + $0x1cc] sm:$0xf]
      %v342 = vld [vmem:[%s219 + $0x1d0] sm:$0xf]
      %v343 = vld [vmem:[%s219 + $0x1d4] sm:$0xf]
      %v344 = vld [vmem:[%s219 + $0x1d8] sm:$0xf]
      %v345 = vld [vmem:[%s219 + $0x1dc] sm:$0xf]
      %v346 = vld [vmem:[%s219 + $0x1e0] sm:$0xf]
      %v347 = vld [vmem:[%s219 + $0x1e4] sm:$0xf]
      %v348 = vld [vmem:[%s219 + $0x1e8] sm:$0xf]
      %v349 = vld [vmem:[%s219 + $0x1ec] sm:$0xf]
      %v350 = vld [vmem:[%s219 + $0x1f0] sm:$0xf]
      %v351 = vld [vmem:[%s219 + $0x1f4] sm:$0xf]
      %v352 = vld [vmem:[%s219 + $0x1f8] sm:$0xf]
      %v353 = vld [vmem:[%s219 + $0x1fc] sm:$0xf]
      %v354 = vld [vmem:[%s1] sm:$0x3]
      %v355 = vld [vmem:[%s2] sm:$0x1]
      %v357 = vlaneseq
      %v358 = vshrl.u32 %v357, 7
      %v359 = vsub.s32 0, %v358
      %v360 = vrot.slane %v355, %v359
      %v490 = vunpack.c.l.b16 %v226
      %v491 = vunpack.c.l.b16 %v227
      %v492 = vunpack.c.l.b16 %v228
      %v493 = vunpack.c.l.b16 %v229
      %v494 = vunpack.c.l.b16 %v230
      %v495 = vunpack.c.l.b16 %v231
      %v496 = vunpack.c.l.b16 %v232
      %v497 = vunpack.c.l.b16 %v233
      %v498 = vunpack.c.l.b16 %v234
      %v499 = vunpack.c.l.b16 %v235
      %v500 = vunpack.c.l.b16 %v236
      %v501 = vunpack.c.l.b16 %v237
      %v502 = vunpack.c.l.b16 %v238
      %v503 = vunpack.c.l.b16 %v239
      %v504 = vunpack.c.l.b16 %v240
      %v505 = vunpack.c.l.b16 %v241
      %v506 = vunpack.c.l.b16 %v242
      %v507 = vunpack.c.l.b16 %v243
      %v508 = vunpack.c.l.b16 %v244
      %v509 = vunpack.c.l.b16 %v245
      %v510 = vunpack.c.l.b16 %v246
      %v511 = vunpack.c.l.b16 %v247
      %v512 = vunpack.c.l.b16 %v248
      %v513 = vunpack.c.l.b16 %v249
      %v514 = vunpack.c.l.b16 %v250
      %v515 = vunpack.c.l.b16 %v251
      %v516 = vunpack.c.l.b16 %v252
      %v517 = vunpack.c.l.b16 %v253
      %v518 = vunpack.c.l.b16 %v254
      %v519 = vunpack.c.l.b16 %v255
      %v520 = vunpack.c.l.b16 %v256
      %v521 = vunpack.c.l.b16 %v257
      %v522 = vunpack.c.l.b16 %v258
      %v523 = vunpack.c.l.b16 %v259
      %v524 = vunpack.c.l.b16 %v260
      %v525 = vunpack.c.l.b16 %v261
      %v526 = vunpack.c.l.b16 %v262
      %v527 = vunpack.c.l.b16 %v263
      %v528 = vunpack.c.l.b16 %v264
      %v529 = vunpack.c.l.b16 %v265
      %v530 = vunpack.c.l.b16 %v266
      %v531 = vunpack.c.l.b16 %v267
      %v532 = vunpack.c.l.b16 %v268
      %v533 = vunpack.c.l.b16 %v269
      %v534 = vunpack.c.l.b16 %v270
      %v535 = vunpack.c.l.b16 %v271
      %v536 = vunpack.c.l.b16 %v272
      %v537 = vunpack.c.l.b16 %v273
      %v538 = vunpack.c.l.b16 %v274
      %v539 = vunpack.c.l.b16 %v275
      %v540 = vunpack.c.l.b16 %v276
      %v541 = vunpack.c.l.b16 %v277
      %v542 = vunpack.c.l.b16 %v278
      %v543 = vunpack.c.l.b16 %v279
      %v544 = vunpack.c.l.b16 %v280
      %v545 = vunpack.c.l.b16 %v281
      %v546 = vunpack.c.l.b16 %v282
      %v547 = vunpack.c.l.b16 %v283
      %v548 = vunpack.c.l.b16 %v284
      %v549 = vunpack.c.l.b16 %v285
      %v550 = vunpack.c.l.b16 %v286
      %v551 = vunpack.c.l.b16 %v287
      %v552 = vunpack.c.l.b16 %v288
      %v553 = vunpack.c.l.b16 %v289
      %v554 = vunpack.c.l.b16 %v290
      %v555 = vunpack.c.l.b16 %v291
      %v556 = vunpack.c.l.b16 %v292
      %v557 = vunpack.c.l.b16 %v293
      %v558 = vunpack.c.l.b16 %v294
      %v559 = vunpack.c.l.b16 %v295
      %v560 = vunpack.c.l.b16 %v296
      %v561 = vunpack.c.l.b16 %v297
      %v562 = vunpack.c.l.b16 %v298
      %v563 = vunpack.c.l.b16 %v299
      %v564 = vunpack.c.l.b16 %v300
      %v565 = vunpack.c.l.b16 %v301
      %v566 = vunpack.c.l.b16 %v302
      %v567 = vunpack.c.l.b16 %v303
      %v568 = vunpack.c.l.b16 %v304
      %v569 = vunpack.c.l.b16 %v305
      %v570 = vunpack.c.l.b16 %v306
      %v571 = vunpack.c.l.b16 %v307
      %v572 = vunpack.c.l.b16 %v308
      %v573 = vunpack.c.l.b16 %v309
      %v574 = vunpack.c.l.b16 %v310
      %v575 = vunpack.c.l.b16 %v311
      %v576 = vunpack.c.l.b16 %v312
      %v577 = vunpack.c.l.b16 %v313
      %v578 = vunpack.c.l.b16 %v314
      %v579 = vunpack.c.l.b16 %v315
      %v580 = vunpack.c.l.b16 %v316
      %v581 = vunpack.c.l.b16 %v317
      %v582 = vunpack.c.l.b16 %v318
      %v583 = vunpack.c.l.b16 %v319
      %v584 = vunpack.c.l.b16 %v320
      %v585 = vunpack.c.l.b16 %v321
      %v586 = vunpack.c.l.b16 %v322
      %v587 = vunpack.c.l.b16 %v323
      %v588 = vunpack.c.l.b16 %v324
      %v589 = vunpack.c.l.b16 %v325
      %v590 = vunpack.c.l.b16 %v326
      %v591 = vunpack.c.l.b16 %v327
      %v592 = vunpack.c.l.b16 %v328
      %v593 = vunpack.c.l.b16 %v329
      %v594 = vunpack.c.l.b16 %v330
      %v595 = vunpack.c.l.b16 %v331
      %v596 = vunpack.c.l.b16 %v332
      %v597 = vunpack.c.l.b16 %v333
      %v598 = vunpack.c.l.b16 %v334
      %v599 = vunpack.c.l.b16 %v335
      %v600 = vunpack.c.l.b16 %v336
      %v601 = vunpack.c.l.b16 %v337
      %v602 = vunpack.c.l.b16 %v338
      %v603 = vunpack.c.l.b16 %v339
      %v604 = vunpack.c.l.b16 %v340
      %v605 = vunpack.c.l.b16 %v341
      %v606 = vunpack.c.l.b16 %v342
      %v607 = vunpack.c.l.b16 %v343
      %v608 = vunpack.c.l.b16 %v344
      %v609 = vunpack.c.l.b16 %v345
      %v610 = vunpack.c.l.b16 %v346
      %v611 = vunpack.c.l.b16 %v347
      %v612 = vunpack.c.l.b16 %v348
      %v613 = vunpack.c.l.b16 %v349
      %v614 = vunpack.c.l.b16 %v350
      %v615 = vunpack.c.l.b16 %v351
      %v616 = vunpack.c.l.b16 %v352
      %v617 = vunpack.c.l.b16 %v353
      %v618 = vpack.c.b16 %v491, %v490
      %v619 = vpack.c.b16 %v493, %v492
      %v620 = vpack.c.b16 %v495, %v494
      %v621 = vpack.c.b16 %v497, %v496
      %v622 = vpack.c.b16 %v499, %v498
      %v623 = vpack.c.b16 %v501, %v500
      %v624 = vpack.c.b16 %v503, %v502
      %v625 = vpack.c.b16 %v505, %v504
      %v626 = vpack.c.b16 %v507, %v506
      %v627 = vpack.c.b16 %v509, %v508
      %v628 = vpack.c.b16 %v511, %v510
      %v629 = vpack.c.b16 %v513, %v512
      %v630 = vpack.c.b16 %v515, %v514
      %v631 = vpack.c.b16 %v517, %v516
      %v632 = vpack.c.b16 %v519, %v518
      %v633 = vpack.c.b16 %v521, %v520
      %v634 = vpack.c.b16 %v523, %v522
      %v635 = vpack.c.b16 %v525, %v524
      %v636 = vpack.c.b16 %v527, %v526
      %v637 = vpack.c.b16 %v529, %v528
      %v638 = vpack.c.b16 %v531, %v530
      %v639 = vpack.c.b16 %v533, %v532
      %v640 = vpack.c.b16 %v535, %v534
      %v641 = vpack.c.b16 %v537, %v536
      %v642 = vpack.c.b16 %v539, %v538
      %v643 = vpack.c.b16 %v541, %v540
      %v644 = vpack.c.b16 %v543, %v542
      %v645 = vpack.c.b16 %v545, %v544
      %v646 = vpack.c.b16 %v547, %v546
      %v647 = vpack.c.b16 %v549, %v548
      %v648 = vpack.c.b16 %v551, %v550
      %v649 = vpack.c.b16 %v553, %v552
      %v650 = vpack.c.b16 %v555, %v554
      %v651 = vpack.c.b16 %v557, %v556
      %v652 = vpack.c.b16 %v559, %v558
      %v653 = vpack.c.b16 %v561, %v560
      %v654 = vpack.c.b16 %v563, %v562
      %v655 = vpack.c.b16 %v565, %v564
      %v656 = vpack.c.b16 %v567, %v566
      %v657 = vpack.c.b16 %v569, %v568
      %v658 = vpack.c.b16 %v571, %v570
      %v659 = vpack.c.b16 %v573, %v572
      %v660 = vpack.c.b16 %v575, %v574
      %v661 = vpack.c.b16 %v577, %v576
      %v662 = vpack.c.b16 %v579, %v578
      %v663 = vpack.c.b16 %v581, %v580
      %v664 = vpack.c.b16 %v583, %v582
      %v665 = vpack.c.b16 %v585, %v584
      %v666 = vpack.c.b16 %v587, %v586
      %v667 = vpack.c.b16 %v589, %v588
      %v668 = vpack.c.b16 %v591, %v590
      %v669 = vpack.c.b16 %v593, %v592
      %v670 = vpack.c.b16 %v595, %v594
      %v671 = vpack.c.b16 %v597, %v596
      %v672 = vpack.c.b16 %v599, %v598
      %v673 = vpack.c.b16 %v601, %v600
      %v674 = vpack.c.b16 %v603, %v602
      %v675 = vpack.c.b16 %v605, %v604
      %v676 = vpack.c.b16 %v607, %v606
      %v677 = vpack.c.b16 %v609, %v608
      %v678 = vpack.c.b16 %v611, %v610
      %v679 = vpack.c.b16 %v613, %v612
      %v680 = vpack.c.b16 %v615, %v614
      %v681 = vpack.c.b16 %v617, %v616
      %vm682 = vcmask 31744
      %v684 = vsel %vm682, %v618, 0
      %v687 = vsel %vm682, %v619, 0
      %v690 = vsel %vm682, %v620, 0
      %v693 = vsel %vm682, %v621, 0
      %v696 = vsel %vm682, %v622, 0
      %v699 = vsel %vm682, %v623, 0
      %v702 = vsel %vm682, %v624, 0
      %v705 = vsel %vm682, %v625, 0
      %v708 = vsel %vm682, %v626, 0
      %v711 = vsel %vm682, %v627, 0
      %v714 = vsel %vm682, %v628, 0
      %v717 = vsel %vm682, %v629, 0
      %v720 = vsel %vm682, %v630, 0
      %v723 = vsel %vm682, %v631, 0
      %v726 = vsel %vm682, %v632, 0
      %v729 = vsel %vm682, %v633, 0
      %v732 = vsel %vm682, %v634, 0
      %v735 = vsel %vm682, %v635, 0
      %v738 = vsel %vm682, %v636, 0
      %v741 = vsel %vm682, %v637, 0
      %v744 = vsel %vm682, %v638, 0
      %v747 = vsel %vm682, %v639, 0
      %v750 = vsel %vm682, %v640, 0
      %v753 = vsel %vm682, %v641, 0
      %v756 = vsel %vm682, %v642, 0
      %v759 = vsel %vm682, %v643, 0
      %v762 = vsel %vm682, %v644, 0
      %v765 = vsel %vm682, %v645, 0
      %v768 = vsel %vm682, %v646, 0
      %v771 = vsel %vm682, %v647, 0
      %v774 = vsel %vm682, %v648, 0
      %v777 = vsel %vm682, %v649, 0
      %v780 = vsel %vm682, %v650, 0
      %v783 = vsel %vm682, %v651, 0
      %v786 = vsel %vm682, %v652, 0
      %v789 = vsel %vm682, %v653, 0
      %v792 = vsel %vm682, %v654, 0
      %v795 = vsel %vm682, %v655, 0
      %v798 = vsel %vm682, %v656, 0
      %v801 = vsel %vm682, %v657, 0
      %v804 = vsel %vm682, %v658, 0
      %v807 = vsel %vm682, %v659, 0
      %v810 = vsel %vm682, %v660, 0
      %v813 = vsel %vm682, %v661, 0
      %v816 = vsel %vm682, %v662, 0
      %v819 = vsel %vm682, %v663, 0
      %v822 = vsel %vm682, %v664, 0
      %v825 = vsel %vm682, %v665, 0
      %v828 = vsel %vm682, %v666, 0
      %v831 = vsel %vm682, %v667, 0
      %v834 = vsel %vm682, %v668, 0
      %v837 = vsel %vm682, %v669, 0
      %v840 = vsel %vm682, %v670, 0
      %v843 = vsel %vm682, %v671, 0
      %v846 = vsel %vm682, %v672, 0
      %v849 = vsel %vm682, %v673, 0
      %v852 = vsel %vm682, %v674, 0
      %v855 = vsel %vm682, %v675, 0
      %v858 = vsel %vm682, %v676, 0
      %v861 = vsel %vm682, %v677, 0
      %v864 = vsel %vm682, %v678, 0
      %v867 = vsel %vm682, %v679, 0
      %v870 = vsel %vm682, %v680, 0
      %v873 = vsel %vm682, %v681, 0
      %vm875 = vcmask 1041408
      %v877 = vsel %vm875, %v354, 0
      %879 = vmatprep.subr.bf16.mxu0 0
      %880 = vmatpush1.bf16.msra.mxu0 %v877
      %881 = vmatprep.subr.bf16.mxu0 0
      %882 = vmatpush1.bf16.msra.mxu0 0
      %883 = vmatprep.subr.bf16.mxu0 0
      %884 = vmatpush1.bf16.msra.mxu0 0
      %885 = vmatprep.subr.bf16.mxu0 0
      %886 = vmatpush1.bf16.msra.mxu0 0
      %887 = vmatprep.subr.bf16.mxu0 0
      %888 = vmatpush1.bf16.msra.mxu0 0
      %889 = vmatprep.subr.bf16.mxu0 0
      %890 = vmatpush1.bf16.msra.mxu0 0
      %891 = vmatprep.subr.bf16.mxu0 0
      %892 = vmatpush1.bf16.msra.mxu0 0
      %893 = vmatprep.subr.bf16.mxu0 0
      %894 = vmatpush1.bf16.msra.mxu0 0
      %895 = vmatprep.subr.bf16.mxu0 0
      %896 = vmatpush1.bf16.msra.mxu0 0
      %897 = vmatprep.subr.bf16.mxu0 0
      %898 = vmatpush1.bf16.msra.mxu0 0
      %899 = vmatprep.subr.bf16.mxu0 0
      %900 = vmatpush1.bf16.msra.mxu0 0
      %901 = vmatprep.subr.bf16.mxu0 0
      %902 = vmatpush1.bf16.msra.mxu0 0
      %903 = vmatprep.subr.bf16.mxu0 0
      %904 = vmatpush1.bf16.msra.mxu0 0
      %905 = vmatprep.subr.bf16.mxu0 0
      %906 = vmatpush1.bf16.msra.mxu0 0
      %907 = vmatprep.subr.bf16.mxu0 0
      %908 = vmatpush1.bf16.msra.mxu0 0
      %909 = vmatprep.subr.bf16.mxu0 0
      %910 = vmatpush1.bf16.msra.mxu0 0
      %911 = vmatprep.mubr.bf16.mxu0 0
      %912 = vmatmul.mubr.bf16.gmra.mrb[0].mxu0 %v684
      %v913 = vpop.f32.mrb[0].mxu0
      %v914 = vadd.f32 %v360, %v913
      %v915 = vpop.f32.mrb[0].mxu0
      %v916 = vpop.f32.mrb[0].mxu0
      %v917 = vadd.f32 %v360, %v916
      %v918 = vpop.f32.mrb[0].mxu0
      %919 = vmatprep.mubr.bf16.mxu0 0
      %920 = vmatmul.mubr.bf16.gmra.mrb[0].mxu0 %v687
      %v921 = vpop.f32.mrb[0].mxu0
      %v922 = vadd.f32 %v360, %v921
      %v923 = vpop.f32.mrb[0].mxu0
      %v924 = vpop.f32.mrb[0].mxu0
      %v925 = vadd.f32 %v360, %v924
      %v926 = vpop.f32.mrb[0].mxu0
      %927 = vmatprep.mubr.bf16.mxu0 0
      %928 = vmatmul.mubr.bf16.gmra.mrb[0].mxu0 %v690
      %v929 = vpop.f32.mrb[0].mxu0
      %v930 = vadd.f32 %v360, %v929
      %v931 = vpop.f32.mrb[0].mxu0
      %v932 = vpop.f32.mrb[0].mxu0
      %v933 = vadd.f32 %v360, %v932
      %v934 = vpop.f32.mrb[0].mxu0
      %935 = vmatprep.mubr.bf16.mxu0 0
      %936 = vmatmul.mubr.bf16.gmra.mrb[0].mxu0 %v693
      %v937 = vpop.f32.mrb[0].mxu0
      %v938 = vadd.f32 %v360, %v937
      %v939 = vpop.f32.mrb[0].mxu0
      %v940 = vpop.f32.mrb[0].mxu0
      %v941 = vadd.f32 %v360, %v940
      %v942 = vpop.f32.mrb[0].mxu0
      %943 = vmatprep.mubr.bf16.mxu0 0
      %944 = vmatmul.mubr.bf16.gmra.mrb[0].mxu0 %v696
      %v945 = vpop.f32.mrb[0].mxu0
      %v946 = vadd.f32 %v360, %v945
      %v947 = vpop.f32.mrb[0].mxu0
      %v948 = vpop.f32.mrb[0].mxu0
      %v949 = vadd.f32 %v360, %v948
      %v950 = vpop.f32.mrb[0].mxu0
      %951 = vmatprep.mubr.bf16.mxu0 0
      %952 = vmatmul.mubr.bf16.gmra.mrb[0].mxu0 %v699
      %v953 = vpop.f32.mrb[0].mxu0
      %v954 = vadd.f32 %v360, %v953
      %v955 = vpop.f32.mrb[0].mxu0
      %v956 = vpop.f32.mrb[0].mxu0
      %v957 = vadd.f32 %v360, %v956
      %v958 = vpop.f32.mrb[0].mxu0
      %959 = vmatprep.mubr.bf16.mxu0 0
      %960 = vmatmul.mubr.bf16.gmra.mrb[0].mxu0 %v702
      %v961 = vpop.f32.mrb[0].mxu0
      %v962 = vadd.f32 %v360, %v961
      %v963 = vpop.f32.mrb[0].mxu0
      %v964 = vpop.f32.mrb[0].mxu0
      %v965 = vadd.f32 %v360, %v964
      %v966 = vpop.f32.mrb[0].mxu0
      %967 = vmatprep.mubr.bf16.mxu0 0
      %968 = vmatmul.mubr.bf16.gmra.mrb[0].mxu0 %v705
      %v969 = vpop.f32.mrb[0].mxu0
      %v970 = vadd.f32 %v360, %v969
      %v971 = vpop.f32.mrb[0].mxu0
      %v972 = vpop.f32.mrb[0].mxu0
      %v973 = vadd.f32 %v360, %v972
      %v974 = vpop.f32.mrb[0].mxu0
      %975 = vmatprep.mubr.bf16.mxu0 0
      %976 = vmatmul.mubr.bf16.gmra.mrb[0].mxu0 %v708
      %v977 = vpop.f32.mrb[0].mxu0
      %v978 = vadd.f32 %v360, %v977
      %v979 = vpop.f32.mrb[0].mxu0
      %v980 = vpop.f32.mrb[0].mxu0
      %v981 = vadd.f32 %v360, %v980
      %v982 = vpop.f32.mrb[0].mxu0
      %983 = vmatprep.mubr.bf16.mxu0 0
      %984 = vmatmul.mubr.bf16.gmra.mrb[0].mxu0 %v711
      %v985 = vpop.f32.mrb[0].mxu0
      %v986 = vadd.f32 %v360, %v985
      %v987 = vpop.f32.mrb[0].mxu0
      %v988 = vpop.f32.mrb[0].mxu0
      %v989 = vadd.f32 %v360, %v988
      %v990 = vpop.f32.mrb[0].mxu0
      %991 = vmatprep.mubr.bf16.mxu0 0
      %992 = vmatmul.mubr.bf16.gmra.mrb[0].mxu0 %v714
      %v993 = vpop.f32.mrb[0].mxu0
      %v994 = vadd.f32 %v360, %v993
      %v995 = vpop.f32.mrb[0].mxu0
      %v996 = vpop.f32.mrb[0].mxu0
      %v997 = vadd.f32 %v360, %v996
      %v998 = vpop.f32.mrb[0].mxu0
      %999 = vmatprep.mubr.bf16.mxu0 0
      %1000 = vmatmul.mubr.bf16.gmra.mrb[0].mxu0 %v717
      %v1001 = vpop.f32.mrb[0].mxu0
      %v1002 = vadd.f32 %v360, %v1001
      %v1003 = vpop.f32.mrb[0].mxu0
      %v1004 = vpop.f32.mrb[0].mxu0
      %v1005 = vadd.f32 %v360, %v1004
      %v1006 = vpop.f32.mrb[0].mxu0
      %1007 = vmatprep.mubr.bf16.mxu0 0
      %1008 = vmatmul.mubr.bf16.gmra.mrb[0].mxu0 %v720
      %v1009 = vpop.f32.mrb[0].mxu0
      %v1010 = vadd.f32 %v360, %v1009
      %v1011 = vpop.f32.mrb[0].mxu0
      %v1012 = vpop.f32.mrb[0].mxu0
      %v1013 = vadd.f32 %v360, %v1012
      %v1014 = vpop.f32.mrb[0].mxu0
      %1015 = vmatprep.mubr.bf16.mxu0 0
      %1016 = vmatmul.mubr.bf16.gmra.mrb[0].mxu0 %v723
      %v1017 = vpop.f32.mrb[0].mxu0
      %v1018 = vadd.f32 %v360, %v1017
      %v1019 = vpop.f32.mrb[0].mxu0
      %v1020 = vpop.f32.mrb[0].mxu0
      %v1021 = vadd.f32 %v360, %v1020
      %v1022 = vpop.f32.mrb[0].mxu0
      %1023 = vmatprep.mubr.bf16.mxu0 0
      %1024 = vmatmul.mubr.bf16.gmra.mrb[0].mxu0 %v726
      %v1025 = vpop.f32.mrb[0].mxu0
      %v1026 = vadd.f32 %v360, %v1025
      %v1027 = vpop.f32.mrb[0].mxu0
      %v1028 = vpop.f32.mrb[0].mxu0
      %v1029 = vadd.f32 %v360, %v1028
      %v1030 = vpop.f32.mrb[0].mxu0
      %1031 = vmatprep.mubr.bf16.mxu0 0
      %1032 = vmatmul.mubr.bf16.gmra.mrb[0].mxu0 %v729
      %v1033 = vpop.f32.mrb[0].mxu0
      %v1034 = vadd.f32 %v360, %v1033
      %v1035 = vpop.f32.mrb[0].mxu0
      %v1036 = vpop.f32.mrb[0].mxu0
      %v1037 = vadd.f32 %v360, %v1036
      %v1038 = vpop.f32.mrb[0].mxu0
      %1039 = vmatprep.mubr.bf16.mxu0 0
      %1040 = vmatmul.mubr.bf16.gmra.mrb[0].mxu0 %v732
      %v1041 = vpop.f32.mrb[0].mxu0
      %v1042 = vadd.f32 %v360, %v1041
      %v1043 = vpop.f32.mrb[0].mxu0
      %v1044 = vpop.f32.mrb[0].mxu0
      %v1045 = vadd.f32 %v360, %v1044
      %v1046 = vpop.f32.mrb[0].mxu0
      %1047 = vmatprep.mubr.bf16.mxu0 0
      %1048 = vmatmul.mubr.bf16.gmra.mrb[0].mxu0 %v735
      %v1049 = vpop.f32.mrb[0].mxu0
      %v1050 = vadd.f32 %v360, %v1049
      %v1051 = vpop.f32.mrb[0].mxu0
      %v1052 = vpop.f32.mrb[0].mxu0
      %v1053 = vadd.f32 %v360, %v1052
      %v1054 = vpop.f32.mrb[0].mxu0
      %1055 = vmatprep.mubr.bf16.mxu0 0
      %1056 = vmatmul.mubr.bf16.gmra.mrb[0].mxu0 %v738
      %v1057 = vpop.f32.mrb[0].mxu0
      %v1058 = vadd.f32 %v360, %v1057
      %v1059 = vpop.f32.mrb[0].mxu0
      %v1060 = vpop.f32.mrb[0].mxu0
      %v1061 = vadd.f32 %v360, %v1060
      %v1062 = vpop.f32.mrb[0].mxu0
      %1063 = vmatprep.mubr.bf16.mxu0 0
      %1064 = vmatmul.mubr.bf16.gmra.mrb[0].mxu0 %v741
      %v1065 = vpop.f32.mrb[0].mxu0
      %v1066 = vadd.f32 %v360, %v1065
      %v1067 = vpop.f32.mrb[0].mxu0
      %v1068 = vpop.f32.mrb[0].mxu0
      %v1069 = vadd.f32 %v360, %v1068
      %v1070 = vpop.f32.mrb[0].mxu0
      %1071 = vmatprep.mubr.bf16.mxu0 0
      %1072 = vmatmul.mubr.bf16.gmra.mrb[0].mxu0 %v744
      %v1073 = vpop.f32.mrb[0].mxu0
      %v1074 = vadd.f32 %v360, %v1073
      %v1075 = vpop.f32.mrb[0].mxu0
      %v1076 = vpop.f32.mrb[0].mxu0
      %v1077 = vadd.f32 %v360, %v1076
      %v1078 = vpop.f32.mrb[0].mxu0
      %1079 = vmatprep.mubr.bf16.mxu0 0
      %1080 = vmatmul.mubr.bf16.gmra.mrb[0].mxu0 %v747
      %v1081 = vpop.f32.mrb[0].mxu0
      %v1082 = vadd.f32 %v360, %v1081
      %v1083 = vpop.f32.mrb[0].mxu0
      %v1084 = vpop.f32.mrb[0].mxu0
      %v1085 = vadd.f32 %v360, %v1084
      %v1086 = vpop.f32.mrb[0].mxu0
      %1087 = vmatprep.mubr.bf16.mxu0 0
      %1088 = vmatmul.mubr.bf16.gmra.mrb[0].mxu0 %v750
      %v1089 = vpop.f32.mrb[0].mxu0
      %v1090 = vadd.f32 %v360, %v1089
      %v1091 = vpop.f32.mrb[0].mxu0
      %v1092 = vpop.f32.mrb[0].mxu0
      %v1093 = vadd.f32 %v360, %v1092
      %v1094 = vpop.f32.mrb[0].mxu0
      %1095 = vmatprep.mubr.bf16.mxu0 0
      %1096 = vmatmul.mubr.bf16.gmra.mrb[0].mxu0 %v753
      %v1097 = vpop.f32.mrb[0].mxu0
      %v1098 = vadd.f32 %v360, %v1097
      %v1099 = vpop.f32.mrb[0].mxu0
      %v1100 = vpop.f32.mrb[0].mxu0
      %v1101 = vadd.f32 %v360, %v1100
      %v1102 = vpop.f32.mrb[0].mxu0
      %1103 = vmatprep.mubr.bf16.mxu0 0
      %1104 = vmatmul.mubr.bf16.gmra.mrb[0].mxu0 %v756
      %v1105 = vpop.f32.mrb[0].mxu0
      %v1106 = vadd.f32 %v360, %v1105
      %v1107 = vpop.f32.mrb[0].mxu0
      %v1108 = vpop.f32.mrb[0].mxu0
      %v1109 = vadd.f32 %v360, %v1108
      %v1110 = vpop.f32.mrb[0].mxu0
      %1111 = vmatprep.mubr.bf16.mxu0 0
      %1112 = vmatmul.mubr.bf16.gmra.mrb[0].mxu0 %v759
      %v1113 = vpop.f32.mrb[0].mxu0
      %v1114 = vadd.f32 %v360, %v1113
      %v1115 = vpop.f32.mrb[0].mxu0
      %v1116 = vpop.f32.mrb[0].mxu0
      %v1117 = vadd.f32 %v360, %v1116
      %v1118 = vpop.f32.mrb[0].mxu0
      %1119 = vmatprep.mubr.bf16.mxu0 0
      %1120 = vmatmul.mubr.bf16.gmra.mrb[0].mxu0 %v762
      %v1121 = vpop.f32.mrb[0].mxu0
      %v1122 = vadd.f32 %v360, %v1121
      %v1123 = vpop.f32.mrb[0].mxu0
      %v1124 = vpop.f32.mrb[0].mxu0
      %v1125 = vadd.f32 %v360, %v1124
      %v1126 = vpop.f32.mrb[0].mxu0
      %1127 = vmatprep.mubr.bf16.mxu0 0
      %1128 = vmatmul.mubr.bf16.gmra.mrb[0].mxu0 %v765
      %v1129 = vpop.f32.mrb[0].mxu0
      %v1130 = vadd.f32 %v360, %v1129
      %v1131 = vpop.f32.mrb[0].mxu0
      %v1132 = vpop.f32.mrb[0].mxu0
      %v1133 = vadd.f32 %v360, %v1132
      %v1134 = vpop.f32.mrb[0].mxu0
      %1135 = vmatprep.mubr.bf16.mxu0 0
      %1136 = vmatmul.mubr.bf16.gmra.mrb[0].mxu0 %v768
      %v1137 = vpop.f32.mrb[0].mxu0
      %v1138 = vadd.f32 %v360, %v1137
      %v1139 = vpop.f32.mrb[0].mxu0
      %v1140 = vpop.f32.mrb[0].mxu0
      %v1141 = vadd.f32 %v360, %v1140
      %v1142 = vpop.f32.mrb[0].mxu0
      %1143 = vmatprep.mubr.bf16.mxu0 0
      %1144 = vmatmul.mubr.bf16.gmra.mrb[0].mxu0 %v771
      %v1145 = vpop.f32.mrb[0].mxu0
      %v1146 = vadd.f32 %v360, %v1145
      %v1147 = vpop.f32.mrb[0].mxu0
      %v1148 = vpop.f32.mrb[0].mxu0
      %v1149 = vadd.f32 %v360, %v1148
      %v1150 = vpop.f32.mrb[0].mxu0
      %1151 = vmatprep.mubr.bf16.mxu0 0
      %1152 = vmatmul.mubr.bf16.gmra.mrb[0].mxu0 %v774
      %v1153 = vpop.f32.mrb[0].mxu0
      %v1154 = vadd.f32 %v360, %v1153
      %v1155 = vpop.f32.mrb[0].mxu0
      %v1156 = vpop.f32.mrb[0].mxu0
      %v1157 = vadd.f32 %v360, %v1156
      %v1158 = vpop.f32.mrb[0].mxu0
      %1159 = vmatprep.mubr.bf16.mxu0 0
      %1160 = vmatmul.mubr.bf16.gmra.mrb[0].mxu0 %v777
      %v1161 = vpop.f32.mrb[0].mxu0
      %v1162 = vadd.f32 %v360, %v1161
      %v1163 = vpop.f32.mrb[0].mxu0
      %v1164 = vpop.f32.mrb[0].mxu0
      %v1165 = vadd.f32 %v360, %v1164
      %v1166 = vpop.f32.mrb[0].mxu0
      %1167 = vmatprep.mubr.bf16.mxu0 0
      %1168 = vmatmul.mubr.bf16.gmra.mrb[0].mxu0 %v780
      %v1169 = vpop.f32.mrb[0].mxu0
      %v1170 = vadd.f32 %v360, %v1169
      %v1171 = vpop.f32.mrb[0].mxu0
      %v1172 = vpop.f32.mrb[0].mxu0
      %v1173 = vadd.f32 %v360, %v1172
      %v1174 = vpop.f32.mrb[0].mxu0
      %1175 = vmatprep.mubr.bf16.mxu0 0
      %1176 = vmatmul.mubr.bf16.gmra.mrb[0].mxu0 %v783
      %v1177 = vpop.f32.mrb[0].mxu0
      %v1178 = vadd.f32 %v360, %v1177
      %v1179 = vpop.f32.mrb[0].mxu0
      %v1180 = vpop.f32.mrb[0].mxu0
      %v1181 = vadd.f32 %v360, %v1180
      %v1182 = vpop.f32.mrb[0].mxu0
      %1183 = vmatprep.mubr.bf16.mxu0 0
      %1184 = vmatmul.mubr.bf16.gmra.mrb[0].mxu0 %v786
      %v1185 = vpop.f32.mrb[0].mxu0
      %v1186 = vadd.f32 %v360, %v1185
      %v1187 = vpop.f32.mrb[0].mxu0
      %v1188 = vpop.f32.mrb[0].mxu0
      %v1189 = vadd.f32 %v360, %v1188
      %v1190 = vpop.f32.mrb[0].mxu0
      %1191 = vmatprep.mubr.bf16.mxu0 0
      %1192 = vmatmul.mubr.bf16.gmra.mrb[0].mxu0 %v789
      %v1193 = vpop.f32.mrb[0].mxu0
      %v1194 = vadd.f32 %v360, %v1193
      %v1195 = vpop.f32.mrb[0].mxu0
      %v1196 = vpop.f32.mrb[0].mxu0
      %v1197 = vadd.f32 %v360, %v1196
      %v1198 = vpop.f32.mrb[0].mxu0
      %1199 = vmatprep.mubr.bf16.mxu0 0
      %1200 = vmatmul.mubr.bf16.gmra.mrb[0].mxu0 %v792
      %v1201 = vpop.f32.mrb[0].mxu0
      %v1202 = vadd.f32 %v360, %v1201
      %v1203 = vpop.f32.mrb[0].mxu0
      %v1204 = vpop.f32.mrb[0].mxu0
      %v1205 = vadd.f32 %v360, %v1204
      %v1206 = vpop.f32.mrb[0].mxu0
      %1207 = vmatprep.mubr.bf16.mxu0 0
      %1208 = vmatmul.mubr.bf16.gmra.mrb[0].mxu0 %v795
      %v1209 = vpop.f32.mrb[0].mxu0
      %v1210 = vadd.f32 %v360, %v1209
      %v1211 = vpop.f32.mrb[0].mxu0
      %v1212 = vpop.f32.mrb[0].mxu0
      %v1213 = vadd.f32 %v360, %v1212
      %v1214 = vpop.f32.mrb[0].mxu0
      %1215 = vmatprep.mubr.bf16.mxu0 0
      %1216 = vmatmul.mubr.bf16.gmra.mrb[0].mxu0 %v798
      %v1217 = vpop.f32.mrb[0].mxu0
      %v1218 = vadd.f32 %v360, %v1217
      %v1219 = vpop.f32.mrb[0].mxu0
      %v1220 = vpop.f32.mrb[0].mxu0
      %v1221 = vadd.f32 %v360, %v1220
      %v1222 = vpop.f32.mrb[0].mxu0
      %1223 = vmatprep.mubr.bf16.mxu0 0
      %1224 = vmatmul.mubr.bf16.gmra.mrb[0].mxu0 %v801
      %v1225 = vpop.f32.mrb[0].mxu0
      %v1226 = vadd.f32 %v360, %v1225
      %v1227 = vpop.f32.mrb[0].mxu0
      %v1228 = vpop.f32.mrb[0].mxu0
      %v1229 = vadd.f32 %v360, %v1228
      %v1230 = vpop.f32.mrb[0].mxu0
      %1231 = vmatprep.mubr.bf16.mxu0 0
      %1232 = vmatmul.mubr.bf16.gmra.mrb[0].mxu0 %v804
      %v1233 = vpop.f32.mrb[0].mxu0
      %v1234 = vadd.f32 %v360, %v1233
      %v1235 = vpop.f32.mrb[0].mxu0
      %v1236 = vpop.f32.mrb[0].mxu0
      %v1237 = vadd.f32 %v360, %v1236
      %v1238 = vpop.f32.mrb[0].mxu0
      %1239 = vmatprep.mubr.bf16.mxu0 0
      %1240 = vmatmul.mubr.bf16.gmra.mrb[0].mxu0 %v807
      %v1241 = vpop.f32.mrb[0].mxu0
      %v1242 = vadd.f32 %v360, %v1241
      %v1243 = vpop.f32.mrb[0].mxu0
      %v1244 = vpop.f32.mrb[0].mxu0
      %v1245 = vadd.f32 %v360, %v1244
      %v1246 = vpop.f32.mrb[0].mxu0
      %1247 = vmatprep.mubr.bf16.mxu0 0
      %1248 = vmatmul.mubr.bf16.gmra.mrb[0].mxu0 %v810
      %v1249 = vpop.f32.mrb[0].mxu0
      %v1250 = vadd.f32 %v360, %v1249
      %v1251 = vpop.f32.mrb[0].mxu0
      %v1252 = vpop.f32.mrb[0].mxu0
      %v1253 = vadd.f32 %v360, %v1252
      %v1254 = vpop.f32.mrb[0].mxu0
      %1255 = vmatprep.mubr.bf16.mxu0 0
      %1256 = vmatmul.mubr.bf16.gmra.mrb[0].mxu0 %v813
      %v1257 = vpop.f32.mrb[0].mxu0
      %v1258 = vadd.f32 %v360, %v1257
      %v1259 = vpop.f32.mrb[0].mxu0
      %v1260 = vpop.f32.mrb[0].mxu0
      %v1261 = vadd.f32 %v360, %v1260
      %v1262 = vpop.f32.mrb[0].mxu0
      %1263 = vmatprep.mubr.bf16.mxu0 0
      %1264 = vmatmul.mubr.bf16.gmra.mrb[0].mxu0 %v816
      %v1265 = vpop.f32.mrb[0].mxu0
      %v1266 = vadd.f32 %v360, %v1265
      %v1267 = vpop.f32.mrb[0].mxu0
      %v1268 = vpop.f32.mrb[0].mxu0
      %v1269 = vadd.f32 %v360, %v1268
      %v1270 = vpop.f32.mrb[0].mxu0
      %1271 = vmatprep.mubr.bf16.mxu0 0
      %1272 = vmatmul.mubr.bf16.gmra.mrb[0].mxu0 %v819
      %v1273 = vpop.f32.mrb[0].mxu0
      %v1274 = vadd.f32 %v360, %v1273
      %v1275 = vpop.f32.mrb[0].mxu0
      %v1276 = vpop.f32.mrb[0].mxu0
      %v1277 = vadd.f32 %v360, %v1276
      %v1278 = vpop.f32.mrb[0].mxu0
      %1279 = vmatprep.mubr.bf16.mxu0 0
      %1280 = vmatmul.mubr.bf16.gmra.mrb[0].mxu0 %v822
      %v1281 = vpop.f32.mrb[0].mxu0
      %v1282 = vadd.f32 %v360, %v1281
      %v1283 = vpop.f32.mrb[0].mxu0
      %v1284 = vpop.f32.mrb[0].mxu0
      %v1285 = vadd.f32 %v360, %v1284
      %v1286 = vpop.f32.mrb[0].mxu0
      %1287 = vmatprep.mubr.bf16.mxu0 0
      %1288 = vmatmul.mubr.bf16.gmra.mrb[0].mxu0 %v825
      %v1289 = vpop.f32.mrb[0].mxu0
      %v1290 = vadd.f32 %v360, %v1289
      %v1291 = vpop.f32.mrb[0].mxu0
      %v1292 = vpop.f32.mrb[0].mxu0
      %v1293 = vadd.f32 %v360, %v1292
      %v1294 = vpop.f32.mrb[0].mxu0
      %1295 = vmatprep.mubr.bf16.mxu0 0
      %1296 = vmatmul.mubr.bf16.gmra.mrb[0].mxu0 %v828
      %v1297 = vpop.f32.mrb[0].mxu0
      %v1298 = vadd.f32 %v360, %v1297
      %v1299 = vpop.f32.mrb[0].mxu0
      %v1300 = vpop.f32.mrb[0].mxu0
      %v1301 = vadd.f32 %v360, %v1300
      %v1302 = vpop.f32.mrb[0].mxu0
      %1303 = vmatprep.mubr.bf16.mxu0 0
      %1304 = vmatmul.mubr.bf16.gmra.mrb[0].mxu0 %v831
      %v1305 = vpop.f32.mrb[0].mxu0
      %v1306 = vadd.f32 %v360, %v1305
      %v1307 = vpop.f32.mrb[0].mxu0
      %v1308 = vpop.f32.mrb[0].mxu0
      %v1309 = vadd.f32 %v360, %v1308
      %v1310 = vpop.f32.mrb[0].mxu0
      %1311 = vmatprep.mubr.bf16.mxu0 0
      %1312 = vmatmul.mubr.bf16.gmra.mrb[0].mxu0 %v834
      %v1313 = vpop.f32.mrb[0].mxu0
      %v1314 = vadd.f32 %v360, %v1313
      %v1315 = vpop.f32.mrb[0].mxu0
      %v1316 = vpop.f32.mrb[0].mxu0
      %v1317 = vadd.f32 %v360, %v1316
      %v1318 = vpop.f32.mrb[0].mxu0
      %1319 = vmatprep.mubr.bf16.mxu0 0
      %1320 = vmatmul.mubr.bf16.gmra.mrb[0].mxu0 %v837
      %v1321 = vpop.f32.mrb[0].mxu0
      %v1322 = vadd.f32 %v360, %v1321
      %v1323 = vpop.f32.mrb[0].mxu0
      %v1324 = vpop.f32.mrb[0].mxu0
      %v1325 = vadd.f32 %v360, %v1324
      %v1326 = vpop.f32.mrb[0].mxu0
      %1327 = vmatprep.mubr.bf16.mxu0 0
      %1328 = vmatmul.mubr.bf16.gmra.mrb[0].mxu0 %v840
      %v1329 = vpop.f32.mrb[0].mxu0
      %v1330 = vadd.f32 %v360, %v1329
      %v1331 = vpop.f32.mrb[0].mxu0
      %v1332 = vpop.f32.mrb[0].mxu0
      %v1333 = vadd.f32 %v360, %v1332
      %v1334 = vpop.f32.mrb[0].mxu0
      %1335 = vmatprep.mubr.bf16.mxu0 0
      %1336 = vmatmul.mubr.bf16.gmra.mrb[0].mxu0 %v843
      %v1337 = vpop.f32.mrb[0].mxu0
      %v1338 = vadd.f32 %v360, %v1337
      %v1339 = vpop.f32.mrb[0].mxu0
      %v1340 = vpop.f32.mrb[0].mxu0
      %v1341 = vadd.f32 %v360, %v1340
      %v1342 = vpop.f32.mrb[0].mxu0
      %1343 = vmatprep.mubr.bf16.mxu0 0
      %1344 = vmatmul.mubr.bf16.gmra.mrb[0].mxu0 %v846
      %v1345 = vpop.f32.mrb[0].mxu0
      %v1346 = vadd.f32 %v360, %v1345
      %v1347 = vpop.f32.mrb[0].mxu0
      %v1348 = vpop.f32.mrb[0].mxu0
      %v1349 = vadd.f32 %v360, %v1348
      %v1350 = vpop.f32.mrb[0].mxu0
      %1351 = vmatprep.mubr.bf16.mxu0 0
      %1352 = vmatmul.mubr.bf16.gmra.mrb[0].mxu0 %v849
      %v1353 = vpop.f32.mrb[0].mxu0
      %v1354 = vadd.f32 %v360, %v1353
      %v1355 = vpop.f32.mrb[0].mxu0
      %v1356 = vpop.f32.mrb[0].mxu0
      %v1357 = vadd.f32 %v360, %v1356
      %v1358 = vpop.f32.mrb[0].mxu0
      %1359 = vmatprep.mubr.bf16.mxu0 0
      %1360 = vmatmul.mubr.bf16.gmra.mrb[0].mxu0 %v852
      %v1361 = vpop.f32.mrb[0].mxu0
      %v1362 = vadd.f32 %v360, %v1361
      %v1363 = vpop.f32.mrb[0].mxu0
      %v1364 = vpop.f32.mrb[0].mxu0
      %v1365 = vadd.f32 %v360, %v1364
      %v1366 = vpop.f32.mrb[0].mxu0
      %1367 = vmatprep.mubr.bf16.mxu0 0
      %1368 = vmatmul.mubr.bf16.gmra.mrb[0].mxu0 %v855
      %v1369 = vpop.f32.mrb[0].mxu0
      %v1370 = vadd.f32 %v360, %v1369
      %v1371 = vpop.f32.mrb[0].mxu0
      %v1372 = vpop.f32.mrb[0].mxu0
      %v1373 = vadd.f32 %v360, %v1372
      %v1374 = vpop.f32.mrb[0].mxu0
      %1375 = vmatprep.mubr.bf16.mxu0 0
      %1376 = vmatmul.mubr.bf16.gmra.mrb[0].mxu0 %v858
      %v1377 = vpop.f32.mrb[0].mxu0
      %v1378 = vadd.f32 %v360, %v1377
      %v1379 = vpop.f32.mrb[0].mxu0
      %v1380 = vpop.f32.mrb[0].mxu0
      %v1381 = vadd.f32 %v360, %v1380
      %v1382 = vpop.f32.mrb[0].mxu0
      %1383 = vmatprep.mubr.bf16.mxu0 0
      %1384 = vmatmul.mubr.bf16.gmra.mrb[0].mxu0 %v861
      %v1385 = vpop.f32.mrb[0].mxu0
      %v1386 = vadd.f32 %v360, %v1385
      %v1387 = vpop.f32.mrb[0].mxu0
      %v1388 = vpop.f32.mrb[0].mxu0
      %v1389 = vadd.f32 %v360, %v1388
      %v1390 = vpop.f32.mrb[0].mxu0
      %1391 = vmatprep.mubr.bf16.mxu0 0
      %1392 = vmatmul.mubr.bf16.gmra.mrb[0].mxu0 %v864
      %v1393 = vpop.f32.mrb[0].mxu0
      %v1394 = vadd.f32 %v360, %v1393
      %v1395 = vpop.f32.mrb[0].mxu0
      %v1396 = vpop.f32.mrb[0].mxu0
      %v1397 = vadd.f32 %v360, %v1396
      %v1398 = vpop.f32.mrb[0].mxu0
      %1399 = vmatprep.mubr.bf16.mxu0 0
      %1400 = vmatmul.mubr.bf16.gmra.mrb[0].mxu0 %v867
      %v1401 = vpop.f32.mrb[0].mxu0
      %v1402 = vadd.f32 %v360, %v1401
      %v1403 = vpop.f32.mrb[0].mxu0
      %v1404 = vpop.f32.mrb[0].mxu0
      %v1405 = vadd.f32 %v360, %v1404
      %v1406 = vpop.f32.mrb[0].mxu0
      %1407 = vmatprep.mubr.bf16.mxu0 0
      %1408 = vmatmul.mubr.bf16.gmra.mrb[0].mxu0 %v870
      %v1409 = vpop.f32.mrb[0].mxu0
      %v1410 = vadd.f32 %v360, %v1409
      %v1411 = vpop.f32.mrb[0].mxu0
      %v1412 = vpop.f32.mrb[0].mxu0
      %v1413 = vadd.f32 %v360, %v1412
      %v1414 = vpop.f32.mrb[0].mxu0
      %1415 = vmatprep.mubr.bf16.mxu0 0
      %1416 = vmatmul.mubr.bf16.gmra.mrb[0].mxu0 %v873
      %v1417 = vpop.f32.mrb[0].mxu0
      %v1418 = vadd.f32 %v360, %v1417
      %v1419 = vpop.f32.mrb[0].mxu0
      %v1420 = vpop.f32.mrb[0].mxu0
      %v1421 = vadd.f32 %v360, %v1420
      %v1422 = vpop.f32.mrb[0].mxu0
      %1423 = vdwg.mxu0
      %v1424 = vmax.f32 %v914, 0.0
      %v1425 = vmax.f32 %v917, 0.0
      %v1426 = vmax.f32 %v922, 0.0
      %v1427 = vmax.f32 %v925, 0.0
      %v1428 = vmax.f32 %v930, 0.0
      %v1429 = vmax.f32 %v933, 0.0
      %v1430 = vmax.f32 %v938, 0.0
      %v1431 = vmax.f32 %v941, 0.0
      %v1432 = vmax.f32 %v946, 0.0
      %v1433 = vmax.f32 %v949, 0.0
      %v1434 = vmax.f32 %v954, 0.0
      %v1435 = vmax.f32 %v957, 0.0
      %v1436 = vmax.f32 %v962, 0.0
      %v1437 = vmax.f32 %v965, 0.0
      %v1438 = vmax.f32 %v970, 0.0
      %v1439 = vmax.f32 %v973, 0.0
      %v1440 = vmax.f32 %v978, 0.0
      %v1441 = vmax.f32 %v981, 0.0
      %v1442 = vmax.f32 %v986, 0.0
      %v1443 = vmax.f32 %v989, 0.0
      %v1444 = vmax.f32 %v994, 0.0
      %v1445 = vmax.f32 %v997, 0.0
      %v1446 = vmax.f32 %v1002, 0.0
      %v1447 = vmax.f32 %v1005, 0.0
      %v1448 = vmax.f32 %v1010, 0.0
      %v1449 = vmax.f32 %v1013, 0.0
      %v1450 = vmax.f32 %v1018, 0.0
      %v1451 = vmax.f32 %v1021, 0.0
      %v1452 = vmax.f32 %v1026, 0.0
      %v1453 = vmax.f32 %v1029, 0.0
      %v1454 = vmax.f32 %v1034, 0.0
      %v1455 = vmax.f32 %v1037, 0.0
      %v1456 = vmax.f32 %v1042, 0.0
      %v1457 = vmax.f32 %v1045, 0.0
      %v1458 = vmax.f32 %v1050, 0.0
      %v1459 = vmax.f32 %v1053, 0.0
      %v1460 = vmax.f32 %v1058, 0.0
      %v1461 = vmax.f32 %v1061, 0.0
      %v1462 = vmax.f32 %v1066, 0.0
      %v1463 = vmax.f32 %v1069, 0.0
      %v1464 = vmax.f32 %v1074, 0.0
      %v1465 = vmax.f32 %v1077, 0.0
      %v1466 = vmax.f32 %v1082, 0.0
      %v1467 = vmax.f32 %v1085, 0.0
      %v1468 = vmax.f32 %v1090, 0.0
      %v1469 = vmax.f32 %v1093, 0.0
      %v1470 = vmax.f32 %v1098, 0.0
      %v1471 = vmax.f32 %v1101, 0.0
      %v1472 = vmax.f32 %v1106, 0.0
      %v1473 = vmax.f32 %v1109, 0.0
      %v1474 = vmax.f32 %v1114, 0.0
      %v1475 = vmax.f32 %v1117, 0.0
      %v1476 = vmax.f32 %v1122, 0.0
      %v1477 = vmax.f32 %v1125, 0.0
      %v1478 = vmax.f32 %v1130, 0.0
      %v1479 = vmax.f32 %v1133, 0.0
      %v1480 = vmax.f32 %v1138, 0.0
      %v1481 = vmax.f32 %v1141, 0.0
      %v1482 = vmax.f32 %v1146, 0.0
      %v1483 = vmax.f32 %v1149, 0.0
      %v1484 = vmax.f32 %v1154, 0.0
      %v1485 = vmax.f32 %v1157, 0.0
      %v1486 = vmax.f32 %v1162, 0.0
      %v1487 = vmax.f32 %v1165, 0.0
      %v1488 = vmax.f32 %v1170, 0.0
      %v1489 = vmax.f32 %v1173, 0.0
      %v1490 = vmax.f32 %v1178, 0.0
      %v1491 = vmax.f32 %v1181, 0.0
      %v1492 = vmax.f32 %v1186, 0.0
      %v1493 = vmax.f32 %v1189, 0.0
      %v1494 = vmax.f32 %v1194, 0.0
      %v1495 = vmax.f32 %v1197, 0.0
      %v1496 = vmax.f32 %v1202, 0.0
      %v1497 = vmax.f32 %v1205, 0.0
      %v1498 = vmax.f32 %v1210, 0.0
      %v1499 = vmax.f32 %v1213, 0.0
      %v1500 = vmax.f32 %v1218, 0.0
      %v1501 = vmax.f32 %v1221, 0.0
      %v1502 = vmax.f32 %v1226, 0.0
      %v1503 = vmax.f32 %v1229, 0.0
      %v1504 = vmax.f32 %v1234, 0.0
      %v1505 = vmax.f32 %v1237, 0.0
      %v1506 = vmax.f32 %v1242, 0.0
      %v1507 = vmax.f32 %v1245, 0.0
      %v1508 = vmax.f32 %v1250, 0.0
      %v1509 = vmax.f32 %v1253, 0.0
      %v1510 = vmax.f32 %v1258, 0.0
      %v1511 = vmax.f32 %v1261, 0.0
      %v1512 = vmax.f32 %v1266, 0.0
      %v1513 = vmax.f32 %v1269, 0.0
      %v1514 = vmax.f32 %v1274, 0.0
      %v1515 = vmax.f32 %v1277, 0.0
      %v1516 = vmax.f32 %v1282, 0.0
      %v1517 = vmax.f32 %v1285, 0.0
      %v1518 = vmax.f32 %v1290, 0.0
      %v1519 = vmax.f32 %v1293, 0.0
      %v1520 = vmax.f32 %v1298, 0.0
      %v1521 = vmax.f32 %v1301, 0.0
      %v1522 = vmax.f32 %v1306, 0.0
      %v1523 = vmax.f32 %v1309, 0.0
      %v1524 = vmax.f32 %v1314, 0.0
      %v1525 = vmax.f32 %v1317, 0.0
      %v1526 = vmax.f32 %v1322, 0.0
      %v1527 = vmax.f32 %v1325, 0.0
      %v1528 = vmax.f32 %v1330, 0.0
      %v1529 = vmax.f32 %v1333, 0.0
      %v1530 = vmax.f32 %v1338, 0.0
      %v1531 = vmax.f32 %v1341, 0.0
      %v1532 = vmax.f32 %v1346, 0.0
      %v1533 = vmax.f32 %v1349, 0.0
      %v1534 = vmax.f32 %v1354, 0.0
      %v1535 = vmax.f32 %v1357, 0.0
      %v1536 = vmax.f32 %v1362, 0.0
      %v1537 = vmax.f32 %v1365, 0.0
      %v1538 = vmax.f32 %v1370, 0.0
      %v1539 = vmax.f32 %v1373, 0.0
      %v1540 = vmax.f32 %v1378, 0.0
      %v1541 = vmax.f32 %v1381, 0.0
      %v1542 = vmax.f32 %v1386, 0.0
      %v1543 = vmax.f32 %v1389, 0.0
      %v1544 = vmax.f32 %v1394, 0.0
      %v1545 = vmax.f32 %v1397, 0.0
      %v1546 = vmax.f32 %v1402, 0.0
      %v1547 = vmax.f32 %v1405, 0.0
      %v1548 = vmax.f32 %v1410, 0.0
      %v1549 = vmax.f32 %v1413, 0.0
      %v1550 = vmax.f32 %v1418, 0.0
      %v1551 = vmax.f32 %v1421, 0.0
      %v1552 = vpack.c.bf16 %v1425, %v1424
      %v1553 = vpack.c.bf16 %v1427, %v1426
      %v1554 = vpack.c.bf16 %v1429, %v1428
      %v1555 = vpack.c.bf16 %v1431, %v1430
      %v1556 = vpack.c.bf16 %v1433, %v1432
      %v1557 = vpack.c.bf16 %v1435, %v1434
      %v1558 = vpack.c.bf16 %v1437, %v1436
      %v1559 = vpack.c.bf16 %v1439, %v1438
      %v1560 = vpack.c.bf16 %v1441, %v1440
      %v1561 = vpack.c.bf16 %v1443, %v1442
      %v1562 = vpack.c.bf16 %v1445, %v1444
      %v1563 = vpack.c.bf16 %v1447, %v1446
      %v1564 = vpack.c.bf16 %v1449, %v1448
      %v1565 = vpack.c.bf16 %v1451, %v1450
      %v1566 = vpack.c.bf16 %v1453, %v1452
      %v1567 = vpack.c.bf16 %v1455, %v1454
      %v1568 = vpack.c.bf16 %v1457, %v1456
      %v1569 = vpack.c.bf16 %v1459, %v1458
      %v1570 = vpack.c.bf16 %v1461, %v1460
      %v1571 = vpack.c.bf16 %v1463, %v1462
      %v1572 = vpack.c.bf16 %v1465, %v1464
      %v1573 = vpack.c.bf16 %v1467, %v1466
      %v1574 = vpack.c.bf16 %v1469, %v1468
      %v1575 = vpack.c.bf16 %v1471, %v1470
      %v1576 = vpack.c.bf16 %v1473, %v1472
      %v1577 = vpack.c.bf16 %v1475, %v1474
      %v1578 = vpack.c.bf16 %v1477, %v1476
      %v1579 = vpack.c.bf16 %v1479, %v1478
      %v1580 = vpack.c.bf16 %v1481, %v1480
      %v1581 = vpack.c.bf16 %v1483, %v1482
      %v1582 = vpack.c.bf16 %v1485, %v1484
      %v1583 = vpack.c.bf16 %v1487, %v1486
      %v1584 = vpack.c.bf16 %v1489, %v1488
      %v1585 = vpack.c.bf16 %v1491, %v1490
      %v1586 = vpack.c.bf16 %v1493, %v1492
      %v1587 = vpack.c.bf16 %v1495, %v1494
      %v1588 = vpack.c.bf16 %v1497, %v1496
      %v1589 = vpack.c.bf16 %v1499, %v1498
      %v1590 = vpack.c.bf16 %v1501, %v1500
      %v1591 = vpack.c.bf16 %v1503, %v1502
      %v1592 = vpack.c.bf16 %v1505, %v1504
      %v1593 = vpack.c.bf16 %v1507, %v1506
      %v1594 = vpack.c.bf16 %v1509, %v1508
      %v1595 = vpack.c.bf16 %v1511, %v1510
      %v1596 = vpack.c.bf16 %v1513, %v1512
      %v1597 = vpack.c.bf16 %v1515, %v1514
      %v1598 = vpack.c.bf16 %v1517, %v1516
      %v1599 = vpack.c.bf16 %v1519, %v1518
      %v1600 = vpack.c.bf16 %v1521, %v1520
      %v1601 = vpack.c.bf16 %v1523, %v1522
      %v1602 = vpack.c.bf16 %v1525, %v1524
      %v1603 = vpack.c.bf16 %v1527, %v1526
      %v1604 = vpack.c.bf16 %v1529, %v1528
      %v1605 = vpack.c.bf16 %v1531, %v1530
      %v1606 = vpack.c.bf16 %v1533, %v1532
      %v1607 = vpack.c.bf16 %v1535, %v1534
      %v1608 = vpack.c.bf16 %v1537, %v1536
      %v1609 = vpack.c.bf16 %v1539, %v1538
      %v1610 = vpack.c.bf16 %v1541, %v1540
      %v1611 = vpack.c.bf16 %v1543, %v1542
      %v1612 = vpack.c.bf16 %v1545, %v1544
      %v1613 = vpack.c.bf16 %v1547, %v1546
      %v1614 = vpack.c.bf16 %v1549, %v1548
      %v1615 = vpack.c.bf16 %v1551, %v1550
      %vm1616 = vsmask.f32 256
      %v1618 = vshrl.u32 %v1552, 16
      %v1620 = vrot.slane %v1618, 7
      %v1621 = vshll.u32 %v1552, 16
      %v1623 = vor.u32 %v1620, %v1621
      %v1625 = vshrl.u32 %v1553, 16
      %v1627 = vrot.slane %v1625, 7
      %v1628 = vshll.u32 %v1553, 16
      %v1630 = vor.u32 %v1627, %v1628
      %v1631 = vsel %vm1616, %v1620, %v1630
      %v1633 = vshrl.u32 %v1554, 16
      %v1635 = vrot.slane %v1633, 7
      %v1636 = vshll.u32 %v1554, 16
      %v1638 = vor.u32 %v1635, %v1636
      %v1640 = vshrl.u32 %v1555, 16
      %v1642 = vrot.slane %v1640, 7
      %v1643 = vshll.u32 %v1555, 16
      %v1645 = vor.u32 %v1642, %v1643
      %v1646 = vsel %vm1616, %v1635, %v1645
      %v1648 = vshrl.u32 %v1556, 16
      %v1650 = vrot.slane %v1648, 7
      %v1651 = vshll.u32 %v1556, 16
      %v1653 = vor.u32 %v1650, %v1651
      %v1655 = vshrl.u32 %v1557, 16
      %v1657 = vrot.slane %v1655, 7
      %v1658 = vshll.u32 %v1557, 16
      %v1660 = vor.u32 %v1657, %v1658
      %v1661 = vsel %vm1616, %v1650, %v1660
      %v1663 = vshrl.u32 %v1558, 16
      %v1665 = vrot.slane %v1663, 7
      %v1666 = vshll.u32 %v1558, 16
      %v1668 = vor.u32 %v1665, %v1666
      %v1670 = vshrl.u32 %v1559, 16
      %v1672 = vrot.slane %v1670, 7
      %v1673 = vshll.u32 %v1559, 16
      %v1675 = vor.u32 %v1672, %v1673
      %v1676 = vsel %vm1616, %v1665, %v1675
      %v1678 = vshrl.u32 %v1560, 16
      %v1680 = vrot.slane %v1678, 7
      %v1681 = vshll.u32 %v1560, 16
      %v1683 = vor.u32 %v1680, %v1681
      %v1685 = vshrl.u32 %v1561, 16
      %v1687 = vrot.slane %v1685, 7
      %v1688 = vshll.u32 %v1561, 16
      %v1690 = vor.u32 %v1687, %v1688
      %v1691 = vsel %vm1616, %v1680, %v1690
      %v1693 = vshrl.u32 %v1562, 16
      %v1695 = vrot.slane %v1693, 7
      %v1696 = vshll.u32 %v1562, 16
      %v1698 = vor.u32 %v1695, %v1696
      %v1700 = vshrl.u32 %v1563, 16
      %v1702 = vrot.slane %v1700, 7
      %v1703 = vshll.u32 %v1563, 16
      %v1705 = vor.u32 %v1702, %v1703
      %v1706 = vsel %vm1616, %v1695, %v1705
      %v1708 = vshrl.u32 %v1564, 16
      %v1710 = vrot.slane %v1708, 7
      %v1711 = vshll.u32 %v1564, 16
      %v1713 = vor.u32 %v1710, %v1711
      %v1715 = vshrl.u32 %v1565, 16
      %v1717 = vrot.slane %v1715, 7
      %v1718 = vshll.u32 %v1565, 16
      %v1720 = vor.u32 %v1717, %v1718
      %v1721 = vsel %vm1616, %v1710, %v1720
      %v1723 = vshrl.u32 %v1566, 16
      %v1725 = vrot.slane %v1723, 7
      %v1726 = vshll.u32 %v1566, 16
      %v1728 = vor.u32 %v1725, %v1726
      %v1730 = vshrl.u32 %v1567, 16
      %v1732 = vrot.slane %v1730, 7
      %v1733 = vshll.u32 %v1567, 16
      %v1735 = vor.u32 %v1732, %v1733
      %v1736 = vsel %vm1616, %v1725, %v1735
      %v1738 = vshrl.u32 %v1568, 16
      %v1740 = vrot.slane %v1738, 7
      %v1741 = vshll.u32 %v1568, 16
      %v1743 = vor.u32 %v1740, %v1741
      %v1745 = vshrl.u32 %v1569, 16
      %v1747 = vrot.slane %v1745, 7
      %v1748 = vshll.u32 %v1569, 16
      %v1750 = vor.u32 %v1747, %v1748
      %v1751 = vsel %vm1616, %v1740, %v1750
      %v1753 = vshrl.u32 %v1570, 16
      %v1755 = vrot.slane %v1753, 7
      %v1756 = vshll.u32 %v1570, 16
      %v1758 = vor.u32 %v1755, %v1756
      %v1760 = vshrl.u32 %v1571, 16
      %v1762 = vrot.slane %v1760, 7
      %v1763 = vshll.u32 %v1571, 16
      %v1765 = vor.u32 %v1762, %v1763
      %v1766 = vsel %vm1616, %v1755, %v1765
      %v1768 = vshrl.u32 %v1572, 16
      %v1770 = vrot.slane %v1768, 7
      %v1771 = vshll.u32 %v1572, 16
      %v1773 = vor.u32 %v1770, %v1771
      %v1775 = vshrl.u32 %v1573, 16
      %v1777 = vrot.slane %v1775, 7
      %v1778 = vshll.u32 %v1573, 16
      %v1780 = vor.u32 %v1777, %v1778
      %v1781 = vsel %vm1616, %v1770, %v1780
      %v1783 = vshrl.u32 %v1574, 16
      %v1785 = vrot.slane %v1783, 7
      %v1786 = vshll.u32 %v1574, 16
      %v1788 = vor.u32 %v1785, %v1786
      %v1790 = vshrl.u32 %v1575, 16
      %v1792 = vrot.slane %v1790, 7
      %v1793 = vshll.u32 %v1575, 16
      %v1795 = vor.u32 %v1792, %v1793
      %v1796 = vsel %vm1616, %v1785, %v1795
      %v1798 = vshrl.u32 %v1576, 16
      %v1800 = vrot.slane %v1798, 7
      %v1801 = vshll.u32 %v1576, 16
      %v1803 = vor.u32 %v1800, %v1801
      %v1805 = vshrl.u32 %v1577, 16
      %v1807 = vrot.slane %v1805, 7
      %v1808 = vshll.u32 %v1577, 16
      %v1810 = vor.u32 %v1807, %v1808
      %v1811 = vsel %vm1616, %v1800, %v1810
      %v1813 = vshrl.u32 %v1578, 16
      %v1815 = vrot.slane %v1813, 7
      %v1816 = vshll.u32 %v1578, 16
      %v1818 = vor.u32 %v1815, %v1816
      %v1820 = vshrl.u32 %v1579, 16
      %v1822 = vrot.slane %v1820, 7
      %v1823 = vshll.u32 %v1579, 16
      %v1825 = vor.u32 %v1822, %v1823
      %v1826 = vsel %vm1616, %v1815, %v1825
      %v1828 = vshrl.u32 %v1580, 16
      %v1830 = vrot.slane %v1828, 7
      %v1831 = vshll.u32 %v1580, 16
      %v1833 = vor.u32 %v1830, %v1831
      %v1835 = vshrl.u32 %v1581, 16
      %v1837 = vrot.slane %v1835, 7
      %v1838 = vshll.u32 %v1581, 16
      %v1840 = vor.u32 %v1837, %v1838
      %v1841 = vsel %vm1616, %v1830, %v1840
      %v1843 = vshrl.u32 %v1582, 16
      %v1845 = vrot.slane %v1843, 7
      %v1846 = vshll.u32 %v1582, 16
      %v1848 = vor.u32 %v1845, %v1846
      %v1850 = vshrl.u32 %v1583, 16
      %v1852 = vrot.slane %v1850, 7
      %v1853 = vshll.u32 %v1583, 16
      %v1855 = vor.u32 %v1852, %v1853
      %v1856 = vsel %vm1616, %v1845, %v1855
      %v1858 = vshrl.u32 %v1584, 16
      %v1860 = vrot.slane %v1858, 7
      %v1861 = vshll.u32 %v1584, 16
      %v1863 = vor.u32 %v1860, %v1861
      %v1865 = vshrl.u32 %v1585, 16
      %v1867 = vrot.slane %v1865, 7
      %v1868 = vshll.u32 %v1585, 16
      %v1870 = vor.u32 %v1867, %v1868
      %v1871 = vsel %vm1616, %v1860, %v1870
      %v1873 = vshrl.u32 %v1586, 16
      %v1875 = vrot.slane %v1873, 7
      %v1876 = vshll.u32 %v1586, 16
      %v1878 = vor.u32 %v1875, %v1876
      %v1880 = vshrl.u32 %v1587, 16
      %v1882 = vrot.slane %v1880, 7
      %v1883 = vshll.u32 %v1587, 16
      %v1885 = vor.u32 %v1882, %v1883
      %v1886 = vsel %vm1616, %v1875, %v1885
      %v1888 = vshrl.u32 %v1588, 16
      %v1890 = vrot.slane %v1888, 7
      %v1891 = vshll.u32 %v1588, 16
      %v1893 = vor.u32 %v1890, %v1891
      %v1895 = vshrl.u32 %v1589, 16
      %v1897 = vrot.slane %v1895, 7
      %v1898 = vshll.u32 %v1589, 16
      %v1900 = vor.u32 %v1897, %v1898
      %v1901 = vsel %vm1616, %v1890, %v1900
      %v1903 = vshrl.u32 %v1590, 16
      %v1905 = vrot.slane %v1903, 7
      %v1906 = vshll.u32 %v1590, 16
      %v1908 = vor.u32 %v1905, %v1906
      %v1910 = vshrl.u32 %v1591, 16
      %v1912 = vrot.slane %v1910, 7
      %v1913 = vshll.u32 %v1591, 16
      %v1915 = vor.u32 %v1912, %v1913
      %v1916 = vsel %vm1616, %v1905, %v1915
      %v1918 = vshrl.u32 %v1592, 16
      %v1920 = vrot.slane %v1918, 7
      %v1921 = vshll.u32 %v1592, 16
      %v1923 = vor.u32 %v1920, %v1921
      %v1925 = vshrl.u32 %v1593, 16
      %v1927 = vrot.slane %v1925, 7
      %v1928 = vshll.u32 %v1593, 16
      %v1930 = vor.u32 %v1927, %v1928
      %v1931 = vsel %vm1616, %v1920, %v1930
      %v1933 = vshrl.u32 %v1594, 16
      %v1935 = vrot.slane %v1933, 7
      %v1936 = vshll.u32 %v1594, 16
      %v1938 = vor.u32 %v1935, %v1936
      %v1940 = vshrl.u32 %v1595, 16
      %v1942 = vrot.slane %v1940, 7
      %v1943 = vshll.u32 %v1595, 16
      %v1945 = vor.u32 %v1942, %v1943
      %v1946 = vsel %vm1616, %v1935, %v1945
      %v1948 = vshrl.u32 %v1596, 16
      %v1950 = vrot.slane %v1948, 7
      %v1951 = vshll.u32 %v1596, 16
      %v1953 = vor.u32 %v1950, %v1951
      %v1955 = vshrl.u32 %v1597, 16
      %v1957 = vrot.slane %v1955, 7
      %v1958 = vshll.u32 %v1597, 16
      %v1960 = vor.u32 %v1957, %v1958
      %v1961 = vsel %vm1616, %v1950, %v1960
      %v1963 = vshrl.u32 %v1598, 16
      %v1965 = vrot.slane %v1963, 7
      %v1966 = vshll.u32 %v1598, 16
      %v1968 = vor.u32 %v1965, %v1966
      %v1970 = vshrl.u32 %v1599, 16
      %v1972 = vrot.slane %v1970, 7
      %v1973 = vshll.u32 %v1599, 16
      %v1975 = vor.u32 %v1972, %v1973
      %v1976 = vsel %vm1616, %v1965, %v1975
      %v1978 = vshrl.u32 %v1600, 16
      %v1980 = vrot.slane %v1978, 7
      %v1981 = vshll.u32 %v1600, 16
      %v1983 = vor.u32 %v1980, %v1981
      %v1985 = vshrl.u32 %v1601, 16
      %v1987 = vrot.slane %v1985, 7
      %v1988 = vshll.u32 %v1601, 16
      %v1990 = vor.u32 %v1987, %v1988
      %v1991 = vsel %vm1616, %v1980, %v1990
      %v1993 = vshrl.u32 %v1602, 16
      %v1995 = vrot.slane %v1993, 7
      %v1996 = vshll.u32 %v1602, 16
      %v1998 = vor.u32 %v1995, %v1996
      %v2000 = vshrl.u32 %v1603, 16
      %v2002 = vrot.slane %v2000, 7
      %v2003 = vshll.u32 %v1603, 16
      %v2005 = vor.u32 %v2002, %v2003
      %v2006 = vsel %vm1616, %v1995, %v2005
      %v2008 = vshrl.u32 %v1604, 16
      %v2010 = vrot.slane %v2008, 7
      %v2011 = vshll.u32 %v1604, 16
      %v2013 = vor.u32 %v2010, %v2011
      %v2015 = vshrl.u32 %v1605, 16
      %v2017 = vrot.slane %v2015, 7
      %v2018 = vshll.u32 %v1605, 16
      %v2020 = vor.u32 %v2017, %v2018
      %v2021 = vsel %vm1616, %v2010, %v2020
      %v2023 = vshrl.u32 %v1606, 16
      %v2025 = vrot.slane %v2023, 7
      %v2026 = vshll.u32 %v1606, 16
      %v2028 = vor.u32 %v2025, %v2026
      %v2030 = vshrl.u32 %v1607, 16
      %v2032 = vrot.slane %v2030, 7
      %v2033 = vshll.u32 %v1607, 16
      %v2035 = vor.u32 %v2032, %v2033
      %v2036 = vsel %vm1616, %v2025, %v2035
      %v2038 = vshrl.u32 %v1608, 16
      %v2040 = vrot.slane %v2038, 7
      %v2041 = vshll.u32 %v1608, 16
      %v2043 = vor.u32 %v2040, %v2041
      %v2045 = vshrl.u32 %v1609, 16
      %v2047 = vrot.slane %v2045, 7
      %v2048 = vshll.u32 %v1609, 16
      %v2050 = vor.u32 %v2047, %v2048
      %v2051 = vsel %vm1616, %v2040, %v2050
      %v2053 = vshrl.u32 %v1610, 16
      %v2055 = vrot.slane %v2053, 7
      %v2056 = vshll.u32 %v1610, 16
      %v2058 = vor.u32 %v2055, %v2056
      %v2060 = vshrl.u32 %v1611, 16
      %v2062 = vrot.slane %v2060, 7
      %v2063 = vshll.u32 %v1611, 16
      %v2065 = vor.u32 %v2062, %v2063
      %v2066 = vsel %vm1616, %v2055, %v2065
      %v2068 = vshrl.u32 %v1612, 16
      %v2070 = vrot.slane %v2068, 7
      %v2071 = vshll.u32 %v1612, 16
      %v2073 = vor.u32 %v2070, %v2071
      %v2075 = vshrl.u32 %v1613, 16
      %v2077 = vrot.slane %v2075, 7
      %v2078 = vshll.u32 %v1613, 16
      %v2080 = vor.u32 %v2077, %v2078
      %v2081 = vsel %vm1616, %v2070, %v2080
      %v2083 = vshrl.u32 %v1614, 16
      %v2085 = vrot.slane %v2083, 7
      %v2086 = vshll.u32 %v1614, 16
      %v2088 = vor.u32 %v2085, %v2086
      %v2090 = vshrl.u32 %v1615, 16
      %v2092 = vrot.slane %v2090, 7
      %v2093 = vshll.u32 %v1615, 16
      %v2095 = vor.u32 %v2092, %v2093
      %v2096 = vsel %vm1616, %v2085, %v2095
      %vm2161 = vcmask 1040384
      %vm2162 = vmand %vm2161, %vm1616
      %v2163 = vsel %vm2162, 0, %v1623
      %v2164 = vsel %vm2162, 0, %v1638
      %v2165 = vsel %vm2162, 0, %v1653
      %v2166 = vsel %vm2162, 0, %v1668
      %v2167 = vsel %vm2162, 0, %v1683
      %v2168 = vsel %vm2162, 0, %v1698
      %v2169 = vsel %vm2162, 0, %v1713
      %v2170 = vsel %vm2162, 0, %v1728
      %v2171 = vsel %vm2162, 0, %v1743
      %v2172 = vsel %vm2162, 0, %v1758
      %v2173 = vsel %vm2162, 0, %v1773
      %v2174 = vsel %vm2162, 0, %v1788
      %v2175 = vsel %vm2162, 0, %v1803
      %v2176 = vsel %vm2162, 0, %v1818
      %v2177 = vsel %vm2162, 0, %v1833
      %v2178 = vsel %vm2162, 0, %v1848
      %v2179 = vsel %vm2162, 0, %v1863
      %v2180 = vsel %vm2162, 0, %v1878
      %v2181 = vsel %vm2162, 0, %v1893
      %v2182 = vsel %vm2162, 0, %v1908
      %v2183 = vsel %vm2162, 0, %v1923
      %v2184 = vsel %vm2162, 0, %v1938
      %v2185 = vsel %vm2162, 0, %v1953
      %v2186 = vsel %vm2162, 0, %v1968
      %v2187 = vsel %vm2162, 0, %v1983
      %v2188 = vsel %vm2162, 0, %v1998
      %v2189 = vsel %vm2162, 0, %v2013
      %v2190 = vsel %vm2162, 0, %v2028
      %v2191 = vsel %vm2162, 0, %v2043
      %v2192 = vsel %vm2162, 0, %v2058
      %v2193 = vsel %vm2162, 0, %v2073
      %v2194 = vsel %vm2162, 0, %v2088
      %v2195 = vsel %vm2162, %v1627, 0
      %v2196 = vsel %vm2162, %v1642, 0
      %v2197 = vsel %vm2162, %v1657, 0
      %v2198 = vsel %vm2162, %v1672, 0
      %v2199 = vsel %vm2162, %v1687, 0
      %v2200 = vsel %vm2162, %v1702, 0
      %v2201 = vsel %vm2162, %v1717, 0
      %v2202 = vsel %vm2162, %v1732, 0
      %v2203 = vsel %vm2162, %v1747, 0
      %v2204 = vsel %vm2162, %v1762, 0
      %v2205 = vsel %vm2162, %v1777, 0
      %v2206 = vsel %vm2162, %v1792, 0
      %v2207 = vsel %vm2162, %v1807, 0
      %v2208 = vsel %vm2162, %v1822, 0
      %v2209 = vsel %vm2162, %v1837, 0
      %v2210 = vsel %vm2162, %v1852, 0
      %v2211 = vsel %vm2162, %v1867, 0
      %v2212 = vsel %vm2162, %v1882, 0
      %v2213 = vsel %vm2162, %v1897, 0
      %v2214 = vsel %vm2162, %v1912, 0
      %v2215 = vsel %vm2162, %v1927, 0
      %v2216 = vsel %vm2162, %v1942, 0
      %v2217 = vsel %vm2162, %v1957, 0
      %v2218 = vsel %vm2162, %v1972, 0
      %v2219 = vsel %vm2162, %v1987, 0
      %v2220 = vsel %vm2162, %v2002, 0
      %v2221 = vsel %vm2162, %v2017, 0
      %v2222 = vsel %vm2162, %v2032, 0
      %v2223 = vsel %vm2162, %v2047, 0
      %v2224 = vsel %vm2162, %v2062, 0
      %v2225 = vsel %vm2162, %v2077, 0
      %v2226 = vsel %vm2162, %v2092, 0
      %vm2227 = vsmask.f32 7424
      %v2229 = vshrl.u32 0, 16
      %v2231 = vshll.u32 0, 16
      %v2233 = vrot.slane %v2231, 1
      %v2234 = vor.u32 %v2229, %v2233
      %v2235 = vsel %vm2227, %v2234, %v2233
      %v2237 = vshrl.u32 %v2163, 16
      %v2239 = vshll.u32 %v2163, 16
      %v2241 = vrot.slane %v2239, 1
      %v2242 = vor.u32 %v2237, %v2241
      %v2244 = vshll.u32 %v1631, 16
      %v2246 = vrot.slane %v2244, 1
      %v2247 = vsel %vm2227, %v2242, %v2246
      %v2248 = vshrl.u32 %v1631, 16
      %v2250 = vor.u32 %v2248, %v2246
      %v2252 = vshll.u32 %v2195, 16
      %v2254 = vrot.slane %v2252, 1
      %v2255 = vsel %vm2227, %v2250, %v2254
      %v2257 = vshrl.u32 %v2164, 16
      %v2259 = vshll.u32 %v2164, 16
      %v2261 = vrot.slane %v2259, 1
      %v2262 = vor.u32 %v2257, %v2261
      %v2264 = vshll.u32 %v1646, 16
      %v2266 = vrot.slane %v2264, 1
      %v2267 = vsel %vm2227, %v2262, %v2266
      %v2268 = vshrl.u32 %v1646, 16
      %v2270 = vor.u32 %v2268, %v2266
      %v2272 = vshll.u32 %v2196, 16
      %v2274 = vrot.slane %v2272, 1
      %v2275 = vsel %vm2227, %v2270, %v2274
      %v2277 = vshrl.u32 %v2165, 16
      %v2279 = vshll.u32 %v2165, 16
      %v2281 = vrot.slane %v2279, 1
      %v2282 = vor.u32 %v2277, %v2281
      %v2284 = vshll.u32 %v1661, 16
      %v2286 = vrot.slane %v2284, 1
      %v2287 = vsel %vm2227, %v2282, %v2286
      %v2288 = vshrl.u32 %v1661, 16
      %v2290 = vor.u32 %v2288, %v2286
      %v2292 = vshll.u32 %v2197, 16
      %v2294 = vrot.slane %v2292, 1
      %v2295 = vsel %vm2227, %v2290, %v2294
      %v2297 = vshrl.u32 %v2166, 16
      %v2299 = vshll.u32 %v2166, 16
      %v2301 = vrot.slane %v2299, 1
      %v2302 = vor.u32 %v2297, %v2301
      %v2304 = vshll.u32 %v1676, 16
      %v2306 = vrot.slane %v2304, 1
      %v2307 = vsel %vm2227, %v2302, %v2306
      %v2308 = vshrl.u32 %v1676, 16
      %v2310 = vor.u32 %v2308, %v2306
      %v2312 = vshll.u32 %v2198, 16
      %v2314 = vrot.slane %v2312, 1
      %v2315 = vsel %vm2227, %v2310, %v2314
      %v2317 = vshrl.u32 %v2167, 16
      %v2319 = vshll.u32 %v2167, 16
      %v2321 = vrot.slane %v2319, 1
      %v2322 = vor.u32 %v2317, %v2321
      %v2324 = vshll.u32 %v1691, 16
      %v2326 = vrot.slane %v2324, 1
      %v2327 = vsel %vm2227, %v2322, %v2326
      %v2328 = vshrl.u32 %v1691, 16
      %v2330 = vor.u32 %v2328, %v2326
      %v2332 = vshll.u32 %v2199, 16
      %v2334 = vrot.slane %v2332, 1
      %v2335 = vsel %vm2227, %v2330, %v2334
      %v2337 = vshrl.u32 %v2168, 16
      %v2339 = vshll.u32 %v2168, 16
      %v2341 = vrot.slane %v2339, 1
      %v2342 = vor.u32 %v2337, %v2341
      %v2344 = vshll.u32 %v1706, 16
      %v2346 = vrot.slane %v2344, 1
      %v2347 = vsel %vm2227, %v2342, %v2346
      %v2348 = vshrl.u32 %v1706, 16
      %v2350 = vor.u32 %v2348, %v2346
      %v2352 = vshll.u32 %v2200, 16
      %v2354 = vrot.slane %v2352, 1
      %v2355 = vsel %vm2227, %v2350, %v2354
      %v2357 = vshrl.u32 %v2169, 16
      %v2359 = vshll.u32 %v2169, 16
      %v2361 = vrot.slane %v2359, 1
      %v2362 = vor.u32 %v2357, %v2361
      %v2364 = vshll.u32 %v1721, 16
      %v2366 = vrot.slane %v2364, 1
      %v2367 = vsel %vm2227, %v2362, %v2366
      %v2368 = vshrl.u32 %v1721, 16
      %v2370 = vor.u32 %v2368, %v2366
      %v2372 = vshll.u32 %v2201, 16
      %v2374 = vrot.slane %v2372, 1
      %v2375 = vsel %vm2227, %v2370, %v2374
      %v2377 = vshrl.u32 %v2170, 16
      %v2379 = vshll.u32 %v2170, 16
      %v2381 = vrot.slane %v2379, 1
      %v2382 = vor.u32 %v2377, %v2381
      %v2384 = vshll.u32 %v1736, 16
      %v2386 = vrot.slane %v2384, 1
      %v2387 = vsel %vm2227, %v2382, %v2386
      %v2388 = vshrl.u32 %v1736, 16
      %v2390 = vor.u32 %v2388, %v2386
      %v2392 = vshll.u32 %v2202, 16
      %v2394 = vrot.slane %v2392, 1
      %v2395 = vsel %vm2227, %v2390, %v2394
      %v2397 = vshrl.u32 %v2171, 16
      %v2399 = vshll.u32 %v2171, 16
      %v2401 = vrot.slane %v2399, 1
      %v2402 = vor.u32 %v2397, %v2401
      %v2404 = vshll.u32 %v1751, 16
      %v2406 = vrot.slane %v2404, 1
      %v2407 = vsel %vm2227, %v2402, %v2406
      %v2408 = vshrl.u32 %v1751, 16
      %v2410 = vor.u32 %v2408, %v2406
      %v2412 = vshll.u32 %v2203, 16
      %v2414 = vrot.slane %v2412, 1
      %v2415 = vsel %vm2227, %v2410, %v2414
      %v2417 = vshrl.u32 %v2172, 16
      %v2419 = vshll.u32 %v2172, 16
      %v2421 = vrot.slane %v2419, 1
      %v2422 = vor.u32 %v2417, %v2421
      %v2424 = vshll.u32 %v1766, 16
      %v2426 = vrot.slane %v2424, 1
      %v2427 = vsel %vm2227, %v2422, %v2426
      %v2428 = vshrl.u32 %v1766, 16
      %v2430 = vor.u32 %v2428, %v2426
      %v2432 = vshll.u32 %v2204, 16
      %v2434 = vrot.slane %v2432, 1
      %v2435 = vsel %vm2227, %v2430, %v2434
      %v2437 = vshrl.u32 %v2173, 16
      %v2439 = vshll.u32 %v2173, 16
      %v2441 = vrot.slane %v2439, 1
      %v2442 = vor.u32 %v2437, %v2441
      %v2444 = vshll.u32 %v1781, 16
      %v2446 = vrot.slane %v2444, 1
      %v2447 = vsel %vm2227, %v2442, %v2446
      %v2448 = vshrl.u32 %v1781, 16
      %v2450 = vor.u32 %v2448, %v2446
      %v2452 = vshll.u32 %v2205, 16
      %v2454 = vrot.slane %v2452, 1
      %v2455 = vsel %vm2227, %v2450, %v2454
      %v2457 = vshrl.u32 %v2174, 16
      %v2459 = vshll.u32 %v2174, 16
      %v2461 = vrot.slane %v2459, 1
      %v2462 = vor.u32 %v2457, %v2461
      %v2464 = vshll.u32 %v1796, 16
      %v2466 = vrot.slane %v2464, 1
      %v2467 = vsel %vm2227, %v2462, %v2466
      %v2468 = vshrl.u32 %v1796, 16
      %v2470 = vor.u32 %v2468, %v2466
      %v2472 = vshll.u32 %v2206, 16
      %v2474 = vrot.slane %v2472, 1
      %v2475 = vsel %vm2227, %v2470, %v2474
      %v2477 = vshrl.u32 %v2175, 16
      %v2479 = vshll.u32 %v2175, 16
      %v2481 = vrot.slane %v2479, 1
      %v2482 = vor.u32 %v2477, %v2481
      %v2484 = vshll.u32 %v1811, 16
      %v2486 = vrot.slane %v2484, 1
      %v2487 = vsel %vm2227, %v2482, %v2486
      %v2488 = vshrl.u32 %v1811, 16
      %v2490 = vor.u32 %v2488, %v2486
      %v2492 = vshll.u32 %v2207, 16
      %v2494 = vrot.slane %v2492, 1
      %v2495 = vsel %vm2227, %v2490, %v2494
      %v2497 = vshrl.u32 %v2176, 16
      %v2499 = vshll.u32 %v2176, 16
      %v2501 = vrot.slane %v2499, 1
      %v2502 = vor.u32 %v2497, %v2501
      %v2504 = vshll.u32 %v1826, 16
      %v2506 = vrot.slane %v2504, 1
      %v2507 = vsel %vm2227, %v2502, %v2506
      %v2508 = vshrl.u32 %v1826, 16
      %v2510 = vor.u32 %v2508, %v2506
      %v2512 = vshll.u32 %v2208, 16
      %v2514 = vrot.slane %v2512, 1
      %v2515 = vsel %vm2227, %v2510, %v2514
      %v2517 = vshrl.u32 %v2177, 16
      %v2519 = vshll.u32 %v2177, 16
      %v2521 = vrot.slane %v2519, 1
      %v2522 = vor.u32 %v2517, %v2521
      %v2524 = vshll.u32 %v1841, 16
      %v2526 = vrot.slane %v2524, 1
      %v2527 = vsel %vm2227, %v2522, %v2526
      %v2528 = vshrl.u32 %v1841, 16
      %v2530 = vor.u32 %v2528, %v2526
      %v2532 = vshll.u32 %v2209, 16
      %v2534 = vrot.slane %v2532, 1
      %v2535 = vsel %vm2227, %v2530, %v2534
      %v2537 = vshrl.u32 %v2178, 16
      %v2539 = vshll.u32 %v2178, 16
      %v2541 = vrot.slane %v2539, 1
      %v2542 = vor.u32 %v2537, %v2541
      %v2544 = vshll.u32 %v1856, 16
      %v2546 = vrot.slane %v2544, 1
      %v2547 = vsel %vm2227, %v2542, %v2546
      %v2548 = vshrl.u32 %v1856, 16
      %v2550 = vor.u32 %v2548, %v2546
      %v2552 = vshll.u32 %v2210, 16
      %v2554 = vrot.slane %v2552, 1
      %v2555 = vsel %vm2227, %v2550, %v2554
      %v2557 = vshrl.u32 %v2179, 16
      %v2559 = vshll.u32 %v2179, 16
      %v2561 = vrot.slane %v2559, 1
      %v2562 = vor.u32 %v2557, %v2561
      %v2564 = vshll.u32 %v1871, 16
      %v2566 = vrot.slane %v2564, 1
      %v2567 = vsel %vm2227, %v2562, %v2566
      %v2568 = vshrl.u32 %v1871, 16
      %v2570 = vor.u32 %v2568, %v2566
      %v2572 = vshll.u32 %v2211, 16
      %v2574 = vrot.slane %v2572, 1
      %v2575 = vsel %vm2227, %v2570, %v2574
      %v2577 = vshrl.u32 %v2180, 16
      %v2579 = vshll.u32 %v2180, 16
      %v2581 = vrot.slane %v2579, 1
      %v2582 = vor.u32 %v2577, %v2581
      %v2584 = vshll.u32 %v1886, 16
      %v2586 = vrot.slane %v2584, 1
      %v2587 = vsel %vm2227, %v2582, %v2586
      %v2588 = vshrl.u32 %v1886, 16
      %v2590 = vor.u32 %v2588, %v2586
      %v2592 = vshll.u32 %v2212, 16
      %v2594 = vrot.slane %v2592, 1
      %v2595 = vsel %vm2227, %v2590, %v2594
      %v2597 = vshrl.u32 %v2181, 16
      %v2599 = vshll.u32 %v2181, 16
      %v2601 = vrot.slane %v2599, 1
      %v2602 = vor.u32 %v2597, %v2601
      %v2604 = vshll.u32 %v1901, 16
      %v2606 = vrot.slane %v2604, 1
      %v2607 = vsel %vm2227, %v2602, %v2606
      %v2608 = vshrl.u32 %v1901, 16
      %v2610 = vor.u32 %v2608, %v2606
      %v2612 = vshll.u32 %v2213, 16
      %v2614 = vrot.slane %v2612, 1
      %v2615 = vsel %vm2227, %v2610, %v2614
      %v2617 = vshrl.u32 %v2182, 16
      %v2619 = vshll.u32 %v2182, 16
      %v2621 = vrot.slane %v2619, 1
      %v2622 = vor.u32 %v2617, %v2621
      %v2624 = vshll.u32 %v1916, 16
      %v2626 = vrot.slane %v2624, 1
      %v2627 = vsel %vm2227, %v2622, %v2626
      %v2628 = vshrl.u32 %v1916, 16
      %v2630 = vor.u32 %v2628, %v2626
      %v2632 = vshll.u32 %v2214, 16
      %v2634 = vrot.slane %v2632, 1
      %v2635 = vsel %vm2227, %v2630, %v2634
      %v2637 = vshrl.u32 %v2183, 16
      %v2639 = vshll.u32 %v2183, 16
      %v2641 = vrot.slane %v2639, 1
      %v2642 = vor.u32 %v2637, %v2641
      %v2644 = vshll.u32 %v1931, 16
      %v2646 = vrot.slane %v2644, 1
      %v2647 = vsel %vm2227, %v2642, %v2646
      %v2648 = vshrl.u32 %v1931, 16
      %v2650 = vor.u32 %v2648, %v2646
      %v2652 = vshll.u32 %v2215, 16
      %v2654 = vrot.slane %v2652, 1
      %v2655 = vsel %vm2227, %v2650, %v2654
      %v2657 = vshrl.u32 %v2184, 16
      %v2659 = vshll.u32 %v2184, 16
      %v2661 = vrot.slane %v2659, 1
      %v2662 = vor.u32 %v2657, %v2661
      %v2664 = vshll.u32 %v1946, 16
      %v2666 = vrot.slane %v2664, 1
      %v2667 = vsel %vm2227, %v2662, %v2666
      %v2668 = vshrl.u32 %v1946, 16
      %v2670 = vor.u32 %v2668, %v2666
      %v2672 = vshll.u32 %v2216, 16
      %v2674 = vrot.slane %v2672, 1
      %v2675 = vsel %vm2227, %v2670, %v2674
      %v2677 = vshrl.u32 %v2185, 16
      %v2679 = vshll.u32 %v2185, 16
      %v2681 = vrot.slane %v2679, 1
      %v2682 = vor.u32 %v2677, %v2681
      %v2684 = vshll.u32 %v1961, 16
      %v2686 = vrot.slane %v2684, 1
      %v2687 = vsel %vm2227, %v2682, %v2686
      %v2688 = vshrl.u32 %v1961, 16
      %v2690 = vor.u32 %v2688, %v2686
      %v2692 = vshll.u32 %v2217, 16
      %v2694 = vrot.slane %v2692, 1
      %v2695 = vsel %vm2227, %v2690, %v2694
      %v2697 = vshrl.u32 %v2186, 16
      %v2699 = vshll.u32 %v2186, 16
      %v2701 = vrot.slane %v2699, 1
      %v2702 = vor.u32 %v2697, %v2701
      %v2704 = vshll.u32 %v1976, 16
      %v2706 = vrot.slane %v2704, 1
      %v2707 = vsel %vm2227, %v2702, %v2706
      %v2708 = vshrl.u32 %v1976, 16
      %v2710 = vor.u32 %v2708, %v2706
      %v2712 = vshll.u32 %v2218, 16
      %v2714 = vrot.slane %v2712, 1
      %v2715 = vsel %vm2227, %v2710, %v2714
      %v2717 = vshrl.u32 %v2187, 16
      %v2719 = vshll.u32 %v2187, 16
      %v2721 = vrot.slane %v2719, 1
      %v2722 = vor.u32 %v2717, %v2721
      %v2724 = vshll.u32 %v1991, 16
      %v2726 = vrot.slane %v2724, 1
      %v2727 = vsel %vm2227, %v2722, %v2726
      %v2728 = vshrl.u32 %v1991, 16
      %v2730 = vor.u32 %v2728, %v2726
      %v2732 = vshll.u32 %v2219, 16
      %v2734 = vrot.slane %v2732, 1
      %v2735 = vsel %vm2227, %v2730, %v2734
      %v2737 = vshrl.u32 %v2188, 16
      %v2739 = vshll.u32 %v2188, 16
      %v2741 = vrot.slane %v2739, 1
      %v2742 = vor.u32 %v2737, %v2741
      %v2744 = vshll.u32 %v2006, 16
      %v2746 = vrot.slane %v2744, 1
      %v2747 = vsel %vm2227, %v2742, %v2746
      %v2748 = vshrl.u32 %v2006, 16
      %v2750 = vor.u32 %v2748, %v2746
      %v2752 = vshll.u32 %v2220, 16
      %v2754 = vrot.slane %v2752, 1
      %v2755 = vsel %vm2227, %v2750, %v2754
      %v2757 = vshrl.u32 %v2189, 16
      %v2759 = vshll.u32 %v2189, 16
      %v2761 = vrot.slane %v2759, 1
      %v2762 = vor.u32 %v2757, %v2761
      %v2764 = vshll.u32 %v2021, 16
      %v2766 = vrot.slane %v2764, 1
      %v2767 = vsel %vm2227, %v2762, %v2766
      %v2768 = vshrl.u32 %v2021, 16
      %v2770 = vor.u32 %v2768, %v2766
      %v2772 = vshll.u32 %v2221, 16
      %v2774 = vrot.slane %v2772, 1
      %v2775 = vsel %vm2227, %v2770, %v2774
      %v2777 = vshrl.u32 %v2190, 16
      %v2779 = vshll.u32 %v2190, 16
      %v2781 = vrot.slane %v2779, 1
      %v2782 = vor.u32 %v2777, %v2781
      %v2784 = vshll.u32 %v2036, 16
      %v2786 = vrot.slane %v2784, 1
      %v2787 = vsel %vm2227, %v2782, %v2786
      %v2788 = vshrl.u32 %v2036, 16
      %v2790 = vor.u32 %v2788, %v2786
      %v2792 = vshll.u32 %v2222, 16
      %v2794 = vrot.slane %v2792, 1
      %v2795 = vsel %vm2227, %v2790, %v2794
      %v2797 = vshrl.u32 %v2191, 16
      %v2799 = vshll.u32 %v2191, 16
      %v2801 = vrot.slane %v2799, 1
      %v2802 = vor.u32 %v2797, %v2801
      %v2804 = vshll.u32 %v2051, 16
      %v2806 = vrot.slane %v2804, 1
      %v2807 = vsel %vm2227, %v2802, %v2806
      %v2808 = vshrl.u32 %v2051, 16
      %v2810 = vor.u32 %v2808, %v2806
      %v2812 = vshll.u32 %v2223, 16
      %v2814 = vrot.slane %v2812, 1
      %v2815 = vsel %vm2227, %v2810, %v2814
      %v2817 = vshrl.u32 %v2192, 16
      %v2819 = vshll.u32 %v2192, 16
      %v2821 = vrot.slane %v2819, 1
      %v2822 = vor.u32 %v2817, %v2821
      %v2824 = vshll.u32 %v2066, 16
      %v2826 = vrot.slane %v2824, 1
      %v2827 = vsel %vm2227, %v2822, %v2826
      %v2828 = vshrl.u32 %v2066, 16
      %v2830 = vor.u32 %v2828, %v2826
      %v2832 = vshll.u32 %v2224, 16
      %v2834 = vrot.slane %v2832, 1
      %v2835 = vsel %vm2227, %v2830, %v2834
      %v2837 = vshrl.u32 %v2193, 16
      %v2839 = vshll.u32 %v2193, 16
      %v2841 = vrot.slane %v2839, 1
      %v2842 = vor.u32 %v2837, %v2841
      %v2844 = vshll.u32 %v2081, 16
      %v2846 = vrot.slane %v2844, 1
      %v2847 = vsel %vm2227, %v2842, %v2846
      %v2848 = vshrl.u32 %v2081, 16
      %v2850 = vor.u32 %v2848, %v2846
      %v2852 = vshll.u32 %v2225, 16
      %v2854 = vrot.slane %v2852, 1
      %v2855 = vsel %vm2227, %v2850, %v2854
      %2856 = vrot.lane.b32.xlu0 %v2235, 4
      %v2857 = vpop.permute.xlu0 %2856
      %2858 = vrot.lane.b32.xlu0 %v2247, 4
      %v2859 = vpop.permute.xlu0 %2858
      %2860 = vrot.lane.b32.xlu0 %v2255, 4
      %v2861 = vpop.permute.xlu0 %2860
      %2862 = vrot.lane.b32.xlu0 %v2267, 4
      %v2863 = vpop.permute.xlu0 %2862
      %2864 = vrot.lane.b32.xlu0 %v2275, 4
      %v2865 = vpop.permute.xlu0 %2864
      %2866 = vrot.lane.b32.xlu0 %v2287, 4
      %v2867 = vpop.permute.xlu0 %2866
      %2868 = vrot.lane.b32.xlu0 %v2295, 4
      %v2869 = vpop.permute.xlu0 %2868
      %2870 = vrot.lane.b32.xlu0 %v2307, 4
      %v2871 = vpop.permute.xlu0 %2870
      %2872 = vrot.lane.b32.xlu0 %v2315, 4
      %v2873 = vpop.permute.xlu0 %2872
      %2874 = vrot.lane.b32.xlu0 %v2327, 4
      %v2875 = vpop.permute.xlu0 %2874
      %2876 = vrot.lane.b32.xlu0 %v2335, 4
      %v2877 = vpop.permute.xlu0 %2876
      %2878 = vrot.lane.b32.xlu0 %v2347, 4
      %v2879 = vpop.permute.xlu0 %2878
      %2880 = vrot.lane.b32.xlu0 %v2355, 4
      %v2881 = vpop.permute.xlu0 %2880
      %2882 = vrot.lane.b32.xlu0 %v2367, 4
      %v2883 = vpop.permute.xlu0 %2882
      %2884 = vrot.lane.b32.xlu0 %v2375, 4
      %v2885 = vpop.permute.xlu0 %2884
      %2886 = vrot.lane.b32.xlu0 %v2387, 4
      %v2887 = vpop.permute.xlu0 %2886
      %2888 = vrot.lane.b32.xlu0 %v2395, 4
      %v2889 = vpop.permute.xlu0 %2888
      %2890 = vrot.lane.b32.xlu0 %v2407, 4
      %v2891 = vpop.permute.xlu0 %2890
      %2892 = vrot.lane.b32.xlu0 %v2415, 4
      %v2893 = vpop.permute.xlu0 %2892
      %2894 = vrot.lane.b32.xlu0 %v2427, 4
      %v2895 = vpop.permute.xlu0 %2894
      %2896 = vrot.lane.b32.xlu0 %v2435, 4
      %v2897 = vpop.permute.xlu0 %2896
      %2898 = vrot.lane.b32.xlu0 %v2447, 4
      %v2899 = vpop.permute.xlu0 %2898
      %2900 = vrot.lane.b32.xlu0 %v2455, 4
      %v2901 = vpop.permute.xlu0 %2900
      %2902 = vrot.lane.b32.xlu0 %v2467, 4
      %v2903 = vpop.permute.xlu0 %2902
      %2904 = vrot.lane.b32.xlu0 %v2475, 4
      %v2905 = vpop.permute.xlu0 %2904
      %2906 = vrot.lane.b32.xlu0 %v2487, 4
      %v2907 = vpop.permute.xlu0 %2906
      %2908 = vrot.lane.b32.xlu0 %v2495, 4
      %v2909 = vpop.permute.xlu0 %2908
      %2910 = vrot.lane.b32.xlu0 %v2507, 4
      %v2911 = vpop.permute.xlu0 %2910
      %2912 = vrot.lane.b32.xlu0 %v2515, 4
      %v2913 = vpop.permute.xlu0 %2912
      %2914 = vrot.lane.b32.xlu0 %v2527, 4
      %v2915 = vpop.permute.xlu0 %2914
      %2916 = vrot.lane.b32.xlu0 %v2535, 4
      %v2917 = vpop.permute.xlu0 %2916
      %2918 = vrot.lane.b32.xlu0 %v2547, 4
      %v2919 = vpop.permute.xlu0 %2918
      %2920 = vrot.lane.b32.xlu0 %v2555, 4
      %v2921 = vpop.permute.xlu0 %2920
      %2922 = vrot.lane.b32.xlu0 %v2567, 4
      %v2923 = vpop.permute.xlu0 %2922
      %2924 = vrot.lane.b32.xlu0 %v2575, 4
      %v2925 = vpop.permute.xlu0 %2924
      %2926 = vrot.lane.b32.xlu0 %v2587, 4
      %v2927 = vpop.permute.xlu0 %2926
      %2928 = vrot.lane.b32.xlu0 %v2595, 4
      %v2929 = vpop.permute.xlu0 %2928
      %2930 = vrot.lane.b32.xlu0 %v2607, 4
      %v2931 = vpop.permute.xlu0 %2930
      %2932 = vrot.lane.b32.xlu0 %v2615, 4
      %v2933 = vpop.permute.xlu0 %2932
      %2934 = vrot.lane.b32.xlu0 %v2627, 4
      %v2935 = vpop.permute.xlu0 %2934
      %2936 = vrot.lane.b32.xlu0 %v2635, 4
      %v2937 = vpop.permute.xlu0 %2936
      %2938 = vrot.lane.b32.xlu0 %v2647, 4
      %v2939 = vpop.permute.xlu0 %2938
      %2940 = vrot.lane.b32.xlu0 %v2655, 4
      %v2941 = vpop.permute.xlu0 %2940
      %2942 = vrot.lane.b32.xlu0 %v2667, 4
      %v2943 = vpop.permute.xlu0 %2942
      %2944 = vrot.lane.b32.xlu0 %v2675, 4
      %v2945 = vpop.permute.xlu0 %2944
      %2946 = vrot.lane.b32.xlu0 %v2687, 4
      %v2947 = vpop.permute.xlu0 %2946
      %2948 = vrot.lane.b32.xlu0 %v2695, 4
      %v2949 = vpop.permute.xlu0 %2948
      %2950 = vrot.lane.b32.xlu0 %v2707, 4
      %v2951 = vpop.permute.xlu0 %2950
      %2952 = vrot.lane.b32.xlu0 %v2715, 4
      %v2953 = vpop.permute.xlu0 %2952
      %2954 = vrot.lane.b32.xlu0 %v2727, 4
      %v2955 = vpop.permute.xlu0 %2954
      %2956 = vrot.lane.b32.xlu0 %v2735, 4
      %v2957 = vpop.permute.xlu0 %2956
      %2958 = vrot.lane.b32.xlu0 %v2747, 4
      %v2959 = vpop.permute.xlu0 %2958
      %2960 = vrot.lane.b32.xlu0 %v2755, 4
      %v2961 = vpop.permute.xlu0 %2960
      %2962 = vrot.lane.b32.xlu0 %v2767, 4
      %v2963 = vpop.permute.xlu0 %2962
      %2964 = vrot.lane.b32.xlu0 %v2775, 4
      %v2965 = vpop.permute.xlu0 %2964
      %2966 = vrot.lane.b32.xlu0 %v2787, 4
      %v2967 = vpop.permute.xlu0 %2966
      %2968 = vrot.lane.b32.xlu0 %v2795, 4
      %v2969 = vpop.permute.xlu0 %2968
      %2970 = vrot.lane.b32.xlu0 %v2807, 4
      %v2971 = vpop.permute.xlu0 %2970
      %2972 = vrot.lane.b32.xlu0 %v2815, 4
      %v2973 = vpop.permute.xlu0 %2972
      %2974 = vrot.lane.b32.xlu0 %v2827, 4
      %v2975 = vpop.permute.xlu0 %2974
      %2976 = vrot.lane.b32.xlu0 %v2835, 4
      %v2977 = vpop.permute.xlu0 %2976
      %2978 = vrot.lane.b32.xlu0 %v2847, 4
      %v2979 = vpop.permute.xlu0 %2978
      %2980 = vrot.lane.b32.xlu0 %v2855, 4
      %v2981 = vpop.permute.xlu0 %2980
      %vm3045 = vcmask 1046528
      %v3046 = vrot.slane 0, 1
      %v3047 = vsel %vm3045, %v3046, %v3046
      %v3048 = vrot.slane %v2163, 1
      %v3049 = vrot.slane %v1631, 1
      %v3050 = vsel %vm3045, %v3048, %v3049
      %v3051 = vrot.slane %v2195, 1
      %v3052 = vsel %vm3045, %v3049, %v3051
      %v3053 = vrot.slane %v2164, 1
      %v3054 = vrot.slane %v1646, 1
      %v3055 = vsel %vm3045, %v3053, %v3054
      %v3056 = vrot.slane %v2196, 1
      %v3057 = vsel %vm3045, %v3054, %v3056
      %v3058 = vrot.slane %v2165, 1
      %v3059 = vrot.slane %v1661, 1
      %v3060 = vsel %vm3045, %v3058, %v3059
      %v3061 = vrot.slane %v2197, 1
      %v3062 = vsel %vm3045, %v3059, %v3061
      %v3063 = vrot.slane %v2166, 1
      %v3064 = vrot.slane %v1676, 1
      %v3065 = vsel %vm3045, %v3063, %v3064
      %v3066 = vrot.slane %v2198, 1
      %v3067 = vsel %vm3045, %v3064, %v3066
      %v3068 = vrot.slane %v2167, 1
      %v3069 = vrot.slane %v1691, 1
      %v3070 = vsel %vm3045, %v3068, %v3069
      %v3071 = vrot.slane %v2199, 1
      %v3072 = vsel %vm3045, %v3069, %v3071
      %v3073 = vrot.slane %v2168, 1
      %v3074 = vrot.slane %v1706, 1
      %v3075 = vsel %vm3045, %v3073, %v3074
      %v3076 = vrot.slane %v2200, 1
      %v3077 = vsel %vm3045, %v3074, %v3076
      %v3078 = vrot.slane %v2169, 1
      %v3079 = vrot.slane %v1721, 1
      %v3080 = vsel %vm3045, %v3078, %v3079
      %v3081 = vrot.slane %v2201, 1
      %v3082 = vsel %vm3045, %v3079, %v3081
      %v3083 = vrot.slane %v2170, 1
      %v3084 = vrot.slane %v1736, 1
      %v3085 = vsel %vm3045, %v3083, %v3084
      %v3086 = vrot.slane %v2202, 1
      %v3087 = vsel %vm3045, %v3084, %v3086
      %v3088 = vrot.slane %v2171, 1
      %v3089 = vrot.slane %v1751, 1
      %v3090 = vsel %vm3045, %v3088, %v3089
      %v3091 = vrot.slane %v2203, 1
      %v3092 = vsel %vm3045, %v3089, %v3091
      %v3093 = vrot.slane %v2172, 1
      %v3094 = vrot.slane %v1766, 1
      %v3095 = vsel %vm3045, %v3093, %v3094
      %v3096 = vrot.slane %v2204, 1
      %v3097 = vsel %vm3045, %v3094, %v3096
      %v3098 = vrot.slane %v2173, 1
      %v3099 = vrot.slane %v1781, 1
      %v3100 = vsel %vm3045, %v3098, %v3099
      %v3101 = vrot.slane %v2205, 1
      %v3102 = vsel %vm3045, %v3099, %v3101
      %v3103 = vrot.slane %v2174, 1
      %v3104 = vrot.slane %v1796, 1
      %v3105 = vsel %vm3045, %v3103, %v3104
      %v3106 = vrot.slane %v2206, 1
      %v3107 = vsel %vm3045, %v3104, %v3106
      %v3108 = vrot.slane %v2175, 1
      %v3109 = vrot.slane %v1811, 1
      %v3110 = vsel %vm3045, %v3108, %v3109
      %v3111 = vrot.slane %v2207, 1
      %v3112 = vsel %vm3045, %v3109, %v3111
      %v3113 = vrot.slane %v2176, 1
      %v3114 = vrot.slane %v1826, 1
      %v3115 = vsel %vm3045, %v3113, %v3114
      %v3116 = vrot.slane %v2208, 1
      %v3117 = vsel %vm3045, %v3114, %v3116
      %v3118 = vrot.slane %v2177, 1
      %v3119 = vrot.slane %v1841, 1
      %v3120 = vsel %vm3045, %v3118, %v3119
      %v3121 = vrot.slane %v2209, 1
      %v3122 = vsel %vm3045, %v3119, %v3121
      %v3123 = vrot.slane %v2178, 1
      %v3124 = vrot.slane %v1856, 1
      %v3125 = vsel %vm3045, %v3123, %v3124
      %v3126 = vrot.slane %v2210, 1
      %v3127 = vsel %vm3045, %v3124, %v3126
      %v3128 = vrot.slane %v2179, 1
      %v3129 = vrot.slane %v1871, 1
      %v3130 = vsel %vm3045, %v3128, %v3129
      %v3131 = vrot.slane %v2211, 1
      %v3132 = vsel %vm3045, %v3129, %v3131
      %v3133 = vrot.slane %v2180, 1
      %v3134 = vrot.slane %v1886, 1
      %v3135 = vsel %vm3045, %v3133, %v3134
      %v3136 = vrot.slane %v2212, 1
      %v3137 = vsel %vm3045, %v3134, %v3136
      %v3138 = vrot.slane %v2181, 1
      %v3139 = vrot.slane %v1901, 1
      %v3140 = vsel %vm3045, %v3138, %v3139
      %v3141 = vrot.slane %v2213, 1
      %v3142 = vsel %vm3045, %v3139, %v3141
      %v3143 = vrot.slane %v2182, 1
      %v3144 = vrot.slane %v1916, 1
      %v3145 = vsel %vm3045, %v3143, %v3144
      %v3146 = vrot.slane %v2214, 1
      %v3147 = vsel %vm3045, %v3144, %v3146
      %v3148 = vrot.slane %v2183, 1
      %v3149 = vrot.slane %v1931, 1
      %v3150 = vsel %vm3045, %v3148, %v3149
      %v3151 = vrot.slane %v2215, 1
      %v3152 = vsel %vm3045, %v3149, %v3151
      %v3153 = vrot.slane %v2184, 1
      %v3154 = vrot.slane %v1946, 1
      %v3155 = vsel %vm3045, %v3153, %v3154
      %v3156 = vrot.slane %v2216, 1
      %v3157 = vsel %vm3045, %v3154, %v3156
      %v3158 = vrot.slane %v2185, 1
      %v3159 = vrot.slane %v1961, 1
      %v3160 = vsel %vm3045, %v3158, %v3159
      %v3161 = vrot.slane %v2217, 1
      %v3162 = vsel %vm3045, %v3159, %v3161
      %v3163 = vrot.slane %v2186, 1
      %v3164 = vrot.slane %v1976, 1
      %v3165 = vsel %vm3045, %v3163, %v3164
      %v3166 = vrot.slane %v2218, 1
      %v3167 = vsel %vm3045, %v3164, %v3166
      %v3168 = vrot.slane %v2187, 1
      %v3169 = vrot.slane %v1991, 1
      %v3170 = vsel %vm3045, %v3168, %v3169
      %v3171 = vrot.slane %v2219, 1
      %v3172 = vsel %vm3045, %v3169, %v3171
      %v3173 = vrot.slane %v2188, 1
      %v3174 = vrot.slane %v2006, 1
      %v3175 = vsel %vm3045, %v3173, %v3174
      %v3176 = vrot.slane %v2220, 1
      %v3177 = vsel %vm3045, %v3174, %v3176
      %v3178 = vrot.slane %v2189, 1
      %v3179 = vrot.slane %v2021, 1
      %v3180 = vsel %vm3045, %v3178, %v3179
      %v3181 = vrot.slane %v2221, 1
      %v3182 = vsel %vm3045, %v3179, %v3181
      %v3183 = vrot.slane %v2190, 1
      %v3184 = vrot.slane %v2036, 1
      %v3185 = vsel %vm3045, %v3183, %v3184
      %v3186 = vrot.slane %v2222, 1
      %v3187 = vsel %vm3045, %v3184, %v3186
      %v3188 = vrot.slane %v2191, 1
      %v3189 = vrot.slane %v2051, 1
      %v3190 = vsel %vm3045, %v3188, %v3189
      %v3191 = vrot.slane %v2223, 1
      %v3192 = vsel %vm3045, %v3189, %v3191
      %v3193 = vrot.slane %v2192, 1
      %v3194 = vrot.slane %v2066, 1
      %v3195 = vsel %vm3045, %v3193, %v3194
      %v3196 = vrot.slane %v2224, 1
      %v3197 = vsel %vm3045, %v3194, %v3196
      %v3198 = vrot.slane %v2193, 1
      %v3199 = vrot.slane %v2081, 1
      %v3200 = vsel %vm3045, %v3198, %v3199
      %v3201 = vrot.slane %v2225, 1
      %v3202 = vsel %vm3045, %v3199, %v3201
      %3203 = vrot.lane.b32.xlu0 %v3047, 8
      %v3204 = vpop.permute.xlu0 %3203
      %3205 = vrot.lane.b32.xlu0 %v3050, 8
      %v3206 = vpop.permute.xlu0 %3205
      %3207 = vrot.lane.b32.xlu0 %v3052, 8
      %v3208 = vpop.permute.xlu0 %3207
      %3209 = vrot.lane.b32.xlu0 %v3055, 8
      %v3210 = vpop.permute.xlu0 %3209
      %3211 = vrot.lane.b32.xlu0 %v3057, 8
      %v3212 = vpop.permute.xlu0 %3211
      %3213 = vrot.lane.b32.xlu0 %v3060, 8
      %v3214 = vpop.permute.xlu0 %3213
      %3215 = vrot.lane.b32.xlu0 %v3062, 8
      %v3216 = vpop.permute.xlu0 %3215
      %3217 = vrot.lane.b32.xlu0 %v3065, 8
      %v3218 = vpop.permute.xlu0 %3217
      %3219 = vrot.lane.b32.xlu0 %v3067, 8
      %v3220 = vpop.permute.xlu0 %3219
      %3221 = vrot.lane.b32.xlu0 %v3070, 8
      %v3222 = vpop.permute.xlu0 %3221
      %3223 = vrot.lane.b32.xlu0 %v3072, 8
      %v3224 = vpop.permute.xlu0 %3223
      %3225 = vrot.lane.b32.xlu0 %v3075, 8
      %v3226 = vpop.permute.xlu0 %3225
      %3227 = vrot.lane.b32.xlu0 %v3077, 8
      %v3228 = vpop.permute.xlu0 %3227
      %3229 = vrot.lane.b32.xlu0 %v3080, 8
      %v3230 = vpop.permute.xlu0 %3229
      %3231 = vrot.lane.b32.xlu0 %v3082, 8
      %v3232 = vpop.permute.xlu0 %3231
      %3233 = vrot.lane.b32.xlu0 %v3085, 8
      %v3234 = vpop.permute.xlu0 %3233
      %3235 = vrot.lane.b32.xlu0 %v3087, 8
      %v3236 = vpop.permute.xlu0 %3235
      %3237 = vrot.lane.b32.xlu0 %v3090, 8
      %v3238 = vpop.permute.xlu0 %3237
      %3239 = vrot.lane.b32.xlu0 %v3092, 8
      %v3240 = vpop.permute.xlu0 %3239
      %3241 = vrot.lane.b32.xlu0 %v3095, 8
      %v3242 = vpop.permute.xlu0 %3241
      %3243 = vrot.lane.b32.xlu0 %v3097, 8
      %v3244 = vpop.permute.xlu0 %3243
      %3245 = vrot.lane.b32.xlu0 %v3100, 8
      %v3246 = vpop.permute.xlu0 %3245
      %3247 = vrot.lane.b32.xlu0 %v3102, 8
      %v3248 = vpop.permute.xlu0 %3247
      %3249 = vrot.lane.b32.xlu0 %v3105, 8
      %v3250 = vpop.permute.xlu0 %3249
      %3251 = vrot.lane.b32.xlu0 %v3107, 8
      %v3252 = vpop.permute.xlu0 %3251
      %3253 = vrot.lane.b32.xlu0 %v3110, 8
      %v3254 = vpop.permute.xlu0 %3253
      %3255 = vrot.lane.b32.xlu0 %v3112, 8
      %v3256 = vpop.permute.xlu0 %3255
      %3257 = vrot.lane.b32.xlu0 %v3115, 8
      %v3258 = vpop.permute.xlu0 %3257
      %3259 = vrot.lane.b32.xlu0 %v3117, 8
      %v3260 = vpop.permute.xlu0 %3259
      %3261 = vrot.lane.b32.xlu0 %v3120, 8
      %v3262 = vpop.permute.xlu0 %3261
      %3263 = vrot.lane.b32.xlu0 %v3122, 8
      %v3264 = vpop.permute.xlu0 %3263
      %3265 = vrot.lane.b32.xlu0 %v3125, 8
      %v3266 = vpop.permute.xlu0 %3265
      %3267 = vrot.lane.b32.xlu0 %v3127, 8
      %v3268 = vpop.permute.xlu0 %3267
      %3269 = vrot.lane.b32.xlu0 %v3130, 8
      %v3270 = vpop.permute.xlu0 %3269
      %3271 = vrot.lane.b32.xlu0 %v3132, 8
      %v3272 = vpop.permute.xlu0 %3271
      %3273 = vrot.lane.b32.xlu0 %v3135, 8
      %v3274 = vpop.permute.xlu0 %3273
      %3275 = vrot.lane.b32.xlu0 %v3137, 8
      %v3276 = vpop.permute.xlu0 %3275
      %3277 = vrot.lane.b32.xlu0 %v3140, 8
      %v3278 = vpop.permute.xlu0 %3277
      %3279 = vrot.lane.b32.xlu0 %v3142, 8
      %v3280 = vpop.permute.xlu0 %3279
      %3281 = vrot.lane.b32.xlu0 %v3145, 8
      %v3282 = vpop.permute.xlu0 %3281
      %3283 = vrot.lane.b32.xlu0 %v3147, 8
      %v3284 = vpop.permute.xlu0 %3283
      %3285 = vrot.lane.b32.xlu0 %v3150, 8
      %v3286 = vpop.permute.xlu0 %3285
      %3287 = vrot.lane.b32.xlu0 %v3152, 8
      %v3288 = vpop.permute.xlu0 %3287
      %3289 = vrot.lane.b32.xlu0 %v3155, 8
      %v3290 = vpop.permute.xlu0 %3289
      %3291 = vrot.lane.b32.xlu0 %v3157, 8
      %v3292 = vpop.permute.xlu0 %3291
      %3293 = vrot.lane.b32.xlu0 %v3160, 8
      %v3294 = vpop.permute.xlu0 %3293
      %3295 = vrot.lane.b32.xlu0 %v3162, 8
      %v3296 = vpop.permute.xlu0 %3295
      %3297 = vrot.lane.b32.xlu0 %v3165, 8
      %v3298 = vpop.permute.xlu0 %3297
      %3299 = vrot.lane.b32.xlu0 %v3167, 8
      %v3300 = vpop.permute.xlu0 %3299
      %3301 = vrot.lane.b32.xlu0 %v3170, 8
      %v3302 = vpop.permute.xlu0 %3301
      %3303 = vrot.lane.b32.xlu0 %v3172, 8
      %v3304 = vpop.permute.xlu0 %3303
      %3305 = vrot.lane.b32.xlu0 %v3175, 8
      %v3306 = vpop.permute.xlu0 %3305
      %3307 = vrot.lane.b32.xlu0 %v3177, 8
      %v3308 = vpop.permute.xlu0 %3307
      %3309 = vrot.lane.b32.xlu0 %v3180, 8
      %v3310 = vpop.permute.xlu0 %3309
      %3311 = vrot.lane.b32.xlu0 %v3182, 8
      %v3312 = vpop.permute.xlu0 %3311
      %3313 = vrot.lane.b32.xlu0 %v3185, 8
      %v3314 = vpop.permute.xlu0 %3313
      %3315 = vrot.lane.b32.xlu0 %v3187, 8
      %v3316 = vpop.permute.xlu0 %3315
      %3317 = vrot.lane.b32.xlu0 %v3190, 8
      %v3318 = vpop.permute.xlu0 %3317
      %3319 = vrot.lane.b32.xlu0 %v3192, 8
      %v3320 = vpop.permute.xlu0 %3319
      %3321 = vrot.lane.b32.xlu0 %v3195, 8
      %v3322 = vpop.permute.xlu0 %3321
      %3323 = vrot.lane.b32.xlu0 %v3197, 8
      %v3324 = vpop.permute.xlu0 %3323
      %3325 = vrot.lane.b32.xlu0 %v3200, 8
      %v3326 = vpop.permute.xlu0 %3325
      %3327 = vrot.lane.b32.xlu0 %v3202, 8
      %v3328 = vpop.permute.xlu0 %3327
      %3330 = vrot.lane.b32.xlu0 %v2163, 12
      %v3331 = vpop.permute.xlu0 %3330
      %3332 = vrot.lane.b32.xlu0 %v1631, 12
      %v3333 = vpop.permute.xlu0 %3332
      %3334 = vrot.lane.b32.xlu0 %v2164, 12
      %v3335 = vpop.permute.xlu0 %3334
      %3336 = vrot.lane.b32.xlu0 %v1646, 12
      %v3337 = vpop.permute.xlu0 %3336
      %3338 = vrot.lane.b32.xlu0 %v2165, 12
      %v3339 = vpop.permute.xlu0 %3338
      %3340 = vrot.lane.b32.xlu0 %v1661, 12
      %v3341 = vpop.permute.xlu0 %3340
      %3342 = vrot.lane.b32.xlu0 %v2166, 12
      %v3343 = vpop.permute.xlu0 %3342
      %3344 = vrot.lane.b32.xlu0 %v1676, 12
      %v3345 = vpop.permute.xlu0 %3344
      %3346 = vrot.lane.b32.xlu0 %v2167, 12
      %v3347 = vpop.permute.xlu0 %3346
      %3348 = vrot.lane.b32.xlu0 %v1691, 12
      %v3349 = vpop.permute.xlu0 %3348
      %3350 = vrot.lane.b32.xlu0 %v2168, 12
      %v3351 = vpop.permute.xlu0 %3350
      %3352 = vrot.lane.b32.xlu0 %v1706, 12
      %v3353 = vpop.permute.xlu0 %3352
      %3354 = vrot.lane.b32.xlu0 %v2169, 12
      %v3355 = vpop.permute.xlu0 %3354
      %3356 = vrot.lane.b32.xlu0 %v1721, 12
      %v3357 = vpop.permute.xlu0 %3356
      %3358 = vrot.lane.b32.xlu0 %v2170, 12
      %v3359 = vpop.permute.xlu0 %3358
      %3360 = vrot.lane.b32.xlu0 %v1736, 12
      %v3361 = vpop.permute.xlu0 %3360
      %3362 = vrot.lane.b32.xlu0 %v2171, 12
      %v3363 = vpop.permute.xlu0 %3362
      %3364 = vrot.lane.b32.xlu0 %v1751, 12
      %v3365 = vpop.permute.xlu0 %3364
      %3366 = vrot.lane.b32.xlu0 %v2172, 12
      %v3367 = vpop.permute.xlu0 %3366
      %3368 = vrot.lane.b32.xlu0 %v1766, 12
      %v3369 = vpop.permute.xlu0 %3368
      %3370 = vrot.lane.b32.xlu0 %v2173, 12
      %v3371 = vpop.permute.xlu0 %3370
      %3372 = vrot.lane.b32.xlu0 %v1781, 12
      %v3373 = vpop.permute.xlu0 %3372
      %3374 = vrot.lane.b32.xlu0 %v2174, 12
      %v3375 = vpop.permute.xlu0 %3374
      %3376 = vrot.lane.b32.xlu0 %v1796, 12
      %v3377 = vpop.permute.xlu0 %3376
      %3378 = vrot.lane.b32.xlu0 %v2175, 12
      %v3379 = vpop.permute.xlu0 %3378
      %3380 = vrot.lane.b32.xlu0 %v1811, 12
      %v3381 = vpop.permute.xlu0 %3380
      %3382 = vrot.lane.b32.xlu0 %v2176, 12
      %v3383 = vpop.permute.xlu0 %3382
      %3384 = vrot.lane.b32.xlu0 %v1826, 12
      %v3385 = vpop.permute.xlu0 %3384
      %3386 = vrot.lane.b32.xlu0 %v2177, 12
      %v3387 = vpop.permute.xlu0 %3386
      %3388 = vrot.lane.b32.xlu0 %v1841, 12
      %v3389 = vpop.permute.xlu0 %3388
      %3390 = vrot.lane.b32.xlu0 %v2178, 12
      %v3391 = vpop.permute.xlu0 %3390
      %3392 = vrot.lane.b32.xlu0 %v1856, 12
      %v3393 = vpop.permute.xlu0 %3392
      %3394 = vrot.lane.b32.xlu0 %v2179, 12
      %v3395 = vpop.permute.xlu0 %3394
      %3396 = vrot.lane.b32.xlu0 %v1871, 12
      %v3397 = vpop.permute.xlu0 %3396
      %3398 = vrot.lane.b32.xlu0 %v2180, 12
      %v3399 = vpop.permute.xlu0 %3398
      %3400 = vrot.lane.b32.xlu0 %v1886, 12
      %v3401 = vpop.permute.xlu0 %3400
      %3402 = vrot.lane.b32.xlu0 %v2181, 12
      %v3403 = vpop.permute.xlu0 %3402
      %3404 = vrot.lane.b32.xlu0 %v1901, 12
      %v3405 = vpop.permute.xlu0 %3404
      %3406 = vrot.lane.b32.xlu0 %v2182, 12
      %v3407 = vpop.permute.xlu0 %3406
      %3408 = vrot.lane.b32.xlu0 %v1916, 12
      %v3409 = vpop.permute.xlu0 %3408
      %3410 = vrot.lane.b32.xlu0 %v2183, 12
      %v3411 = vpop.permute.xlu0 %3410
      %3412 = vrot.lane.b32.xlu0 %v1931, 12
      %v3413 = vpop.permute.xlu0 %3412
      %3414 = vrot.lane.b32.xlu0 %v2184, 12
      %v3415 = vpop.permute.xlu0 %3414
      %3416 = vrot.lane.b32.xlu0 %v1946, 12
      %v3417 = vpop.permute.xlu0 %3416
      %3418 = vrot.lane.b32.xlu0 %v2185, 12
      %v3419 = vpop.permute.xlu0 %3418
      %3420 = vrot.lane.b32.xlu0 %v1961, 12
      %v3421 = vpop.permute.xlu0 %3420
      %3422 = vrot.lane.b32.xlu0 %v2186, 12
      %v3423 = vpop.permute.xlu0 %3422
      %3424 = vrot.lane.b32.xlu0 %v1976, 12
      %v3425 = vpop.permute.xlu0 %3424
      %3426 = vrot.lane.b32.xlu0 %v2187, 12
      %v3427 = vpop.permute.xlu0 %3426
      %3428 = vrot.lane.b32.xlu0 %v1991, 12
      %v3429 = vpop.permute.xlu0 %3428
      %3430 = vrot.lane.b32.xlu0 %v2188, 12
      %v3431 = vpop.permute.xlu0 %3430
      %3432 = vrot.lane.b32.xlu0 %v2006, 12
      %v3433 = vpop.permute.xlu0 %3432
      %3434 = vrot.lane.b32.xlu0 %v2189, 12
      %v3435 = vpop.permute.xlu0 %3434
      %3436 = vrot.lane.b32.xlu0 %v2021, 12
      %v3437 = vpop.permute.xlu0 %3436
      %3438 = vrot.lane.b32.xlu0 %v2190, 12
      %v3439 = vpop.permute.xlu0 %3438
      %3440 = vrot.lane.b32.xlu0 %v2036, 12
      %v3441 = vpop.permute.xlu0 %3440
      %3442 = vrot.lane.b32.xlu0 %v2191, 12
      %v3443 = vpop.permute.xlu0 %3442
      %3444 = vrot.lane.b32.xlu0 %v2051, 12
      %v3445 = vpop.permute.xlu0 %3444
      %3446 = vrot.lane.b32.xlu0 %v2192, 12
      %v3447 = vpop.permute.xlu0 %3446
      %3448 = vrot.lane.b32.xlu0 %v2066, 12
      %v3449 = vpop.permute.xlu0 %3448
      %3450 = vrot.lane.b32.xlu0 %v2193, 12
      %v3451 = vpop.permute.xlu0 %3450
      %3452 = vrot.lane.b32.xlu0 %v2081, 12
      %v3453 = vpop.permute.xlu0 %3452
      %3454 = vrot.lane.b32.xlu0 %v2194, 12
      %v3455 = vpop.permute.xlu0 %3454
      %3456 = vrot.lane.b32.xlu0 %v2096, 12
      %v3457 = vpop.permute.xlu0 %3456
      %v3459 = vshrl.u32 %v2194, 16
      %v3461 = vshll.u32 %v2194, 16
      %v3463 = vrot.slane %v3461, 1
      %v3464 = vor.u32 %v3459, %v3463
      %v3466 = vshll.u32 %v2096, 16
      %v3468 = vrot.slane %v3466, 1
      %v3469 = vsel %vm2227, %v3464, %v3468
      %v3470 = vshrl.u32 %v2096, 16
      %v3472 = vor.u32 %v3470, %v3468
      %v3474 = vshll.u32 %v2226, 16
      %v3476 = vrot.slane %v3474, 1
      %v3477 = vsel %vm2227, %v3472, %v3476
      %3478 = vrot.lane.b32.xlu0 %v2247, 16
      %v3479 = vpop.permute.xlu0 %3478
      %3480 = vrot.lane.b32.xlu0 %v2255, 16
      %v3481 = vpop.permute.xlu0 %3480
      %3482 = vrot.lane.b32.xlu0 %v2267, 16
      %v3483 = vpop.permute.xlu0 %3482
      %3484 = vrot.lane.b32.xlu0 %v2275, 16
      %v3485 = vpop.permute.xlu0 %3484
      %3486 = vrot.lane.b32.xlu0 %v2287, 16
      %v3487 = vpop.permute.xlu0 %3486
      %3488 = vrot.lane.b32.xlu0 %v2295, 16
      %v3489 = vpop.permute.xlu0 %3488
      %3490 = vrot.lane.b32.xlu0 %v2307, 16
      %v3491 = vpop.permute.xlu0 %3490
      %3492 = vrot.lane.b32.xlu0 %v2315, 16
      %v3493 = vpop.permute.xlu0 %3492
      %3494 = vrot.lane.b32.xlu0 %v2327, 16
      %v3495 = vpop.permute.xlu0 %3494
      %3496 = vrot.lane.b32.xlu0 %v2335, 16
      %v3497 = vpop.permute.xlu0 %3496
      %3498 = vrot.lane.b32.xlu0 %v2347, 16
      %v3499 = vpop.permute.xlu0 %3498
      %3500 = vrot.lane.b32.xlu0 %v2355, 16
      %v3501 = vpop.permute.xlu0 %3500
      %3502 = vrot.lane.b32.xlu0 %v2367, 16
      %v3503 = vpop.permute.xlu0 %3502
      %3504 = vrot.lane.b32.xlu0 %v2375, 16
      %v3505 = vpop.permute.xlu0 %3504
      %3506 = vrot.lane.b32.xlu0 %v2387, 16
      %v3507 = vpop.permute.xlu0 %3506
      %3508 = vrot.lane.b32.xlu0 %v2395, 16
      %v3509 = vpop.permute.xlu0 %3508
      %3510 = vrot.lane.b32.xlu0 %v2407, 16
      %v3511 = vpop.permute.xlu0 %3510
      %3512 = vrot.lane.b32.xlu0 %v2415, 16
      %v3513 = vpop.permute.xlu0 %3512
      %3514 = vrot.lane.b32.xlu0 %v2427, 16
      %v3515 = vpop.permute.xlu0 %3514
      %3516 = vrot.lane.b32.xlu0 %v2435, 16
      %v3517 = vpop.permute.xlu0 %3516
      %3518 = vrot.lane.b32.xlu0 %v2447, 16
      %v3519 = vpop.permute.xlu0 %3518
      %3520 = vrot.lane.b32.xlu0 %v2455, 16
      %v3521 = vpop.permute.xlu0 %3520
      %3522 = vrot.lane.b32.xlu0 %v2467, 16
      %v3523 = vpop.permute.xlu0 %3522
      %3524 = vrot.lane.b32.xlu0 %v2475, 16
      %v3525 = vpop.permute.xlu0 %3524
      %3526 = vrot.lane.b32.xlu0 %v2487, 16
      %v3527 = vpop.permute.xlu0 %3526
      %3528 = vrot.lane.b32.xlu0 %v2495, 16
      %v3529 = vpop.permute.xlu0 %3528
      %3530 = vrot.lane.b32.xlu0 %v2507, 16
      %v3531 = vpop.permute.xlu0 %3530
      %3532 = vrot.lane.b32.xlu0 %v2515, 16
      %v3533 = vpop.permute.xlu0 %3532
      %3534 = vrot.lane.b32.xlu0 %v2527, 16
      %v3535 = vpop.permute.xlu0 %3534
      %3536 = vrot.lane.b32.xlu0 %v2535, 16
      %v3537 = vpop.permute.xlu0 %3536
      %3538 = vrot.lane.b32.xlu0 %v2547, 16
      %v3539 = vpop.permute.xlu0 %3538
      %3540 = vrot.lane.b32.xlu0 %v2555, 16
      %v3541 = vpop.permute.xlu0 %3540
      %3542 = vrot.lane.b32.xlu0 %v2567, 16
      %v3543 = vpop.permute.xlu0 %3542
      %3544 = vrot.lane.b32.xlu0 %v2575, 16
      %v3545 = vpop.permute.xlu0 %3544
      %3546 = vrot.lane.b32.xlu0 %v2587, 16
      %v3547 = vpop.permute.xlu0 %3546
      %3548 = vrot.lane.b32.xlu0 %v2595, 16
      %v3549 = vpop.permute.xlu0 %3548
      %3550 = vrot.lane.b32.xlu0 %v2607, 16
      %v3551 = vpop.permute.xlu0 %3550
      %3552 = vrot.lane.b32.xlu0 %v2615, 16
      %v3553 = vpop.permute.xlu0 %3552
      %3554 = vrot.lane.b32.xlu0 %v2627, 16
      %v3555 = vpop.permute.xlu0 %3554
      %3556 = vrot.lane.b32.xlu0 %v2635, 16
      %v3557 = vpop.permute.xlu0 %3556
      %3558 = vrot.lane.b32.xlu0 %v2647, 16
      %v3559 = vpop.permute.xlu0 %3558
      %3560 = vrot.lane.b32.xlu0 %v2655, 16
      %v3561 = vpop.permute.xlu0 %3560
      %3562 = vrot.lane.b32.xlu0 %v2667, 16
      %v3563 = vpop.permute.xlu0 %3562
      %3564 = vrot.lane.b32.xlu0 %v2675, 16
      %v3565 = vpop.permute.xlu0 %3564
      %3566 = vrot.lane.b32.xlu0 %v2687, 16
      %v3567 = vpop.permute.xlu0 %3566
      %3568 = vrot.lane.b32.xlu0 %v2695, 16
      %v3569 = vpop.permute.xlu0 %3568
      %3570 = vrot.lane.b32.xlu0 %v2707, 16
      %v3571 = vpop.permute.xlu0 %3570
      %3572 = vrot.lane.b32.xlu0 %v2715, 16
      %v3573 = vpop.permute.xlu0 %3572
      %3574 = vrot.lane.b32.xlu0 %v2727, 16
      %v3575 = vpop.permute.xlu0 %3574
      %3576 = vrot.lane.b32.xlu0 %v2735, 16
      %v3577 = vpop.permute.xlu0 %3576
      %3578 = vrot.lane.b32.xlu0 %v2747, 16
      %v3579 = vpop.permute.xlu0 %3578
      %3580 = vrot.lane.b32.xlu0 %v2755, 16
      %v3581 = vpop.permute.xlu0 %3580
      %3582 = vrot.lane.b32.xlu0 %v2767, 16
      %v3583 = vpop.permute.xlu0 %3582
      %3584 = vrot.lane.b32.xlu0 %v2775, 16
      %v3585 = vpop.permute.xlu0 %3584
      %3586 = vrot.lane.b32.xlu0 %v2787, 16
      %v3587 = vpop.permute.xlu0 %3586
      %3588 = vrot.lane.b32.xlu0 %v2795, 16
      %v3589 = vpop.permute.xlu0 %3588
      %3590 = vrot.lane.b32.xlu0 %v2807, 16
      %v3591 = vpop.permute.xlu0 %3590
      %3592 = vrot.lane.b32.xlu0 %v2815, 16
      %v3593 = vpop.permute.xlu0 %3592
      %3594 = vrot.lane.b32.xlu0 %v2827, 16
      %v3595 = vpop.permute.xlu0 %3594
      %3596 = vrot.lane.b32.xlu0 %v2835, 16
      %v3597 = vpop.permute.xlu0 %3596
      %3598 = vrot.lane.b32.xlu0 %v2847, 16
      %v3599 = vpop.permute.xlu0 %3598
      %3600 = vrot.lane.b32.xlu0 %v2855, 16
      %v3601 = vpop.permute.xlu0 %3600
      %3602 = vrot.lane.b32.xlu0 %v3469, 16
      %v3603 = vpop.permute.xlu0 %3602
      %3604 = vrot.lane.b32.xlu0 %v3477, 16
      %v3605 = vpop.permute.xlu0 %3604
      %v3607 = vrot.slane %v2194, 1
      %v3608 = vrot.slane %v2096, 1
      %v3609 = vsel %vm3045, %v3607, %v3608
      %v3610 = vrot.slane %v2226, 1
      %v3611 = vsel %vm3045, %v3608, %v3610
      %3612 = vrot.lane.b32.xlu0 %v3050, 20
      %v3613 = vpop.permute.xlu0 %3612
      %3614 = vrot.lane.b32.xlu0 %v3052, 20
      %v3615 = vpop.permute.xlu0 %3614
      %3616 = vrot.lane.b32.xlu0 %v3055, 20
      %v3617 = vpop.permute.xlu0 %3616
      %3618 = vrot.lane.b32.xlu0 %v3057, 20
      %v3619 = vpop.permute.xlu0 %3618
      %3620 = vrot.lane.b32.xlu0 %v3060, 20
      %v3621 = vpop.permute.xlu0 %3620
      %3622 = vrot.lane.b32.xlu0 %v3062, 20
      %v3623 = vpop.permute.xlu0 %3622
      %3624 = vrot.lane.b32.xlu0 %v3065, 20
      %v3625 = vpop.permute.xlu0 %3624
      %3626 = vrot.lane.b32.xlu0 %v3067, 20
      %v3627 = vpop.permute.xlu0 %3626
      %3628 = vrot.lane.b32.xlu0 %v3070, 20
      %v3629 = vpop.permute.xlu0 %3628
      %3630 = vrot.lane.b32.xlu0 %v3072, 20
      %v3631 = vpop.permute.xlu0 %3630
      %3632 = vrot.lane.b32.xlu0 %v3075, 20
      %v3633 = vpop.permute.xlu0 %3632
      %3634 = vrot.lane.b32.xlu0 %v3077, 20
      %v3635 = vpop.permute.xlu0 %3634
      %3636 = vrot.lane.b32.xlu0 %v3080, 20
      %v3637 = vpop.permute.xlu0 %3636
      %3638 = vrot.lane.b32.xlu0 %v3082, 20
      %v3639 = vpop.permute.xlu0 %3638
      %3640 = vrot.lane.b32.xlu0 %v3085, 20
      %v3641 = vpop.permute.xlu0 %3640
      %3642 = vrot.lane.b32.xlu0 %v3087, 20
      %v3643 = vpop.permute.xlu0 %3642
      %3644 = vrot.lane.b32.xlu0 %v3090, 20
      %v3645 = vpop.permute.xlu0 %3644
      %3646 = vrot.lane.b32.xlu0 %v3092, 20
      %v3647 = vpop.permute.xlu0 %3646
      %3648 = vrot.lane.b32.xlu0 %v3095, 20
      %v3649 = vpop.permute.xlu0 %3648
      %3650 = vrot.lane.b32.xlu0 %v3097, 20
      %v3651 = vpop.permute.xlu0 %3650
      %3652 = vrot.lane.b32.xlu0 %v3100, 20
      %v3653 = vpop.permute.xlu0 %3652
      %3654 = vrot.lane.b32.xlu0 %v3102, 20
      %v3655 = vpop.permute.xlu0 %3654
      %3656 = vrot.lane.b32.xlu0 %v3105, 20
      %v3657 = vpop.permute.xlu0 %3656
      %3658 = vrot.lane.b32.xlu0 %v3107, 20
      %v3659 = vpop.permute.xlu0 %3658
      %3660 = vrot.lane.b32.xlu0 %v3110, 20
      %v3661 = vpop.permute.xlu0 %3660
      %3662 = vrot.lane.b32.xlu0 %v3112, 20
      %v3663 = vpop.permute.xlu0 %3662
      %3664 = vrot.lane.b32.xlu0 %v3115, 20
      %v3665 = vpop.permute.xlu0 %3664
      %3666 = vrot.lane.b32.xlu0 %v3117, 20
      %v3667 = vpop.permute.xlu0 %3666
      %3668 = vrot.lane.b32.xlu0 %v3120, 20
      %v3669 = vpop.permute.xlu0 %3668
      %3670 = vrot.lane.b32.xlu0 %v3122, 20
      %v3671 = vpop.permute.xlu0 %3670
      %3672 = vrot.lane.b32.xlu0 %v3125, 20
      %v3673 = vpop.permute.xlu0 %3672
      %3674 = vrot.lane.b32.xlu0 %v3127, 20
      %v3675 = vpop.permute.xlu0 %3674
      %3676 = vrot.lane.b32.xlu0 %v3130, 20
      %v3677 = vpop.permute.xlu0 %3676
      %3678 = vrot.lane.b32.xlu0 %v3132, 20
      %v3679 = vpop.permute.xlu0 %3678
      %3680 = vrot.lane.b32.xlu0 %v3135, 20
      %v3681 = vpop.permute.xlu0 %3680
      %3682 = vrot.lane.b32.xlu0 %v3137, 20
      %v3683 = vpop.permute.xlu0 %3682
      %3684 = vrot.lane.b32.xlu0 %v3140, 20
      %v3685 = vpop.permute.xlu0 %3684
      %3686 = vrot.lane.b32.xlu0 %v3142, 20
      %v3687 = vpop.permute.xlu0 %3686
      %3688 = vrot.lane.b32.xlu0 %v3145, 20
      %v3689 = vpop.permute.xlu0 %3688
      %3690 = vrot.lane.b32.xlu0 %v3147, 20
      %v3691 = vpop.permute.xlu0 %3690
      %3692 = vrot.lane.b32.xlu0 %v3150, 20
      %v3693 = vpop.permute.xlu0 %3692
      %3694 = vrot.lane.b32.xlu0 %v3152, 20
      %v3695 = vpop.permute.xlu0 %3694
      %3696 = vrot.lane.b32.xlu0 %v3155, 20
      %v3697 = vpop.permute.xlu0 %3696
      %3698 = vrot.lane.b32.xlu0 %v3157, 20
      %v3699 = vpop.permute.xlu0 %3698
      %3700 = vrot.lane.b32.xlu0 %v3160, 20
      %v3701 = vpop.permute.xlu0 %3700
      %3702 = vrot.lane.b32.xlu0 %v3162, 20
      %v3703 = vpop.permute.xlu0 %3702
      %3704 = vrot.lane.b32.xlu0 %v3165, 20
      %v3705 = vpop.permute.xlu0 %3704
      %3706 = vrot.lane.b32.xlu0 %v3167, 20
      %v3707 = vpop.permute.xlu0 %3706
      %3708 = vrot.lane.b32.xlu0 %v3170, 20
      %v3709 = vpop.permute.xlu0 %3708
      %3710 = vrot.lane.b32.xlu0 %v3172, 20
      %v3711 = vpop.permute.xlu0 %3710
      %3712 = vrot.lane.b32.xlu0 %v3175, 20
      %v3713 = vpop.permute.xlu0 %3712
      %3714 = vrot.lane.b32.xlu0 %v3177, 20
      %v3715 = vpop.permute.xlu0 %3714
      %3716 = vrot.lane.b32.xlu0 %v3180, 20
      %v3717 = vpop.permute.xlu0 %3716
      %3718 = vrot.lane.b32.xlu0 %v3182, 20
      %v3719 = vpop.permute.xlu0 %3718
      %3720 = vrot.lane.b32.xlu0 %v3185, 20
      %v3721 = vpop.permute.xlu0 %3720
      %3722 = vrot.lane.b32.xlu0 %v3187, 20
      %v3723 = vpop.permute.xlu0 %3722
      %3724 = vrot.lane.b32.xlu0 %v3190, 20
      %v3725 = vpop.permute.xlu0 %3724
      %3726 = vrot.lane.b32.xlu0 %v3192, 20
      %v3727 = vpop.permute.xlu0 %3726
      %3728 = vrot.lane.b32.xlu0 %v3195, 20
      %v3729 = vpop.permute.xlu0 %3728
      %3730 = vrot.lane.b32.xlu0 %v3197, 20
      %v3731 = vpop.permute.xlu0 %3730
      %3732 = vrot.lane.b32.xlu0 %v3200, 20
      %v3733 = vpop.permute.xlu0 %3732
      %3734 = vrot.lane.b32.xlu0 %v3202, 20
      %v3735 = vpop.permute.xlu0 %3734
      %3736 = vrot.lane.b32.xlu0 %v3609, 20
      %v3737 = vpop.permute.xlu0 %3736
      %3738 = vrot.lane.b32.xlu0 %v3611, 20
      %v3739 = vpop.permute.xlu0 %3738
      %3740 = vrot.lane.b32.xlu0 %v2164, 24
      %v3741 = vpop.permute.xlu0 %3740
      %3742 = vrot.lane.b32.xlu0 %v1646, 24
      %v3743 = vpop.permute.xlu0 %3742
      %3744 = vrot.lane.b32.xlu0 %v2165, 24
      %v3745 = vpop.permute.xlu0 %3744
      %3746 = vrot.lane.b32.xlu0 %v1661, 24
      %v3747 = vpop.permute.xlu0 %3746
      %3748 = vrot.lane.b32.xlu0 %v2166, 24
      %v3749 = vpop.permute.xlu0 %3748
      %3750 = vrot.lane.b32.xlu0 %v1676, 24
      %v3751 = vpop.permute.xlu0 %3750
      %3752 = vrot.lane.b32.xlu0 %v2167, 24
      %v3753 = vpop.permute.xlu0 %3752
      %3754 = vrot.lane.b32.xlu0 %v1691, 24
      %v3755 = vpop.permute.xlu0 %3754
      %3756 = vrot.lane.b32.xlu0 %v2168, 24
      %v3757 = vpop.permute.xlu0 %3756
      %3758 = vrot.lane.b32.xlu0 %v1706, 24
      %v3759 = vpop.permute.xlu0 %3758
      %3760 = vrot.lane.b32.xlu0 %v2169, 24
      %v3761 = vpop.permute.xlu0 %3760
      %3762 = vrot.lane.b32.xlu0 %v1721, 24
      %v3763 = vpop.permute.xlu0 %3762
      %3764 = vrot.lane.b32.xlu0 %v2170, 24
      %v3765 = vpop.permute.xlu0 %3764
      %3766 = vrot.lane.b32.xlu0 %v1736, 24
      %v3767 = vpop.permute.xlu0 %3766
      %3768 = vrot.lane.b32.xlu0 %v2171, 24
      %v3769 = vpop.permute.xlu0 %3768
      %3770 = vrot.lane.b32.xlu0 %v1751, 24
      %v3771 = vpop.permute.xlu0 %3770
      %3772 = vrot.lane.b32.xlu0 %v2172, 24
      %v3773 = vpop.permute.xlu0 %3772
      %3774 = vrot.lane.b32.xlu0 %v1766, 24
      %v3775 = vpop.permute.xlu0 %3774
      %3776 = vrot.lane.b32.xlu0 %v2173, 24
      %v3777 = vpop.permute.xlu0 %3776
      %3778 = vrot.lane.b32.xlu0 %v1781, 24
      %v3779 = vpop.permute.xlu0 %3778
      %3780 = vrot.lane.b32.xlu0 %v2174, 24
      %v3781 = vpop.permute.xlu0 %3780
      %3782 = vrot.lane.b32.xlu0 %v1796, 24
      %v3783 = vpop.permute.xlu0 %3782
      %3784 = vrot.lane.b32.xlu0 %v2175, 24
      %v3785 = vpop.permute.xlu0 %3784
      %3786 = vrot.lane.b32.xlu0 %v1811, 24
      %v3787 = vpop.permute.xlu0 %3786
      %3788 = vrot.lane.b32.xlu0 %v2176, 24
      %v3789 = vpop.permute.xlu0 %3788
      %3790 = vrot.lane.b32.xlu0 %v1826, 24
      %v3791 = vpop.permute.xlu0 %3790
      %3792 = vrot.lane.b32.xlu0 %v2177, 24
      %v3793 = vpop.permute.xlu0 %3792
      %3794 = vrot.lane.b32.xlu0 %v1841, 24
      %v3795 = vpop.permute.xlu0 %3794
      %3796 = vrot.lane.b32.xlu0 %v2178, 24
      %v3797 = vpop.permute.xlu0 %3796
      %3798 = vrot.lane.b32.xlu0 %v1856, 24
      %v3799 = vpop.permute.xlu0 %3798
      %3800 = vrot.lane.b32.xlu0 %v2179, 24
      %v3801 = vpop.permute.xlu0 %3800
      %3802 = vrot.lane.b32.xlu0 %v1871, 24
      %v3803 = vpop.permute.xlu0 %3802
      %3804 = vrot.lane.b32.xlu0 %v2180, 24
      %v3805 = vpop.permute.xlu0 %3804
      %3806 = vrot.lane.b32.xlu0 %v1886, 24
      %v3807 = vpop.permute.xlu0 %3806
      %3808 = vrot.lane.b32.xlu0 %v2181, 24
      %v3809 = vpop.permute.xlu0 %3808
      %3810 = vrot.lane.b32.xlu0 %v1901, 24
      %v3811 = vpop.permute.xlu0 %3810
      %3812 = vrot.lane.b32.xlu0 %v2182, 24
      %v3813 = vpop.permute.xlu0 %3812
      %3814 = vrot.lane.b32.xlu0 %v1916, 24
      %v3815 = vpop.permute.xlu0 %3814
      %3816 = vrot.lane.b32.xlu0 %v2183, 24
      %v3817 = vpop.permute.xlu0 %3816
      %3818 = vrot.lane.b32.xlu0 %v1931, 24
      %v3819 = vpop.permute.xlu0 %3818
      %3820 = vrot.lane.b32.xlu0 %v2184, 24
      %v3821 = vpop.permute.xlu0 %3820
      %3822 = vrot.lane.b32.xlu0 %v1946, 24
      %v3823 = vpop.permute.xlu0 %3822
      %3824 = vrot.lane.b32.xlu0 %v2185, 24
      %v3825 = vpop.permute.xlu0 %3824
      %3826 = vrot.lane.b32.xlu0 %v1961, 24
      %v3827 = vpop.permute.xlu0 %3826
      %3828 = vrot.lane.b32.xlu0 %v2186, 24
      %v3829 = vpop.permute.xlu0 %3828
      %3830 = vrot.lane.b32.xlu0 %v1976, 24
      %v3831 = vpop.permute.xlu0 %3830
      %3832 = vrot.lane.b32.xlu0 %v2187, 24
      %v3833 = vpop.permute.xlu0 %3832
      %3834 = vrot.lane.b32.xlu0 %v1991, 24
      %v3835 = vpop.permute.xlu0 %3834
      %3836 = vrot.lane.b32.xlu0 %v2188, 24
      %v3837 = vpop.permute.xlu0 %3836
      %3838 = vrot.lane.b32.xlu0 %v2006, 24
      %v3839 = vpop.permute.xlu0 %3838
      %3840 = vrot.lane.b32.xlu0 %v2189, 24
      %v3841 = vpop.permute.xlu0 %3840
      %3842 = vrot.lane.b32.xlu0 %v2021, 24
      %v3843 = vpop.permute.xlu0 %3842
      %3844 = vrot.lane.b32.xlu0 %v2190, 24
      %v3845 = vpop.permute.xlu0 %3844
      %3846 = vrot.lane.b32.xlu0 %v2036, 24
      %v3847 = vpop.permute.xlu0 %3846
      %3848 = vrot.lane.b32.xlu0 %v2191, 24
      %v3849 = vpop.permute.xlu0 %3848
      %3850 = vrot.lane.b32.xlu0 %v2051, 24
      %v3851 = vpop.permute.xlu0 %3850
      %3852 = vrot.lane.b32.xlu0 %v2192, 24
      %v3853 = vpop.permute.xlu0 %3852
      %3854 = vrot.lane.b32.xlu0 %v2066, 24
      %v3855 = vpop.permute.xlu0 %3854
      %3856 = vrot.lane.b32.xlu0 %v2193, 24
      %v3857 = vpop.permute.xlu0 %3856
      %3858 = vrot.lane.b32.xlu0 %v2081, 24
      %v3859 = vpop.permute.xlu0 %3858
      %3860 = vrot.lane.b32.xlu0 %v2194, 24
      %v3861 = vpop.permute.xlu0 %3860
      %3862 = vrot.lane.b32.xlu0 %v2096, 24
      %v3863 = vpop.permute.xlu0 %3862
      %3864 = vrot.lane.b32.xlu0 0, 24
      %v3865 = vpop.permute.xlu0 %3864
      %3866 = vrot.lane.b32.xlu0 %v2267, 28
      %v3867 = vpop.permute.xlu0 %3866
      %3868 = vrot.lane.b32.xlu0 %v2275, 28
      %v3869 = vpop.permute.xlu0 %3868
      %3870 = vrot.lane.b32.xlu0 %v2287, 28
      %v3871 = vpop.permute.xlu0 %3870
      %3872 = vrot.lane.b32.xlu0 %v2295, 28
      %v3873 = vpop.permute.xlu0 %3872
      %3874 = vrot.lane.b32.xlu0 %v2307, 28
      %v3875 = vpop.permute.xlu0 %3874
      %3876 = vrot.lane.b32.xlu0 %v2315, 28
      %v3877 = vpop.permute.xlu0 %3876
      %3878 = vrot.lane.b32.xlu0 %v2327, 28
      %v3879 = vpop.permute.xlu0 %3878
      %3880 = vrot.lane.b32.xlu0 %v2335, 28
      %v3881 = vpop.permute.xlu0 %3880
      %3882 = vrot.lane.b32.xlu0 %v2347, 28
      %v3883 = vpop.permute.xlu0 %3882
      %3884 = vrot.lane.b32.xlu0 %v2355, 28
      %v3885 = vpop.permute.xlu0 %3884
      %3886 = vrot.lane.b32.xlu0 %v2367, 28
      %v3887 = vpop.permute.xlu0 %3886
      %3888 = vrot.lane.b32.xlu0 %v2375, 28
      %v3889 = vpop.permute.xlu0 %3888
      %3890 = vrot.lane.b32.xlu0 %v2387, 28
      %v3891 = vpop.permute.xlu0 %3890
      %3892 = vrot.lane.b32.xlu0 %v2395, 28
      %v3893 = vpop.permute.xlu0 %3892
      %3894 = vrot.lane.b32.xlu0 %v2407, 28
      %v3895 = vpop.permute.xlu0 %3894
      %3896 = vrot.lane.b32.xlu0 %v2415, 28
      %v3897 = vpop.permute.xlu0 %3896
      %3898 = vrot.lane.b32.xlu0 %v2427, 28
      %v3899 = vpop.permute.xlu0 %3898
      %3900 = vrot.lane.b32.xlu0 %v2435, 28
      %v3901 = vpop.permute.xlu0 %3900
      %3902 = vrot.lane.b32.xlu0 %v2447, 28
      %v3903 = vpop.permute.xlu0 %3902
      %3904 = vrot.lane.b32.xlu0 %v2455, 28
      %v3905 = vpop.permute.xlu0 %3904
      %3906 = vrot.lane.b32.xlu0 %v2467, 28
      %v3907 = vpop.permute.xlu0 %3906
      %3908 = vrot.lane.b32.xlu0 %v2475, 28
      %v3909 = vpop.permute.xlu0 %3908
      %3910 = vrot.lane.b32.xlu0 %v2487, 28
      %v3911 = vpop.permute.xlu0 %3910
      %3912 = vrot.lane.b32.xlu0 %v2495, 28
      %v3913 = vpop.permute.xlu0 %3912
      %3914 = vrot.lane.b32.xlu0 %v2507, 28
      %v3915 = vpop.permute.xlu0 %3914
      %3916 = vrot.lane.b32.xlu0 %v2515, 28
      %v3917 = vpop.permute.xlu0 %3916
      %3918 = vrot.lane.b32.xlu0 %v2527, 28
      %v3919 = vpop.permute.xlu0 %3918
      %3920 = vrot.lane.b32.xlu0 %v2535, 28
      %v3921 = vpop.permute.xlu0 %3920
      %3922 = vrot.lane.b32.xlu0 %v2547, 28
      %v3923 = vpop.permute.xlu0 %3922
      %3924 = vrot.lane.b32.xlu0 %v2555, 28
      %v3925 = vpop.permute.xlu0 %3924
      %3926 = vrot.lane.b32.xlu0 %v2567, 28
      %v3927 = vpop.permute.xlu0 %3926
      %3928 = vrot.lane.b32.xlu0 %v2575, 28
      %v3929 = vpop.permute.xlu0 %3928
      %3930 = vrot.lane.b32.xlu0 %v2587, 28
      %v3931 = vpop.permute.xlu0 %3930
      %3932 = vrot.lane.b32.xlu0 %v2595, 28
      %v3933 = vpop.permute.xlu0 %3932
      %3934 = vrot.lane.b32.xlu0 %v2607, 28
      %v3935 = vpop.permute.xlu0 %3934
      %3936 = vrot.lane.b32.xlu0 %v2615, 28
      %v3937 = vpop.permute.xlu0 %3936
      %3938 = vrot.lane.b32.xlu0 %v2627, 28
      %v3939 = vpop.permute.xlu0 %3938
      %3940 = vrot.lane.b32.xlu0 %v2635, 28
      %v3941 = vpop.permute.xlu0 %3940
      %3942 = vrot.lane.b32.xlu0 %v2647, 28
      %v3943 = vpop.permute.xlu0 %3942
      %3944 = vrot.lane.b32.xlu0 %v2655, 28
      %v3945 = vpop.permute.xlu0 %3944
      %3946 = vrot.lane.b32.xlu0 %v2667, 28
      %v3947 = vpop.permute.xlu0 %3946
      %3948 = vrot.lane.b32.xlu0 %v2675, 28
      %v3949 = vpop.permute.xlu0 %3948
      %3950 = vrot.lane.b32.xlu0 %v2687, 28
      %v3951 = vpop.permute.xlu0 %3950
      %3952 = vrot.lane.b32.xlu0 %v2695, 28
      %v3953 = vpop.permute.xlu0 %3952
      %3954 = vrot.lane.b32.xlu0 %v2707, 28
      %v3955 = vpop.permute.xlu0 %3954
      %3956 = vrot.lane.b32.xlu0 %v2715, 28
      %v3957 = vpop.permute.xlu0 %3956
      %3958 = vrot.lane.b32.xlu0 %v2727, 28
      %v3959 = vpop.permute.xlu0 %3958
      %3960 = vrot.lane.b32.xlu0 %v2735, 28
      %v3961 = vpop.permute.xlu0 %3960
      %3962 = vrot.lane.b32.xlu0 %v2747, 28
      %v3963 = vpop.permute.xlu0 %3962
      %3964 = vrot.lane.b32.xlu0 %v2755, 28
      %v3965 = vpop.permute.xlu0 %3964
      %3966 = vrot.lane.b32.xlu0 %v2767, 28
      %v3967 = vpop.permute.xlu0 %3966
      %3968 = vrot.lane.b32.xlu0 %v2775, 28
      %v3969 = vpop.permute.xlu0 %3968
      %3970 = vrot.lane.b32.xlu0 %v2787, 28
      %v3971 = vpop.permute.xlu0 %3970
      %3972 = vrot.lane.b32.xlu0 %v2795, 28
      %v3973 = vpop.permute.xlu0 %3972
      %3974 = vrot.lane.b32.xlu0 %v2807, 28
      %v3975 = vpop.permute.xlu0 %3974
      %3976 = vrot.lane.b32.xlu0 %v2815, 28
      %v3977 = vpop.permute.xlu0 %3976
      %3978 = vrot.lane.b32.xlu0 %v2827, 28
      %v3979 = vpop.permute.xlu0 %3978
      %3980 = vrot.lane.b32.xlu0 %v2835, 28
      %v3981 = vpop.permute.xlu0 %3980
      %3982 = vrot.lane.b32.xlu0 %v2847, 28
      %v3983 = vpop.permute.xlu0 %3982
      %3984 = vrot.lane.b32.xlu0 %v2855, 28
      %v3985 = vpop.permute.xlu0 %3984
      %3986 = vrot.lane.b32.xlu0 %v3469, 28
      %v3987 = vpop.permute.xlu0 %3986
      %3988 = vrot.lane.b32.xlu0 %v3477, 28
      %v3989 = vpop.permute.xlu0 %3988
      %3990 = vrot.lane.b32.xlu0 %v2235, 28
      %v3991 = vpop.permute.xlu0 %3990
      %3992 = vrot.lane.b32.xlu0 %v3055, 32
      %v3993 = vpop.permute.xlu0 %3992
      %3994 = vrot.lane.b32.xlu0 %v3057, 32
      %v3995 = vpop.permute.xlu0 %3994
      %3996 = vrot.lane.b32.xlu0 %v3060, 32
      %v3997 = vpop.permute.xlu0 %3996
      %3998 = vrot.lane.b32.xlu0 %v3062, 32
      %v3999 = vpop.permute.xlu0 %3998
      %4000 = vrot.lane.b32.xlu0 %v3065, 32
      %v4001 = vpop.permute.xlu0 %4000
      %4002 = vrot.lane.b32.xlu0 %v3067, 32
      %v4003 = vpop.permute.xlu0 %4002
      %4004 = vrot.lane.b32.xlu0 %v3070, 32
      %v4005 = vpop.permute.xlu0 %4004
      %4006 = vrot.lane.b32.xlu0 %v3072, 32
      %v4007 = vpop.permute.xlu0 %4006
      %4008 = vrot.lane.b32.xlu0 %v3075, 32
      %v4009 = vpop.permute.xlu0 %4008
      %4010 = vrot.lane.b32.xlu0 %v3077, 32
      %v4011 = vpop.permute.xlu0 %4010
      %4012 = vrot.lane.b32.xlu0 %v3080, 32
      %v4013 = vpop.permute.xlu0 %4012
      %4014 = vrot.lane.b32.xlu0 %v3082, 32
      %v4015 = vpop.permute.xlu0 %4014
      %4016 = vrot.lane.b32.xlu0 %v3085, 32
      %v4017 = vpop.permute.xlu0 %4016
      %4018 = vrot.lane.b32.xlu0 %v3087, 32
      %v4019 = vpop.permute.xlu0 %4018
      %4020 = vrot.lane.b32.xlu0 %v3090, 32
      %v4021 = vpop.permute.xlu0 %4020
      %4022 = vrot.lane.b32.xlu0 %v3092, 32
      %v4023 = vpop.permute.xlu0 %4022
      %4024 = vrot.lane.b32.xlu0 %v3095, 32
      %v4025 = vpop.permute.xlu0 %4024
      %4026 = vrot.lane.b32.xlu0 %v3097, 32
      %v4027 = vpop.permute.xlu0 %4026
      %4028 = vrot.lane.b32.xlu0 %v3100, 32
      %v4029 = vpop.permute.xlu0 %4028
      %4030 = vrot.lane.b32.xlu0 %v3102, 32
      %v4031 = vpop.permute.xlu0 %4030
      %4032 = vrot.lane.b32.xlu0 %v3105, 32
      %v4033 = vpop.permute.xlu0 %4032
      %4034 = vrot.lane.b32.xlu0 %v3107, 32
      %v4035 = vpop.permute.xlu0 %4034
      %4036 = vrot.lane.b32.xlu0 %v3110, 32
      %v4037 = vpop.permute.xlu0 %4036
      %4038 = vrot.lane.b32.xlu0 %v3112, 32
      %v4039 = vpop.permute.xlu0 %4038
      %4040 = vrot.lane.b32.xlu0 %v3115, 32
      %v4041 = vpop.permute.xlu0 %4040
      %4042 = vrot.lane.b32.xlu0 %v3117, 32
      %v4043 = vpop.permute.xlu0 %4042
      %4044 = vrot.lane.b32.xlu0 %v3120, 32
      %v4045 = vpop.permute.xlu0 %4044
      %4046 = vrot.lane.b32.xlu0 %v3122, 32
      %v4047 = vpop.permute.xlu0 %4046
      %4048 = vrot.lane.b32.xlu0 %v3125, 32
      %v4049 = vpop.permute.xlu0 %4048
      %4050 = vrot.lane.b32.xlu0 %v3127, 32
      %v4051 = vpop.permute.xlu0 %4050
      %4052 = vrot.lane.b32.xlu0 %v3130, 32
      %v4053 = vpop.permute.xlu0 %4052
      %4054 = vrot.lane.b32.xlu0 %v3132, 32
      %v4055 = vpop.permute.xlu0 %4054
      %4056 = vrot.lane.b32.xlu0 %v3135, 32
      %v4057 = vpop.permute.xlu0 %4056
      %4058 = vrot.lane.b32.xlu0 %v3137, 32
      %v4059 = vpop.permute.xlu0 %4058
      %4060 = vrot.lane.b32.xlu0 %v3140, 32
      %v4061 = vpop.permute.xlu0 %4060
      %4062 = vrot.lane.b32.xlu0 %v3142, 32
      %v4063 = vpop.permute.xlu0 %4062
      %4064 = vrot.lane.b32.xlu0 %v3145, 32
      %v4065 = vpop.permute.xlu0 %4064
      %4066 = vrot.lane.b32.xlu0 %v3147, 32
      %v4067 = vpop.permute.xlu0 %4066
      %4068 = vrot.lane.b32.xlu0 %v3150, 32
      %v4069 = vpop.permute.xlu0 %4068
      %4070 = vrot.lane.b32.xlu0 %v3152, 32
      %v4071 = vpop.permute.xlu0 %4070
      %4072 = vrot.lane.b32.xlu0 %v3155, 32
      %v4073 = vpop.permute.xlu0 %4072
      %4074 = vrot.lane.b32.xlu0 %v3157, 32
      %v4075 = vpop.permute.xlu0 %4074
      %4076 = vrot.lane.b32.xlu0 %v3160, 32
      %v4077 = vpop.permute.xlu0 %4076
      %4078 = vrot.lane.b32.xlu0 %v3162, 32
      %v4079 = vpop.permute.xlu0 %4078
      %4080 = vrot.lane.b32.xlu0 %v3165, 32
      %v4081 = vpop.permute.xlu0 %4080
      %4082 = vrot.lane.b32.xlu0 %v3167, 32
      %v4083 = vpop.permute.xlu0 %4082
      %4084 = vrot.lane.b32.xlu0 %v3170, 32
      %v4085 = vpop.permute.xlu0 %4084
      %4086 = vrot.lane.b32.xlu0 %v3172, 32
      %v4087 = vpop.permute.xlu0 %4086
      %4088 = vrot.lane.b32.xlu0 %v3175, 32
      %v4089 = vpop.permute.xlu0 %4088
      %4090 = vrot.lane.b32.xlu0 %v3177, 32
      %v4091 = vpop.permute.xlu0 %4090
      %4092 = vrot.lane.b32.xlu0 %v3180, 32
      %v4093 = vpop.permute.xlu0 %4092
      %4094 = vrot.lane.b32.xlu0 %v3182, 32
      %v4095 = vpop.permute.xlu0 %4094
      %4096 = vrot.lane.b32.xlu0 %v3185, 32
      %v4097 = vpop.permute.xlu0 %4096
      %4098 = vrot.lane.b32.xlu0 %v3187, 32
      %v4099 = vpop.permute.xlu0 %4098
      %4100 = vrot.lane.b32.xlu0 %v3190, 32
      %v4101 = vpop.permute.xlu0 %4100
      %4102 = vrot.lane.b32.xlu0 %v3192, 32
      %v4103 = vpop.permute.xlu0 %4102
      %4104 = vrot.lane.b32.xlu0 %v3195, 32
      %v4105 = vpop.permute.xlu0 %4104
      %4106 = vrot.lane.b32.xlu0 %v3197, 32
      %v4107 = vpop.permute.xlu0 %4106
      %4108 = vrot.lane.b32.xlu0 %v3200, 32
      %v4109 = vpop.permute.xlu0 %4108
      %4110 = vrot.lane.b32.xlu0 %v3202, 32
      %v4111 = vpop.permute.xlu0 %4110
      %4112 = vrot.lane.b32.xlu0 %v3609, 32
      %v4113 = vpop.permute.xlu0 %4112
      %4114 = vrot.lane.b32.xlu0 %v3611, 32
      %v4115 = vpop.permute.xlu0 %4114
      %4116 = vrot.lane.b32.xlu0 %v3047, 32
      %v4117 = vpop.permute.xlu0 %4116
      %v4119 = vsel %vm682, 0, %v2857
      %v4121 = vsel %vm682, %v2163, %v2859
      %v4123 = vsel %vm682, %v1631, %v2861
      %v4125 = vsel %vm682, %v2164, %v2863
      %v4127 = vsel %vm682, %v1646, %v2865
      %v4129 = vsel %vm682, %v2165, %v2867
      %v4131 = vsel %vm682, %v1661, %v2869
      %v4133 = vsel %vm682, %v2166, %v2871
      %v4135 = vsel %vm682, %v1676, %v2873
      %v4137 = vsel %vm682, %v2167, %v2875
      %v4139 = vsel %vm682, %v1691, %v2877
      %v4141 = vsel %vm682, %v2168, %v2879
      %v4143 = vsel %vm682, %v1706, %v2881
      %v4145 = vsel %vm682, %v2169, %v2883
      %v4147 = vsel %vm682, %v1721, %v2885
      %v4149 = vsel %vm682, %v2170, %v2887
      %v4151 = vsel %vm682, %v1736, %v2889
      %v4153 = vsel %vm682, %v2171, %v2891
      %v4155 = vsel %vm682, %v1751, %v2893
      %v4157 = vsel %vm682, %v2172, %v2895
      %v4159 = vsel %vm682, %v1766, %v2897
      %v4161 = vsel %vm682, %v2173, %v2899
      %v4163 = vsel %vm682, %v1781, %v2901
      %v4165 = vsel %vm682, %v2174, %v2903
      %v4167 = vsel %vm682, %v1796, %v2905
      %v4169 = vsel %vm682, %v2175, %v2907
      %v4171 = vsel %vm682, %v1811, %v2909
      %v4173 = vsel %vm682, %v2176, %v2911
      %v4175 = vsel %vm682, %v1826, %v2913
      %v4177 = vsel %vm682, %v2177, %v2915
      %v4179 = vsel %vm682, %v1841, %v2917
      %v4181 = vsel %vm682, %v2178, %v2919
      %v4183 = vsel %vm682, %v1856, %v2921
      %v4185 = vsel %vm682, %v2179, %v2923
      %v4187 = vsel %vm682, %v1871, %v2925
      %v4189 = vsel %vm682, %v2180, %v2927
      %v4191 = vsel %vm682, %v1886, %v2929
      %v4193 = vsel %vm682, %v2181, %v2931
      %v4195 = vsel %vm682, %v1901, %v2933
      %v4197 = vsel %vm682, %v2182, %v2935
      %v4199 = vsel %vm682, %v1916, %v2937
      %v4201 = vsel %vm682, %v2183, %v2939
      %v4203 = vsel %vm682, %v1931, %v2941
      %v4205 = vsel %vm682, %v2184, %v2943
      %v4207 = vsel %vm682, %v1946, %v2945
      %v4209 = vsel %vm682, %v2185, %v2947
      %v4211 = vsel %vm682, %v1961, %v2949
      %v4213 = vsel %vm682, %v2186, %v2951
      %v4215 = vsel %vm682, %v1976, %v2953
      %v4217 = vsel %vm682, %v2187, %v2955
      %v4219 = vsel %vm682, %v1991, %v2957
      %v4221 = vsel %vm682, %v2188, %v2959
      %v4223 = vsel %vm682, %v2006, %v2961
      %v4225 = vsel %vm682, %v2189, %v2963
      %v4227 = vsel %vm682, %v2021, %v2965
      %v4229 = vsel %vm682, %v2190, %v2967
      %v4231 = vsel %vm682, %v2036, %v2969
      %v4233 = vsel %vm682, %v2191, %v2971
      %v4235 = vsel %vm682, %v2051, %v2973
      %v4237 = vsel %vm682, %v2192, %v2975
      %v4239 = vsel %vm682, %v2066, %v2977
      %v4241 = vsel %vm682, %v2193, %v2979
      %v4243 = vsel %vm682, %v2081, %v2981
      %vm4244 = vcmask 64512
      %v4246 = vsel %vm4244, %v4119, %v3204
      %v4248 = vsel %vm4244, %v4121, %v3206
      %v4250 = vsel %vm4244, %v4123, %v3208
      %v4252 = vsel %vm4244, %v4125, %v3210
      %v4254 = vsel %vm4244, %v4127, %v3212
      %v4256 = vsel %vm4244, %v4129, %v3214
      %v4258 = vsel %vm4244, %v4131, %v3216
      %v4260 = vsel %vm4244, %v4133, %v3218
      %v4262 = vsel %vm4244, %v4135, %v3220
      %v4264 = vsel %vm4244, %v4137, %v3222
      %v4266 = vsel %vm4244, %v4139, %v3224
      %v4268 = vsel %vm4244, %v4141, %v3226
      %v4270 = vsel %vm4244, %v4143, %v3228
      %v4272 = vsel %vm4244, %v4145, %v3230
      %v4274 = vsel %vm4244, %v4147, %v3232
      %v4276 = vsel %vm4244, %v4149, %v3234
      %v4278 = vsel %vm4244, %v4151, %v3236
      %v4280 = vsel %vm4244, %v4153, %v3238
      %v4282 = vsel %vm4244, %v4155, %v3240
      %v4284 = vsel %vm4244, %v4157, %v3242
      %v4286 = vsel %vm4244, %v4159, %v3244
      %v4288 = vsel %vm4244, %v4161, %v3246
      %v4290 = vsel %vm4244, %v4163, %v3248
      %v4292 = vsel %vm4244, %v4165, %v3250
      %v4294 = vsel %vm4244, %v4167, %v3252
      %v4296 = vsel %vm4244, %v4169, %v3254
      %v4298 = vsel %vm4244, %v4171, %v3256
      %v4300 = vsel %vm4244, %v4173, %v3258
      %v4302 = vsel %vm4244, %v4175, %v3260
      %v4304 = vsel %vm4244, %v4177, %v3262
      %v4306 = vsel %vm4244, %v4179, %v3264
      %v4308 = vsel %vm4244, %v4181, %v3266
      %v4310 = vsel %vm4244, %v4183, %v3268
      %v4312 = vsel %vm4244, %v4185, %v3270
      %v4314 = vsel %vm4244, %v4187, %v3272
      %v4316 = vsel %vm4244, %v4189, %v3274
      %v4318 = vsel %vm4244, %v4191, %v3276
      %v4320 = vsel %vm4244, %v4193, %v3278
      %v4322 = vsel %vm4244, %v4195, %v3280
      %v4324 = vsel %vm4244, %v4197, %v3282
      %v4326 = vsel %vm4244, %v4199, %v3284
      %v4328 = vsel %vm4244, %v4201, %v3286
      %v4330 = vsel %vm4244, %v4203, %v3288
      %v4332 = vsel %vm4244, %v4205, %v3290
      %v4334 = vsel %vm4244, %v4207, %v3292
      %v4336 = vsel %vm4244, %v4209, %v3294
      %v4338 = vsel %vm4244, %v4211, %v3296
      %v4340 = vsel %vm4244, %v4213, %v3298
      %v4342 = vsel %vm4244, %v4215, %v3300
      %v4344 = vsel %vm4244, %v4217, %v3302
      %v4346 = vsel %vm4244, %v4219, %v3304
      %v4348 = vsel %vm4244, %v4221, %v3306
      %v4350 = vsel %vm4244, %v4223, %v3308
      %v4352 = vsel %vm4244, %v4225, %v3310
      %v4354 = vsel %vm4244, %v4227, %v3312
      %v4356 = vsel %vm4244, %v4229, %v3314
      %v4358 = vsel %vm4244, %v4231, %v3316
      %v4360 = vsel %vm4244, %v4233, %v3318
      %v4362 = vsel %vm4244, %v4235, %v3320
      %v4364 = vsel %vm4244, %v4237, %v3322
      %v4366 = vsel %vm4244, %v4239, %v3324
      %v4368 = vsel %vm4244, %v4241, %v3326
      %v4370 = vsel %vm4244, %v4243, %v3328
      %vm4371 = vcmask 97280
      %v4373 = vsel %vm4371, %v4246, %v3331
      %v4375 = vsel %vm4371, %v4246, %v3333
      %v4377 = vsel %vm4371, %v4248, %v3335
      %v4379 = vsel %vm4371, %v4250, %v3337
      %v4381 = vsel %vm4371, %v4252, %v3339
      %v4383 = vsel %vm4371, %v4254, %v3341
      %v4385 = vsel %vm4371, %v4256, %v3343
      %v4387 = vsel %vm4371, %v4258, %v3345
      %v4389 = vsel %vm4371, %v4260, %v3347
      %v4391 = vsel %vm4371, %v4262, %v3349
      %v4393 = vsel %vm4371, %v4264, %v3351
      %v4395 = vsel %vm4371, %v4266, %v3353
      %v4397 = vsel %vm4371, %v4268, %v3355
      %v4399 = vsel %vm4371, %v4270, %v3357
      %v4401 = vsel %vm4371, %v4272, %v3359
      %v4403 = vsel %vm4371, %v4274, %v3361
      %v4405 = vsel %vm4371, %v4276, %v3363
      %v4407 = vsel %vm4371, %v4278, %v3365
      %v4409 = vsel %vm4371, %v4280, %v3367
      %v4411 = vsel %vm4371, %v4282, %v3369
      %v4413 = vsel %vm4371, %v4284, %v3371
      %v4415 = vsel %vm4371, %v4286, %v3373
      %v4417 = vsel %vm4371, %v4288, %v3375
      %v4419 = vsel %vm4371, %v4290, %v3377
      %v4421 = vsel %vm4371, %v4292, %v3379
      %v4423 = vsel %vm4371, %v4294, %v3381
      %v4425 = vsel %vm4371, %v4296, %v3383
      %v4427 = vsel %vm4371, %v4298, %v3385
      %v4429 = vsel %vm4371, %v4300, %v3387
      %v4431 = vsel %vm4371, %v4302, %v3389
      %v4433 = vsel %vm4371, %v4304, %v3391
      %v4435 = vsel %vm4371, %v4306, %v3393
      %v4437 = vsel %vm4371, %v4308, %v3395
      %v4439 = vsel %vm4371, %v4310, %v3397
      %v4441 = vsel %vm4371, %v4312, %v3399
      %v4443 = vsel %vm4371, %v4314, %v3401
      %v4445 = vsel %vm4371, %v4316, %v3403
      %v4447 = vsel %vm4371, %v4318, %v3405
      %v4449 = vsel %vm4371, %v4320, %v3407
      %v4451 = vsel %vm4371, %v4322, %v3409
      %v4453 = vsel %vm4371, %v4324, %v3411
      %v4455 = vsel %vm4371, %v4326, %v3413
      %v4457 = vsel %vm4371, %v4328, %v3415
      %v4459 = vsel %vm4371, %v4330, %v3417
      %v4461 = vsel %vm4371, %v4332, %v3419
      %v4463 = vsel %vm4371, %v4334, %v3421
      %v4465 = vsel %vm4371, %v4336, %v3423
      %v4467 = vsel %vm4371, %v4338, %v3425
      %v4469 = vsel %vm4371, %v4340, %v3427
      %v4471 = vsel %vm4371, %v4342, %v3429
      %v4473 = vsel %vm4371, %v4344, %v3431
      %v4475 = vsel %vm4371, %v4346, %v3433
      %v4477 = vsel %vm4371, %v4348, %v3435
      %v4479 = vsel %vm4371, %v4350, %v3437
      %v4481 = vsel %vm4371, %v4352, %v3439
      %v4483 = vsel %vm4371, %v4354, %v3441
      %v4485 = vsel %vm4371, %v4356, %v3443
      %v4487 = vsel %vm4371, %v4358, %v3445
      %v4489 = vsel %vm4371, %v4360, %v3447
      %v4491 = vsel %vm4371, %v4362, %v3449
      %v4493 = vsel %vm4371, %v4364, %v3451
      %v4495 = vsel %vm4371, %v4366, %v3453
      %v4497 = vsel %vm4371, %v4368, %v3455
      %v4499 = vsel %vm4371, %v4370, %v3457
      %vm4500 = vcmask 130048
      %v4502 = vsel %vm4500, %v4373, %v3479
      %v4504 = vsel %vm4500, %v4375, %v3481
      %v4506 = vsel %vm4500, %v4377, %v3483
      %v4508 = vsel %vm4500, %v4379, %v3485
      %v4510 = vsel %vm4500, %v4381, %v3487
      %v4512 = vsel %vm4500, %v4383, %v3489
      %v4514 = vsel %vm4500, %v4385, %v3491
      %v4516 = vsel %vm4500, %v4387, %v3493
      %v4518 = vsel %vm4500, %v4389, %v3495
      %v4520 = vsel %vm4500, %v4391, %v3497
      %v4522 = vsel %vm4500, %v4393, %v3499
      %v4524 = vsel %vm4500, %v4395, %v3501
      %v4526 = vsel %vm4500, %v4397, %v3503
      %v4528 = vsel %vm4500, %v4399, %v3505
      %v4530 = vsel %vm4500, %v4401, %v3507
      %v4532 = vsel %vm4500, %v4403, %v3509
      %v4534 = vsel %vm4500, %v4405, %v3511
      %v4536 = vsel %vm4500, %v4407, %v3513
      %v4538 = vsel %vm4500, %v4409, %v3515
      %v4540 = vsel %vm4500, %v4411, %v3517
      %v4542 = vsel %vm4500, %v4413, %v3519
      %v4544 = vsel %vm4500, %v4415, %v3521
      %v4546 = vsel %vm4500, %v4417, %v3523
      %v4548 = vsel %vm4500, %v4419, %v3525
      %v4550 = vsel %vm4500, %v4421, %v3527
      %v4552 = vsel %vm4500, %v4423, %v3529
      %v4554 = vsel %vm4500, %v4425, %v3531
      %v4556 = vsel %vm4500, %v4427, %v3533
      %v4558 = vsel %vm4500, %v4429, %v3535
      %v4560 = vsel %vm4500, %v4431, %v3537
      %v4562 = vsel %vm4500, %v4433, %v3539
      %v4564 = vsel %vm4500, %v4435, %v3541
      %v4566 = vsel %vm4500, %v4437, %v3543
      %v4568 = vsel %vm4500, %v4439, %v3545
      %v4570 = vsel %vm4500, %v4441, %v3547
      %v4572 = vsel %vm4500, %v4443, %v3549
      %v4574 = vsel %vm4500, %v4445, %v3551
      %v4576 = vsel %vm4500, %v4447, %v3553
      %v4578 = vsel %vm4500, %v4449, %v3555
      %v4580 = vsel %vm4500, %v4451, %v3557
      %v4582 = vsel %vm4500, %v4453, %v3559
      %v4584 = vsel %vm4500, %v4455, %v3561
      %v4586 = vsel %vm4500, %v4457, %v3563
      %v4588 = vsel %vm4500, %v4459, %v3565
      %v4590 = vsel %vm4500, %v4461, %v3567
      %v4592 = vsel %vm4500, %v4463, %v3569
      %v4594 = vsel %vm4500, %v4465, %v3571
      %v4596 = vsel %vm4500, %v4467, %v3573
      %v4598 = vsel %vm4500, %v4469, %v3575
      %v4600 = vsel %vm4500, %v4471, %v3577
      %v4602 = vsel %vm4500, %v4473, %v3579
      %v4604 = vsel %vm4500, %v4475, %v3581
      %v4606 = vsel %vm4500, %v4477, %v3583
      %v4608 = vsel %vm4500, %v4479, %v3585
      %v4610 = vsel %vm4500, %v4481, %v3587
      %v4612 = vsel %vm4500, %v4483, %v3589
      %v4614 = vsel %vm4500, %v4485, %v3591
      %v4616 = vsel %vm4500, %v4487, %v3593
      %v4618 = vsel %vm4500, %v4489, %v3595
      %v4620 = vsel %vm4500, %v4491, %v3597
      %v4622 = vsel %vm4500, %v4493, %v3599
      %v4624 = vsel %vm4500, %v4495, %v3601
      %v4626 = vsel %vm4500, %v4497, %v3603
      %v4628 = vsel %vm4500, %v4499, %v3605
      %vm4629 = vcmask 162816
      %v4631 = vsel %vm4629, %v4502, %v3613
      %v4633 = vsel %vm4629, %v4504, %v3615
      %v4635 = vsel %vm4629, %v4506, %v3617
      %v4637 = vsel %vm4629, %v4508, %v3619
      %v4639 = vsel %vm4629, %v4510, %v3621
      %v4641 = vsel %vm4629, %v4512, %v3623
      %v4643 = vsel %vm4629, %v4514, %v3625
      %v4645 = vsel %vm4629, %v4516, %v3627
      %v4647 = vsel %vm4629, %v4518, %v3629
      %v4649 = vsel %vm4629, %v4520, %v3631
      %v4651 = vsel %vm4629, %v4522, %v3633
      %v4653 = vsel %vm4629, %v4524, %v3635
      %v4655 = vsel %vm4629, %v4526, %v3637
      %v4657 = vsel %vm4629, %v4528, %v3639
      %v4659 = vsel %vm4629, %v4530, %v3641
      %v4661 = vsel %vm4629, %v4532, %v3643
      %v4663 = vsel %vm4629, %v4534, %v3645
      %v4665 = vsel %vm4629, %v4536, %v3647
      %v4667 = vsel %vm4629, %v4538, %v3649
      %v4669 = vsel %vm4629, %v4540, %v3651
      %v4671 = vsel %vm4629, %v4542, %v3653
      %v4673 = vsel %vm4629, %v4544, %v3655
      %v4675 = vsel %vm4629, %v4546, %v3657
      %v4677 = vsel %vm4629, %v4548, %v3659
      %v4679 = vsel %vm4629, %v4550, %v3661
      %v4681 = vsel %vm4629, %v4552, %v3663
      %v4683 = vsel %vm4629, %v4554, %v3665
      %v4685 = vsel %vm4629, %v4556, %v3667
      %v4687 = vsel %vm4629, %v4558, %v3669
      %v4689 = vsel %vm4629, %v4560, %v3671
      %v4691 = vsel %vm4629, %v4562, %v3673
      %v4693 = vsel %vm4629, %v4564, %v3675
      %v4695 = vsel %vm4629, %v4566, %v3677
      %v4697 = vsel %vm4629, %v4568, %v3679
      %v4699 = vsel %vm4629, %v4570, %v3681
      %v4701 = vsel %vm4629, %v4572, %v3683
      %v4703 = vsel %vm4629, %v4574, %v3685
      %v4705 = vsel %vm4629, %v4576, %v3687
      %v4707 = vsel %vm4629, %v4578, %v3689
      %v4709 = vsel %vm4629, %v4580, %v3691
      %v4711 = vsel %vm4629, %v4582, %v3693
      %v4713 = vsel %vm4629, %v4584, %v3695
      %v4715 = vsel %vm4629, %v4586, %v3697
      %v4717 = vsel %vm4629, %v4588, %v3699
      %v4719 = vsel %vm4629, %v4590, %v3701
      %v4721 = vsel %vm4629, %v4592, %v3703
      %v4723 = vsel %vm4629, %v4594, %v3705
      %v4725 = vsel %vm4629, %v4596, %v3707
      %v4727 = vsel %vm4629, %v4598, %v3709
      %v4729 = vsel %vm4629, %v4600, %v3711
      %v4731 = vsel %vm4629, %v4602, %v3713
      %v4733 = vsel %vm4629, %v4604, %v3715
      %v4735 = vsel %vm4629, %v4606, %v3717
      %v4737 = vsel %vm4629, %v4608, %v3719
      %v4739 = vsel %vm4629, %v4610, %v3721
      %v4741 = vsel %vm4629, %v4612, %v3723
      %v4743 = vsel %vm4629, %v4614, %v3725
      %v4745 = vsel %vm4629, %v4616, %v3727
      %v4747 = vsel %vm4629, %v4618, %v3729
      %v4749 = vsel %vm4629, %v4620, %v3731
      %v4751 = vsel %vm4629, %v4622, %v3733
      %v4753 = vsel %vm4629, %v4624, %v3735
      %v4755 = vsel %vm4629, %v4626, %v3737
      %v4757 = vsel %vm4629, %v4628, %v3739
      %vm4758 = vcmask 195584
      %v4760 = vsel %vm4758, %v4631, %v3741
      %v4762 = vsel %vm4758, %v4633, %v3743
      %v4764 = vsel %vm4758, %v4635, %v3745
      %v4766 = vsel %vm4758, %v4637, %v3747
      %v4768 = vsel %vm4758, %v4639, %v3749
      %v4770 = vsel %vm4758, %v4641, %v3751
      %v4772 = vsel %vm4758, %v4643, %v3753
      %v4774 = vsel %vm4758, %v4645, %v3755
      %v4776 = vsel %vm4758, %v4647, %v3757
      %v4778 = vsel %vm4758, %v4649, %v3759
      %v4780 = vsel %vm4758, %v4651, %v3761
      %v4782 = vsel %vm4758, %v4653, %v3763
      %v4784 = vsel %vm4758, %v4655, %v3765
      %v4786 = vsel %vm4758, %v4657, %v3767
      %v4788 = vsel %vm4758, %v4659, %v3769
      %v4790 = vsel %vm4758, %v4661, %v3771
      %v4792 = vsel %vm4758, %v4663, %v3773
      %v4794 = vsel %vm4758, %v4665, %v3775
      %v4796 = vsel %vm4758, %v4667, %v3777
      %v4798 = vsel %vm4758, %v4669, %v3779
      %v4800 = vsel %vm4758, %v4671, %v3781
      %v4802 = vsel %vm4758, %v4673, %v3783
      %v4804 = vsel %vm4758, %v4675, %v3785
      %v4806 = vsel %vm4758, %v4677, %v3787
      %v4808 = vsel %vm4758, %v4679, %v3789
      %v4810 = vsel %vm4758, %v4681, %v3791
      %v4812 = vsel %vm4758, %v4683, %v3793
      %v4814 = vsel %vm4758, %v4685, %v3795
      %v4816 = vsel %vm4758, %v4687, %v3797
      %v4818 = vsel %vm4758, %v4689, %v3799
      %v4820 = vsel %vm4758, %v4691, %v3801
      %v4822 = vsel %vm4758, %v4693, %v3803
      %v4824 = vsel %vm4758, %v4695, %v3805
      %v4826 = vsel %vm4758, %v4697, %v3807
      %v4828 = vsel %vm4758, %v4699, %v3809
      %v4830 = vsel %vm4758, %v4701, %v3811
      %v4832 = vsel %vm4758, %v4703, %v3813
      %v4834 = vsel %vm4758, %v4705, %v3815
      %v4836 = vsel %vm4758, %v4707, %v3817
      %v4838 = vsel %vm4758, %v4709, %v3819
      %v4840 = vsel %vm4758, %v4711, %v3821
      %v4842 = vsel %vm4758, %v4713, %v3823
      %v4844 = vsel %vm4758, %v4715, %v3825
      %v4846 = vsel %vm4758, %v4717, %v3827
      %v4848 = vsel %vm4758, %v4719, %v3829
      %v4850 = vsel %vm4758, %v4721, %v3831
      %v4852 = vsel %vm4758, %v4723, %v3833
      %v4854 = vsel %vm4758, %v4725, %v3835
      %v4856 = vsel %vm4758, %v4727, %v3837
      %v4858 = vsel %vm4758, %v4729, %v3839
      %v4860 = vsel %vm4758, %v4731, %v3841
      %v4862 = vsel %vm4758, %v4733, %v3843
      %v4864 = vsel %vm4758, %v4735, %v3845
      %v4866 = vsel %vm4758, %v4737, %v3847
      %v4868 = vsel %vm4758, %v4739, %v3849
      %v4870 = vsel %vm4758, %v4741, %v3851
      %v4872 = vsel %vm4758, %v4743, %v3853
      %v4874 = vsel %vm4758, %v4745, %v3855
      %v4876 = vsel %vm4758, %v4747, %v3857
      %v4878 = vsel %vm4758, %v4749, %v3859
      %v4880 = vsel %vm4758, %v4751, %v3861
      %v4882 = vsel %vm4758, %v4753, %v3863
      %v4884 = vsel %vm4758, %v4755, %v3865
      %v4885 = vsel %vm4758, %v4757, %v3865
      %vm4886 = vcmask 228352
      %v4888 = vsel %vm4886, %v4760, %v3867
      %v4890 = vsel %vm4886, %v4762, %v3869
      %v4892 = vsel %vm4886, %v4764, %v3871
      %v4894 = vsel %vm4886, %v4766, %v3873
      %v4896 = vsel %vm4886, %v4768, %v3875
      %v4898 = vsel %vm4886, %v4770, %v3877
      %v4900 = vsel %vm4886, %v4772, %v3879
      %v4902 = vsel %vm4886, %v4774, %v3881
      %v4904 = vsel %vm4886, %v4776, %v3883
      %v4906 = vsel %vm4886, %v4778, %v3885
      %v4908 = vsel %vm4886, %v4780, %v3887
      %v4910 = vsel %vm4886, %v4782, %v3889
      %v4912 = vsel %vm4886, %v4784, %v3891
      %v4914 = vsel %vm4886, %v4786, %v3893
      %v4916 = vsel %vm4886, %v4788, %v3895
      %v4918 = vsel %vm4886, %v4790, %v3897
      %v4920 = vsel %vm4886, %v4792, %v3899
      %v4922 = vsel %vm4886, %v4794, %v3901
      %v4924 = vsel %vm4886, %v4796, %v3903
      %v4926 = vsel %vm4886, %v4798, %v3905
      %v4928 = vsel %vm4886, %v4800, %v3907
      %v4930 = vsel %vm4886, %v4802, %v3909
      %v4932 = vsel %vm4886, %v4804, %v3911
      %v4934 = vsel %vm4886, %v4806, %v3913
      %v4936 = vsel %vm4886, %v4808, %v3915
      %v4938 = vsel %vm4886, %v4810, %v3917
      %v4940 = vsel %vm4886, %v4812, %v3919
      %v4942 = vsel %vm4886, %v4814, %v3921
      %v4944 = vsel %vm4886, %v4816, %v3923
      %v4946 = vsel %vm4886, %v4818, %v3925
      %v4948 = vsel %vm4886, %v4820, %v3927
      %v4950 = vsel %vm4886, %v4822, %v3929
      %v4952 = vsel %vm4886, %v4824, %v3931
      %v4954 = vsel %vm4886, %v4826, %v3933
      %v4956 = vsel %vm4886, %v4828, %v3935
      %v4958 = vsel %vm4886, %v4830, %v3937
      %v4960 = vsel %vm4886, %v4832, %v3939
      %v4962 = vsel %vm4886, %v4834, %v3941
      %v4964 = vsel %vm4886, %v4836, %v3943
      %v4966 = vsel %vm4886, %v4838, %v3945
      %v4968 = vsel %vm4886, %v4840, %v3947
      %v4970 = vsel %vm4886, %v4842, %v3949
      %v4972 = vsel %vm4886, %v4844, %v3951
      %v4974 = vsel %vm4886, %v4846, %v3953
      %v4976 = vsel %vm4886, %v4848, %v3955
      %v4978 = vsel %vm4886, %v4850, %v3957
      %v4980 = vsel %vm4886, %v4852, %v3959
      %v4982 = vsel %vm4886, %v4854, %v3961
      %v4984 = vsel %vm4886, %v4856, %v3963
      %v4986 = vsel %vm4886, %v4858, %v3965
      %v4988 = vsel %vm4886, %v4860, %v3967
      %v4990 = vsel %vm4886, %v4862, %v3969
      %v4992 = vsel %vm4886, %v4864, %v3971
      %v4994 = vsel %vm4886, %v4866, %v3973
      %v4996 = vsel %vm4886, %v4868, %v3975
      %v4998 = vsel %vm4886, %v4870, %v3977
      %v5000 = vsel %vm4886, %v4872, %v3979
      %v5002 = vsel %vm4886, %v4874, %v3981
      %v5004 = vsel %vm4886, %v4876, %v3983
      %v5006 = vsel %vm4886, %v4878, %v3985
      %v5008 = vsel %vm4886, %v4880, %v3987
      %v5010 = vsel %vm4886, %v4882, %v3989
      %v5012 = vsel %vm4886, %v4884, %v3991
      %v5013 = vsel %vm4886, %v4885, %v3991
      %vm5014 = vcmask 261120
      %v5016 = vsel %vm5014, %v4888, %v3993
      %v5018 = vsel %vm5014, %v4890, %v3995
      %v5020 = vsel %vm5014, %v4892, %v3997
      %v5022 = vsel %vm5014, %v4894, %v3999
      %v5024 = vsel %vm5014, %v4896, %v4001
      %v5026 = vsel %vm5014, %v4898, %v4003
      %v5028 = vsel %vm5014, %v4900, %v4005
      %v5030 = vsel %vm5014, %v4902, %v4007
      %v5032 = vsel %vm5014, %v4904, %v4009
      %v5034 = vsel %vm5014, %v4906, %v4011
      %v5036 = vsel %vm5014, %v4908, %v4013
      %v5038 = vsel %vm5014, %v4910, %v4015
      %v5040 = vsel %vm5014, %v4912, %v4017
      %v5042 = vsel %vm5014, %v4914, %v4019
      %v5044 = vsel %vm5014, %v4916, %v4021
      %v5046 = vsel %vm5014, %v4918, %v4023
      %v5048 = vsel %vm5014, %v4920, %v4025
      %v5050 = vsel %vm5014, %v4922, %v4027
      %v5052 = vsel %vm5014, %v4924, %v4029
      %v5054 = vsel %vm5014, %v4926, %v4031
      %v5056 = vsel %vm5014, %v4928, %v4033
      %v5058 = vsel %vm5014, %v4930, %v4035
      %v5060 = vsel %vm5014, %v4932, %v4037
      %v5062 = vsel %vm5014, %v4934, %v4039
      %v5064 = vsel %vm5014, %v4936, %v4041
      %v5066 = vsel %vm5014, %v4938, %v4043
      %v5068 = vsel %vm5014, %v4940, %v4045
      %v5070 = vsel %vm5014, %v4942, %v4047
      %v5072 = vsel %vm5014, %v4944, %v4049
      %v5074 = vsel %vm5014, %v4946, %v4051
      %v5076 = vsel %vm5014, %v4948, %v4053
      %v5078 = vsel %vm5014, %v4950, %v4055
      %v5080 = vsel %vm5014, %v4952, %v4057
      %v5082 = vsel %vm5014, %v4954, %v4059
      %v5084 = vsel %vm5014, %v4956, %v4061
      %v5086 = vsel %vm5014, %v4958, %v4063
      %v5088 = vsel %vm5014, %v4960, %v4065
      %v5090 = vsel %vm5014, %v4962, %v4067
      %v5092 = vsel %vm5014, %v4964, %v4069
      %v5094 = vsel %vm5014, %v4966, %v4071
      %v5096 = vsel %vm5014, %v4968, %v4073
      %v5098 = vsel %vm5014, %v4970, %v4075
      %v5100 = vsel %vm5014, %v4972, %v4077
      %v5102 = vsel %vm5014, %v4974, %v4079
      %v5104 = vsel %vm5014, %v4976, %v4081
      %v5106 = vsel %vm5014, %v4978, %v4083
      %v5108 = vsel %vm5014, %v4980, %v4085
      %v5110 = vsel %vm5014, %v4982, %v4087
      %v5112 = vsel %vm5014, %v4984, %v4089
      %v5114 = vsel %vm5014, %v4986, %v4091
      %v5116 = vsel %vm5014, %v4988, %v4093
      %v5118 = vsel %vm5014, %v4990, %v4095
      %v5120 = vsel %vm5014, %v4992, %v4097
      %v5122 = vsel %vm5014, %v4994, %v4099
      %v5124 = vsel %vm5014, %v4996, %v4101
      %v5126 = vsel %vm5014, %v4998, %v4103
      %v5128 = vsel %vm5014, %v5000, %v4105
      %v5130 = vsel %vm5014, %v5002, %v4107
      %v5132 = vsel %vm5014, %v5004, %v4109
      %v5134 = vsel %vm5014, %v5006, %v4111
      %v5136 = vsel %vm5014, %v5008, %v4113
      %v5138 = vsel %vm5014, %v5010, %v4115
      %v5140 = vsel %vm5014, %v5012, %v4117
      %v5141 = vsel %vm5014, %v5013, %v4117
      %v5142 = vld [vmem:[%s3] sm:$0xf]
      %v5143 = vld [vmem:[%s3 + $0x4] sm:$0xf]
      %v5144 = vld [vmem:[%s3 + $0x8] sm:$0xf]
      %v5145 = vld [vmem:[%s3 + $0xc] sm:$0xf]
      %v5146 = vld [vmem:[%s3 + $0x10] sm:$0x3]
      %v5147 = vld [vmem:[%s4] sm:$0x1]
      %v5149 = vlaneseq
      %v5150 = vshrl.u32 %v5149, 7
      %v5151 = vsub.s32 0, %v5150
      %v5152 = vrot.slane %v5147, %v5151
      %v5159 = vunpack.c.l.b16 %v5142
      %v5160 = vunpack.c.l.b16 %v5143
      %v5161 = vunpack.c.l.b16 %v5144
      %v5162 = vunpack.c.l.b16 %v5145
      %v5163 = vunpack.c.l.b16 %v5146
      %v5164 = vpack.c.b16 %v5160, %v5159
      %v5165 = vpack.c.b16 %v5162, %v5161
      %v5166 = vpack.c.b16 %v5163, %v5163
      %vm5169 = vcmask 293888
      %v5170 = vsel %vm5169, %v5016, 0
      %v5172 = vsel %vm5169, %v5018, 0
      %v5174 = vsel %vm5169, %v5020, 0
      %v5176 = vsel %vm5169, %v5022, 0
      %v5178 = vsel %vm5169, %v5024, 0
      %v5180 = vsel %vm5169, %v5026, 0
      %v5182 = vsel %vm5169, %v5028, 0
      %v5184 = vsel %vm5169, %v5030, 0
      %v5186 = vsel %vm5169, %v5032, 0
      %v5188 = vsel %vm5169, %v5034, 0
      %v5190 = vsel %vm5169, %v5036, 0
      %v5192 = vsel %vm5169, %v5038, 0
      %v5194 = vsel %vm5169, %v5040, 0
      %v5196 = vsel %vm5169, %v5042, 0
      %v5198 = vsel %vm5169, %v5044, 0
      %v5200 = vsel %vm5169, %v5046, 0
      %v5202 = vsel %vm5169, %v5048, 0
      %v5204 = vsel %vm5169, %v5050, 0
      %v5206 = vsel %vm5169, %v5052, 0
      %v5208 = vsel %vm5169, %v5054, 0
      %v5210 = vsel %vm5169, %v5056, 0
      %v5212 = vsel %vm5169, %v5058, 0
      %v5214 = vsel %vm5169, %v5060, 0
      %v5216 = vsel %vm5169, %v5062, 0
      %v5218 = vsel %vm5169, %v5064, 0
      %v5220 = vsel %vm5169, %v5066, 0
      %v5222 = vsel %vm5169, %v5068, 0
      %v5224 = vsel %vm5169, %v5070, 0
      %v5226 = vsel %vm5169, %v5072, 0
      %v5228 = vsel %vm5169, %v5074, 0
      %v5230 = vsel %vm5169, %v5076, 0
      %v5232 = vsel %vm5169, %v5078, 0
      %v5234 = vsel %vm5169, %v5080, 0
      %v5236 = vsel %vm5169, %v5082, 0
      %v5238 = vsel %vm5169, %v5084, 0
      %v5240 = vsel %vm5169, %v5086, 0
      %v5242 = vsel %vm5169, %v5088, 0
      %v5244 = vsel %vm5169, %v5090, 0
      %v5246 = vsel %vm5169, %v5092, 0
      %v5248 = vsel %vm5169, %v5094, 0
      %v5250 = vsel %vm5169, %v5096, 0
      %v5252 = vsel %vm5169, %v5098, 0
      %v5254 = vsel %vm5169, %v5100, 0
      %v5256 = vsel %vm5169, %v5102, 0
      %v5258 = vsel %vm5169, %v5104, 0
      %v5260 = vsel %vm5169, %v5106, 0
      %v5262 = vsel %vm5169, %v5108, 0
      %v5264 = vsel %vm5169, %v5110, 0
      %v5266 = vsel %vm5169, %v5112, 0
      %v5268 = vsel %vm5169, %v5114, 0
      %v5270 = vsel %vm5169, %v5116, 0
      %v5272 = vsel %vm5169, %v5118, 0
      %v5274 = vsel %vm5169, %v5120, 0
      %v5276 = vsel %vm5169, %v5122, 0
      %v5278 = vsel %vm5169, %v5124, 0
      %v5280 = vsel %vm5169, %v5126, 0
      %v5282 = vsel %vm5169, %v5128, 0
      %v5284 = vsel %vm5169, %v5130, 0
      %v5286 = vsel %vm5169, %v5132, 0
      %v5288 = vsel %vm5169, %v5134, 0
      %v5290 = vsel %vm5169, %v5136, 0
      %v5292 = vsel %vm5169, %v5138, 0
      %v5294 = vsel %vm5169, %v5140, 0
      %v5296 = vsel %vm5169, %v5141, 0
      %v5299 = vsel %vm875, %v5166, 0
      %5301 = vmatprep.subr.bf16.mxu0 0
      %5302 = vmatpush1.bf16.msra.mxu0 %v5164
      %5303 = vmatprep.subr.bf16.mxu0 0
      %5304 = vmatpush1.bf16.msra.mxu0 %v5165
      %5305 = vmatprep.subr.bf16.mxu0 0
      %5306 = vmatpush1.bf16.msra.mxu0 %v5299
      %5307 = vmatprep.subr.bf16.mxu0 0
      %5308 = vmatpush1.bf16.msra.mxu0 0
      %5309 = vmatprep.subr.bf16.mxu0 0
      %5310 = vmatpush1.bf16.msra.mxu0 0
      %5311 = vmatprep.subr.bf16.mxu0 0
      %5312 = vmatpush1.bf16.msra.mxu0 0
      %5313 = vmatprep.subr.bf16.mxu0 0
      %5314 = vmatpush1.bf16.msra.mxu0 0
      %5315 = vmatprep.subr.bf16.mxu0 0
      %5316 = vmatpush1.bf16.msra.mxu0 0
      %5317 = vmatprep.subr.bf16.mxu0 0
      %5318 = vmatpush1.bf16.msra.mxu0 0
      %5319 = vmatprep.subr.bf16.mxu0 0
      %5320 = vmatpush1.bf16.msra.mxu0 0
      %5321 = vmatprep.subr.bf16.mxu0 0
      %5322 = vmatpush1.bf16.msra.mxu0 0
      %5323 = vmatprep.subr.bf16.mxu0 0
      %5324 = vmatpush1.bf16.msra.mxu0 0
      %5325 = vmatprep.subr.bf16.mxu0 0
      %5326 = vmatpush1.bf16.msra.mxu0 0
      %5327 = vmatprep.subr.bf16.mxu0 0
      %5328 = vmatpush1.bf16.msra.mxu0 0
      %5329 = vmatprep.subr.bf16.mxu0 0
      %5330 = vmatpush1.bf16.msra.mxu0 0
      %5331 = vmatprep.subr.bf16.mxu0 0
      %5332 = vmatpush1.bf16.msra.mxu0 0
      %5333 = vmatprep.mubr.bf16.mxu0 0
      %5334 = vmatmul.mubr.bf16.gmra.mrb[0].mxu0 %v5170
      %v5335 = vpop.f32.mrb[0].mxu0
      %v5336 = vadd.f32 %v5152, %v5335
      %v5337 = vpop.f32.mrb[0].mxu0
      %v5338 = vpop.f32.mrb[0].mxu0
      %v5339 = vadd.f32 %v5152, %v5338
      %v5340 = vpop.f32.mrb[0].mxu0
      %5341 = vmatprep.mubr.bf16.mxu0 0
      %5342 = vmatmul.mubr.bf16.gmra.mrb[0].mxu0 %v5172
      %v5343 = vpop.f32.mrb[0].mxu0
      %v5344 = vadd.f32 %v5152, %v5343
      %v5345 = vpop.f32.mrb[0].mxu0
      %v5346 = vpop.f32.mrb[0].mxu0
      %v5347 = vadd.f32 %v5152, %v5346
      %v5348 = vpop.f32.mrb[0].mxu0
      %5349 = vmatprep.mubr.bf16.mxu0 0
      %5350 = vmatmul.mubr.bf16.gmra.mrb[0].mxu0 %v5174
      %v5351 = vpop.f32.mrb[0].mxu0
      %v5352 = vadd.f32 %v5152, %v5351
      %v5353 = vpop.f32.mrb[0].mxu0
      %v5354 = vpop.f32.mrb[0].mxu0
      %v5355 = vadd.f32 %v5152, %v5354
      %v5356 = vpop.f32.mrb[0].mxu0
      %5357 = vmatprep.mubr.bf16.mxu0 0
      %5358 = vmatmul.mubr.bf16.gmra.mrb[0].mxu0 %v5176
      %v5359 = vpop.f32.mrb[0].mxu0
      %v5360 = vadd.f32 %v5152, %v5359
      %v5361 = vpop.f32.mrb[0].mxu0
      %v5362 = vpop.f32.mrb[0].mxu0
      %v5363 = vadd.f32 %v5152, %v5362
      %v5364 = vpop.f32.mrb[0].mxu0
      %5365 = vmatprep.mubr.bf16.mxu0 0
      %5366 = vmatmul.mubr.bf16.gmra.mrb[0].mxu0 %v5178
      %v5367 = vpop.f32.mrb[0].mxu0
      %v5368 = vadd.f32 %v5152, %v5367
      %v5369 = vpop.f32.mrb[0].mxu0
      %v5370 = vpop.f32.mrb[0].mxu0
      %v5371 = vadd.f32 %v5152, %v5370
      %v5372 = vpop.f32.mrb[0].mxu0
      %5373 = vmatprep.mubr.bf16.mxu0 0
      %5374 = vmatmul.mubr.bf16.gmra.mrb[0].mxu0 %v5180
      %v5375 = vpop.f32.mrb[0].mxu0
      %v5376 = vadd.f32 %v5152, %v5375
      %v5377 = vpop.f32.mrb[0].mxu0
      %v5378 = vpop.f32.mrb[0].mxu0
      %v5379 = vadd.f32 %v5152, %v5378
      %v5380 = vpop.f32.mrb[0].mxu0
      %5381 = vmatprep.mubr.bf16.mxu0 0
      %5382 = vmatmul.mubr.bf16.gmra.mrb[0].mxu0 %v5182
      %v5383 = vpop.f32.mrb[0].mxu0
      %v5384 = vadd.f32 %v5152, %v5383
      %v5385 = vpop.f32.mrb[0].mxu0
      %v5386 = vpop.f32.mrb[0].mxu0
      %v5387 = vadd.f32 %v5152, %v5386
      %v5388 = vpop.f32.mrb[0].mxu0
      %5389 = vmatprep.mubr.bf16.mxu0 0
      %5390 = vmatmul.mubr.bf16.gmra.mrb[0].mxu0 %v5184
      %v5391 = vpop.f32.mrb[0].mxu0
      %v5392 = vadd.f32 %v5152, %v5391
      %v5393 = vpop.f32.mrb[0].mxu0
      %v5394 = vpop.f32.mrb[0].mxu0
      %v5395 = vadd.f32 %v5152, %v5394
      %v5396 = vpop.f32.mrb[0].mxu0
      %5397 = vmatprep.mubr.bf16.mxu0 0
      %5398 = vmatmul.mubr.bf16.gmra.mrb[0].mxu0 %v5186
      %v5399 = vpop.f32.mrb[0].mxu0
      %v5400 = vadd.f32 %v5152, %v5399
      %v5401 = vpop.f32.mrb[0].mxu0
      %v5402 = vpop.f32.mrb[0].mxu0
      %v5403 = vadd.f32 %v5152, %v5402
      %v5404 = vpop.f32.mrb[0].mxu0
      %5405 = vmatprep.mubr.bf16.mxu0 0
      %5406 = vmatmul.mubr.bf16.gmra.mrb[0].mxu0 %v5188
      %v5407 = vpop.f32.mrb[0].mxu0
      %v5408 = vadd.f32 %v5152, %v5407
      %v5409 = vpop.f32.mrb[0].mxu0
      %v5410 = vpop.f32.mrb[0].mxu0
      %v5411 = vadd.f32 %v5152, %v5410
      %v5412 = vpop.f32.mrb[0].mxu0
      %5413 = vmatprep.mubr.bf16.mxu0 0
      %5414 = vmatmul.mubr.bf16.gmra.mrb[0].mxu0 %v5190
      %v5415 = vpop.f32.mrb[0].mxu0
      %v5416 = vadd.f32 %v5152, %v5415
      %v5417 = vpop.f32.mrb[0].mxu0
      %v5418 = vpop.f32.mrb[0].mxu0
      %v5419 = vadd.f32 %v5152, %v5418
      %v5420 = vpop.f32.mrb[0].mxu0
      %5421 = vmatprep.mubr.bf16.mxu0 0
      %5422 = vmatmul.mubr.bf16.gmra.mrb[0].mxu0 %v5192
      %v5423 = vpop.f32.mrb[0].mxu0
      %v5424 = vadd.f32 %v5152, %v5423
      %v5425 = vpop.f32.mrb[0].mxu0
      %v5426 = vpop.f32.mrb[0].mxu0
      %v5427 = vadd.f32 %v5152, %v5426
      %v5428 = vpop.f32.mrb[0].mxu0
      %5429 = vmatprep.mubr.bf16.mxu0 0
      %5430 = vmatmul.mubr.bf16.gmra.mrb[0].mxu0 %v5194
      %v5431 = vpop.f32.mrb[0].mxu0
      %v5432 = vadd.f32 %v5152, %v5431
      %v5433 = vpop.f32.mrb[0].mxu0
      %v5434 = vpop.f32.mrb[0].mxu0
      %v5435 = vadd.f32 %v5152, %v5434
      %v5436 = vpop.f32.mrb[0].mxu0
      %5437 = vmatprep.mubr.bf16.mxu0 0
      %5438 = vmatmul.mubr.bf16.gmra.mrb[0].mxu0 %v5196
      %v5439 = vpop.f32.mrb[0].mxu0
      %v5440 = vadd.f32 %v5152, %v5439
      %v5441 = vpop.f32.mrb[0].mxu0
      %v5442 = vpop.f32.mrb[0].mxu0
      %v5443 = vadd.f32 %v5152, %v5442
      %v5444 = vpop.f32.mrb[0].mxu0
      %5445 = vmatprep.mubr.bf16.mxu0 0
      %5446 = vmatmul.mubr.bf16.gmra.mrb[0].mxu0 %v5198
      %v5447 = vpop.f32.mrb[0].mxu0
      %v5448 = vadd.f32 %v5152, %v5447
      %v5449 = vpop.f32.mrb[0].mxu0
      %v5450 = vpop.f32.mrb[0].mxu0
      %v5451 = vadd.f32 %v5152, %v5450
      %v5452 = vpop.f32.mrb[0].mxu0
      %5453 = vmatprep.mubr.bf16.mxu0 0
      %5454 = vmatmul.mubr.bf16.gmra.mrb[0].mxu0 %v5200
      %v5455 = vpop.f32.mrb[0].mxu0
      %v5456 = vadd.f32 %v5152, %v5455
      %v5457 = vpop.f32.mrb[0].mxu0
      %v5458 = vpop.f32.mrb[0].mxu0
      %v5459 = vadd.f32 %v5152, %v5458
      %v5460 = vpop.f32.mrb[0].mxu0
      %5461 = vmatprep.mubr.bf16.mxu0 0
      %5462 = vmatmul.mubr.bf16.gmra.mrb[0].mxu0 %v5202
      %v5463 = vpop.f32.mrb[0].mxu0
      %v5464 = vadd.f32 %v5152, %v5463
      %v5465 = vpop.f32.mrb[0].mxu0
      %v5466 = vpop.f32.mrb[0].mxu0
      %v5467 = vadd.f32 %v5152, %v5466
      %v5468 = vpop.f32.mrb[0].mxu0
      %5469 = vmatprep.mubr.bf16.mxu0 0
      %5470 = vmatmul.mubr.bf16.gmra.mrb[0].mxu0 %v5204
      %v5471 = vpop.f32.mrb[0].mxu0
      %v5472 = vadd.f32 %v5152, %v5471
      %v5473 = vpop.f32.mrb[0].mxu0
      %v5474 = vpop.f32.mrb[0].mxu0
      %v5475 = vadd.f32 %v5152, %v5474
      %v5476 = vpop.f32.mrb[0].mxu0
      %5477 = vmatprep.mubr.bf16.mxu0 0
      %5478 = vmatmul.mubr.bf16.gmra.mrb[0].mxu0 %v5206
      %v5479 = vpop.f32.mrb[0].mxu0
      %v5480 = vadd.f32 %v5152, %v5479
      %v5481 = vpop.f32.mrb[0].mxu0
      %v5482 = vpop.f32.mrb[0].mxu0
      %v5483 = vadd.f32 %v5152, %v5482
      %v5484 = vpop.f32.mrb[0].mxu0
      %5485 = vmatprep.mubr.bf16.mxu0 0
      %5486 = vmatmul.mubr.bf16.gmra.mrb[0].mxu0 %v5208
      %v5487 = vpop.f32.mrb[0].mxu0
      %v5488 = vadd.f32 %v5152, %v5487
      %v5489 = vpop.f32.mrb[0].mxu0
      %v5490 = vpop.f32.mrb[0].mxu0
      %v5491 = vadd.f32 %v5152, %v5490
      %v5492 = vpop.f32.mrb[0].mxu0
      %5493 = vmatprep.mubr.bf16.mxu0 0
      %5494 = vmatmul.mubr.bf16.gmra.mrb[0].mxu0 %v5210
      %v5495 = vpop.f32.mrb[0].mxu0
      %v5496 = vadd.f32 %v5152, %v5495
      %v5497 = vpop.f32.mrb[0].mxu0
      %v5498 = vpop.f32.mrb[0].mxu0
      %v5499 = vadd.f32 %v5152, %v5498
      %v5500 = vpop.f32.mrb[0].mxu0
      %5501 = vmatprep.mubr.bf16.mxu0 0
      %5502 = vmatmul.mubr.bf16.gmra.mrb[0].mxu0 %v5212
      %v5503 = vpop.f32.mrb[0].mxu0
      %v5504 = vadd.f32 %v5152, %v5503
      %v5505 = vpop.f32.mrb[0].mxu0
      %v5506 = vpop.f32.mrb[0].mxu0
      %v5507 = vadd.f32 %v5152, %v5506
      %v5508 = vpop.f32.mrb[0].mxu0
      %5509 = vmatprep.mubr.bf16.mxu0 0
      %5510 = vmatmul.mubr.bf16.gmra.mrb[0].mxu0 %v5214
      %v5511 = vpop.f32.mrb[0].mxu0
      %v5512 = vadd.f32 %v5152, %v5511
      %v5513 = vpop.f32.mrb[0].mxu0
      %v5514 = vpop.f32.mrb[0].mxu0
      %v5515 = vadd.f32 %v5152, %v5514
      %v5516 = vpop.f32.mrb[0].mxu0
      %5517 = vmatprep.mubr.bf16.mxu0 0
      %5518 = vmatmul.mubr.bf16.gmra.mrb[0].mxu0 %v5216
      %v5519 = vpop.f32.mrb[0].mxu0
      %v5520 = vadd.f32 %v5152, %v5519
      %v5521 = vpop.f32.mrb[0].mxu0
      %v5522 = vpop.f32.mrb[0].mxu0
      %v5523 = vadd.f32 %v5152, %v5522
      %v5524 = vpop.f32.mrb[0].mxu0
      %5525 = vmatprep.mubr.bf16.mxu0 0
      %5526 = vmatmul.mubr.bf16.gmra.mrb[0].mxu0 %v5218
      %v5527 = vpop.f32.mrb[0].mxu0
      %v5528 = vadd.f32 %v5152, %v5527
      %v5529 = vpop.f32.mrb[0].mxu0
      %v5530 = vpop.f32.mrb[0].mxu0
      %v5531 = vadd.f32 %v5152, %v5530
      %v5532 = vpop.f32.mrb[0].mxu0
      %5533 = vmatprep.mubr.bf16.mxu0 0
      %5534 = vmatmul.mubr.bf16.gmra.mrb[0].mxu0 %v5220
      %v5535 = vpop.f32.mrb[0].mxu0
      %v5536 = vadd.f32 %v5152, %v5535
      %v5537 = vpop.f32.mrb[0].mxu0
      %v5538 = vpop.f32.mrb[0].mxu0
      %v5539 = vadd.f32 %v5152, %v5538
      %v5540 = vpop.f32.mrb[0].mxu0
      %5541 = vmatprep.mubr.bf16.mxu0 0
      %5542 = vmatmul.mubr.bf16.gmra.mrb[0].mxu0 %v5222
      %v5543 = vpop.f32.mrb[0].mxu0
      %v5544 = vadd.f32 %v5152, %v5543
      %v5545 = vpop.f32.mrb[0].mxu0
      %v5546 = vpop.f32.mrb[0].mxu0
      %v5547 = vadd.f32 %v5152, %v5546
      %v5548 = vpop.f32.mrb[0].mxu0
      %5549 = vmatprep.mubr.bf16.mxu0 0
      %5550 = vmatmul.mubr.bf16.gmra.mrb[0].mxu0 %v5224
      %v5551 = vpop.f32.mrb[0].mxu0
      %v5552 = vadd.f32 %v5152, %v5551
      %v5553 = vpop.f32.mrb[0].mxu0
      %v5554 = vpop.f32.mrb[0].mxu0
      %v5555 = vadd.f32 %v5152, %v5554
      %v5556 = vpop.f32.mrb[0].mxu0
      %5557 = vmatprep.mubr.bf16.mxu0 0
      %5558 = vmatmul.mubr.bf16.gmra.mrb[0].mxu0 %v5226
      %v5559 = vpop.f32.mrb[0].mxu0
      %v5560 = vadd.f32 %v5152, %v5559
      %v5561 = vpop.f32.mrb[0].mxu0
      %v5562 = vpop.f32.mrb[0].mxu0
      %v5563 = vadd.f32 %v5152, %v5562
      %v5564 = vpop.f32.mrb[0].mxu0
      %5565 = vmatprep.mubr.bf16.mxu0 0
      %5566 = vmatmul.mubr.bf16.gmra.mrb[0].mxu0 %v5228
      %v5567 = vpop.f32.mrb[0].mxu0
      %v5568 = vadd.f32 %v5152, %v5567
      %v5569 = vpop.f32.mrb[0].mxu0
      %v5570 = vpop.f32.mrb[0].mxu0
      %v5571 = vadd.f32 %v5152, %v5570
      %v5572 = vpop.f32.mrb[0].mxu0
      %5573 = vmatprep.mubr.bf16.mxu0 0
      %5574 = vmatmul.mubr.bf16.gmra.mrb[0].mxu0 %v5230
      %v5575 = vpop.f32.mrb[0].mxu0
      %v5576 = vadd.f32 %v5152, %v5575
      %v5577 = vpop.f32.mrb[0].mxu0
      %v5578 = vpop.f32.mrb[0].mxu0
      %v5579 = vadd.f32 %v5152, %v5578
      %v5580 = vpop.f32.mrb[0].mxu0
      %5581 = vmatprep.mubr.bf16.mxu0 0
      %5582 = vmatmul.mubr.bf16.gmra.mrb[0].mxu0 %v5232
      %v5583 = vpop.f32.mrb[0].mxu0
      %v5584 = vadd.f32 %v5152, %v5583
      %v5585 = vpop.f32.mrb[0].mxu0
      %v5586 = vpop.f32.mrb[0].mxu0
      %v5587 = vadd.f32 %v5152, %v5586
      %v5588 = vpop.f32.mrb[0].mxu0
      %5589 = vmatprep.mubr.bf16.mxu0 0
      %5590 = vmatmul.mubr.bf16.gmra.mrb[0].mxu0 %v5234
      %v5591 = vpop.f32.mrb[0].mxu0
      %v5592 = vadd.f32 %v5152, %v5591
      %v5593 = vpop.f32.mrb[0].mxu0
      %v5594 = vpop.f32.mrb[0].mxu0
      %v5595 = vadd.f32 %v5152, %v5594
      %v5596 = vpop.f32.mrb[0].mxu0
      %5597 = vmatprep.mubr.bf16.mxu0 0
      %5598 = vmatmul.mubr.bf16.gmra.mrb[0].mxu0 %v5236
      %v5599 = vpop.f32.mrb[0].mxu0
      %v5600 = vadd.f32 %v5152, %v5599
      %v5601 = vpop.f32.mrb[0].mxu0
      %v5602 = vpop.f32.mrb[0].mxu0
      %v5603 = vadd.f32 %v5152, %v5602
      %v5604 = vpop.f32.mrb[0].mxu0
      %5605 = vmatprep.mubr.bf16.mxu0 0
      %5606 = vmatmul.mubr.bf16.gmra.mrb[0].mxu0 %v5238
      %v5607 = vpop.f32.mrb[0].mxu0
      %v5608 = vadd.f32 %v5152, %v5607
      %v5609 = vpop.f32.mrb[0].mxu0
      %v5610 = vpop.f32.mrb[0].mxu0
      %v5611 = vadd.f32 %v5152, %v5610
      %v5612 = vpop.f32.mrb[0].mxu0
      %5613 = vmatprep.mubr.bf16.mxu0 0
      %5614 = vmatmul.mubr.bf16.gmra.mrb[0].mxu0 %v5240
      %v5615 = vpop.f32.mrb[0].mxu0
      %v5616 = vadd.f32 %v5152, %v5615
      %v5617 = vpop.f32.mrb[0].mxu0
      %v5618 = vpop.f32.mrb[0].mxu0
      %v5619 = vadd.f32 %v5152, %v5618
      %v5620 = vpop.f32.mrb[0].mxu0
      %5621 = vmatprep.mubr.bf16.mxu0 0
      %5622 = vmatmul.mubr.bf16.gmra.mrb[0].mxu0 %v5242
      %v5623 = vpop.f32.mrb[0].mxu0
      %v5624 = vadd.f32 %v5152, %v5623
      %v5625 = vpop.f32.mrb[0].mxu0
      %v5626 = vpop.f32.mrb[0].mxu0
      %v5627 = vadd.f32 %v5152, %v5626
      %v5628 = vpop.f32.mrb[0].mxu0
      %5629 = vmatprep.mubr.bf16.mxu0 0
      %5630 = vmatmul.mubr.bf16.gmra.mrb[0].mxu0 %v5244
      %v5631 = vpop.f32.mrb[0].mxu0
      %v5632 = vadd.f32 %v5152, %v5631
      %v5633 = vpop.f32.mrb[0].mxu0
      %v5634 = vpop.f32.mrb[0].mxu0
      %v5635 = vadd.f32 %v5152, %v5634
      %v5636 = vpop.f32.mrb[0].mxu0
      %5637 = vmatprep.mubr.bf16.mxu0 0
      %5638 = vmatmul.mubr.bf16.gmra.mrb[0].mxu0 %v5246
      %v5639 = vpop.f32.mrb[0].mxu0
      %v5640 = vadd.f32 %v5152, %v5639
      %v5641 = vpop.f32.mrb[0].mxu0
      %v5642 = vpop.f32.mrb[0].mxu0
      %v5643 = vadd.f32 %v5152, %v5642
      %v5644 = vpop.f32.mrb[0].mxu0
      %5645 = vmatprep.mubr.bf16.mxu0 0
      %5646 = vmatmul.mubr.bf16.gmra.mrb[0].mxu0 %v5248
      %v5647 = vpop.f32.mrb[0].mxu0
      %v5648 = vadd.f32 %v5152, %v5647
      %v5649 = vpop.f32.mrb[0].mxu0
      %v5650 = vpop.f32.mrb[0].mxu0
      %v5651 = vadd.f32 %v5152, %v5650
      %v5652 = vpop.f32.mrb[0].mxu0
      %5653 = vmatprep.mubr.bf16.mxu0 0
      %5654 = vmatmul.mubr.bf16.gmra.mrb[0].mxu0 %v5250
      %v5655 = vpop.f32.mrb[0].mxu0
      %v5656 = vadd.f32 %v5152, %v5655
      %v5657 = vpop.f32.mrb[0].mxu0
      %v5658 = vpop.f32.mrb[0].mxu0
      %v5659 = vadd.f32 %v5152, %v5658
      %v5660 = vpop.f32.mrb[0].mxu0
      %5661 = vmatprep.mubr.bf16.mxu0 0
      %5662 = vmatmul.mubr.bf16.gmra.mrb[0].mxu0 %v5252
      %v5663 = vpop.f32.mrb[0].mxu0
      %v5664 = vadd.f32 %v5152, %v5663
      %v5665 = vpop.f32.mrb[0].mxu0
      %v5666 = vpop.f32.mrb[0].mxu0
      %v5667 = vadd.f32 %v5152, %v5666
      %v5668 = vpop.f32.mrb[0].mxu0
      %5669 = vmatprep.mubr.bf16.mxu0 0
      %5670 = vmatmul.mubr.bf16.gmra.mrb[0].mxu0 %v5254
      %v5671 = vpop.f32.mrb[0].mxu0
      %v5672 = vadd.f32 %v5152, %v5671
      %v5673 = vpop.f32.mrb[0].mxu0
      %v5674 = vpop.f32.mrb[0].mxu0
      %v5675 = vadd.f32 %v5152, %v5674
      %v5676 = vpop.f32.mrb[0].mxu0
      %5677 = vmatprep.mubr.bf16.mxu0 0
      %5678 = vmatmul.mubr.bf16.gmra.mrb[0].mxu0 %v5256
      %v5679 = vpop.f32.mrb[0].mxu0
      %v5680 = vadd.f32 %v5152, %v5679
      %v5681 = vpop.f32.mrb[0].mxu0
      %v5682 = vpop.f32.mrb[0].mxu0
      %v5683 = vadd.f32 %v5152, %v5682
      %v5684 = vpop.f32.mrb[0].mxu0
      %5685 = vmatprep.mubr.bf16.mxu0 0
      %5686 = vmatmul.mubr.bf16.gmra.mrb[0].mxu0 %v5258
      %v5687 = vpop.f32.mrb[0].mxu0
      %v5688 = vadd.f32 %v5152, %v5687
      %v5689 = vpop.f32.mrb[0].mxu0
      %v5690 = vpop.f32.mrb[0].mxu0
      %v5691 = vadd.f32 %v5152, %v5690
      %v5692 = vpop.f32.mrb[0].mxu0
      %5693 = vmatprep.mubr.bf16.mxu0 0
      %5694 = vmatmul.mubr.bf16.gmra.mrb[0].mxu0 %v5260
      %v5695 = vpop.f32.mrb[0].mxu0
      %v5696 = vadd.f32 %v5152, %v5695
      %v5697 = vpop.f32.mrb[0].mxu0
      %v5698 = vpop.f32.mrb[0].mxu0
      %v5699 = vadd.f32 %v5152, %v5698
      %v5700 = vpop.f32.mrb[0].mxu0
      %5701 = vmatprep.mubr.bf16.mxu0 0
      %5702 = vmatmul.mubr.bf16.gmra.mrb[0].mxu0 %v5262
      %v5703 = vpop.f32.mrb[0].mxu0
      %v5704 = vadd.f32 %v5152, %v5703
      %v5705 = vpop.f32.mrb[0].mxu0
      %v5706 = vpop.f32.mrb[0].mxu0
      %v5707 = vadd.f32 %v5152, %v5706
      %v5708 = vpop.f32.mrb[0].mxu0
      %5709 = vmatprep.mubr.bf16.mxu0 0
      %5710 = vmatmul.mubr.bf16.gmra.mrb[0].mxu0 %v5264
      %v5711 = vpop.f32.mrb[0].mxu0
      %v5712 = vadd.f32 %v5152, %v5711
      %v5713 = vpop.f32.mrb[0].mxu0
      %v5714 = vpop.f32.mrb[0].mxu0
      %v5715 = vadd.f32 %v5152, %v5714
      %v5716 = vpop.f32.mrb[0].mxu0
      %5717 = vmatprep.mubr.bf16.mxu0 0
      %5718 = vmatmul.mubr.bf16.gmra.mrb[0].mxu0 %v5266
      %v5719 = vpop.f32.mrb[0].mxu0
      %v5720 = vadd.f32 %v5152, %v5719
      %v5721 = vpop.f32.mrb[0].mxu0
      %v5722 = vpop.f32.mrb[0].mxu0
      %v5723 = vadd.f32 %v5152, %v5722
      %v5724 = vpop.f32.mrb[0].mxu0
      %5725 = vmatprep.mubr.bf16.mxu0 0
      %5726 = vmatmul.mubr.bf16.gmra.mrb[0].mxu0 %v5268
      %v5727 = vpop.f32.mrb[0].mxu0
      %v5728 = vadd.f32 %v5152, %v5727
      %v5729 = vpop.f32.mrb[0].mxu0
      %v5730 = vpop.f32.mrb[0].mxu0
      %v5731 = vadd.f32 %v5152, %v5730
      %v5732 = vpop.f32.mrb[0].mxu0
      %5733 = vmatprep.mubr.bf16.mxu0 0
      %5734 = vmatmul.mubr.bf16.gmra.mrb[0].mxu0 %v5270
      %v5735 = vpop.f32.mrb[0].mxu0
      %v5736 = vadd.f32 %v5152, %v5735
      %v5737 = vpop.f32.mrb[0].mxu0
      %v5738 = vpop.f32.mrb[0].mxu0
      %v5739 = vadd.f32 %v5152, %v5738
      %v5740 = vpop.f32.mrb[0].mxu0
      %5741 = vmatprep.mubr.bf16.mxu0 0
      %5742 = vmatmul.mubr.bf16.gmra.mrb[0].mxu0 %v5272
      %v5743 = vpop.f32.mrb[0].mxu0
      %v5744 = vadd.f32 %v5152, %v5743
      %v5745 = vpop.f32.mrb[0].mxu0
      %v5746 = vpop.f32.mrb[0].mxu0
      %v5747 = vadd.f32 %v5152, %v5746
      %v5748 = vpop.f32.mrb[0].mxu0
      %5749 = vmatprep.mubr.bf16.mxu0 0
      %5750 = vmatmul.mubr.bf16.gmra.mrb[0].mxu0 %v5274
      %v5751 = vpop.f32.mrb[0].mxu0
      %v5752 = vadd.f32 %v5152, %v5751
      %v5753 = vpop.f32.mrb[0].mxu0
      %v5754 = vpop.f32.mrb[0].mxu0
      %v5755 = vadd.f32 %v5152, %v5754
      %v5756 = vpop.f32.mrb[0].mxu0
      %5757 = vmatprep.mubr.bf16.mxu0 0
      %5758 = vmatmul.mubr.bf16.gmra.mrb[0].mxu0 %v5276
      %v5759 = vpop.f32.mrb[0].mxu0
      %v5760 = vadd.f32 %v5152, %v5759
      %v5761 = vpop.f32.mrb[0].mxu0
      %v5762 = vpop.f32.mrb[0].mxu0
      %v5763 = vadd.f32 %v5152, %v5762
      %v5764 = vpop.f32.mrb[0].mxu0
      %5765 = vmatprep.mubr.bf16.mxu0 0
      %5766 = vmatmul.mubr.bf16.gmra.mrb[0].mxu0 %v5278
      %v5767 = vpop.f32.mrb[0].mxu0
      %v5768 = vadd.f32 %v5152, %v5767
      %v5769 = vpop.f32.mrb[0].mxu0
      %v5770 = vpop.f32.mrb[0].mxu0
      %v5771 = vadd.f32 %v5152, %v5770
      %v5772 = vpop.f32.mrb[0].mxu0
      %5773 = vmatprep.mubr.bf16.mxu0 0
      %5774 = vmatmul.mubr.bf16.gmra.mrb[0].mxu0 %v5280
      %v5775 = vpop.f32.mrb[0].mxu0
      %v5776 = vadd.f32 %v5152, %v5775
      %v5777 = vpop.f32.mrb[0].mxu0
      %v5778 = vpop.f32.mrb[0].mxu0
      %v5779 = vadd.f32 %v5152, %v5778
      %v5780 = vpop.f32.mrb[0].mxu0
      %5781 = vmatprep.mubr.bf16.mxu0 0
      %5782 = vmatmul.mubr.bf16.gmra.mrb[0].mxu0 %v5282
      %v5783 = vpop.f32.mrb[0].mxu0
      %v5784 = vadd.f32 %v5152, %v5783
      %v5785 = vpop.f32.mrb[0].mxu0
      %v5786 = vpop.f32.mrb[0].mxu0
      %v5787 = vadd.f32 %v5152, %v5786
      %v5788 = vpop.f32.mrb[0].mxu0
      %5789 = vmatprep.mubr.bf16.mxu0 0
      %5790 = vmatmul.mubr.bf16.gmra.mrb[0].mxu0 %v5284
      %v5791 = vpop.f32.mrb[0].mxu0
      %v5792 = vadd.f32 %v5152, %v5791
      %v5793 = vpop.f32.mrb[0].mxu0
      %v5794 = vpop.f32.mrb[0].mxu0
      %v5795 = vadd.f32 %v5152, %v5794
      %v5796 = vpop.f32.mrb[0].mxu0
      %5797 = vmatprep.mubr.bf16.mxu0 0
      %5798 = vmatmul.mubr.bf16.gmra.mrb[0].mxu0 %v5286
      %v5799 = vpop.f32.mrb[0].mxu0
      %v5800 = vadd.f32 %v5152, %v5799
      %v5801 = vpop.f32.mrb[0].mxu0
      %v5802 = vpop.f32.mrb[0].mxu0
      %v5803 = vadd.f32 %v5152, %v5802
      %v5804 = vpop.f32.mrb[0].mxu0
      %5805 = vmatprep.mubr.bf16.mxu0 0
      %5806 = vmatmul.mubr.bf16.gmra.mrb[0].mxu0 %v5288
      %v5807 = vpop.f32.mrb[0].mxu0
      %v5808 = vadd.f32 %v5152, %v5807
      %v5809 = vpop.f32.mrb[0].mxu0
      %v5810 = vpop.f32.mrb[0].mxu0
      %v5811 = vadd.f32 %v5152, %v5810
      %v5812 = vpop.f32.mrb[0].mxu0
      %5813 = vmatprep.mubr.bf16.mxu0 0
      %5814 = vmatmul.mubr.bf16.gmra.mrb[0].mxu0 %v5290
      %v5815 = vpop.f32.mrb[0].mxu0
      %v5816 = vadd.f32 %v5152, %v5815
      %v5817 = vpop.f32.mrb[0].mxu0
      %v5818 = vpop.f32.mrb[0].mxu0
      %v5819 = vadd.f32 %v5152, %v5818
      %v5820 = vpop.f32.mrb[0].mxu0
      %5821 = vmatprep.mubr.bf16.mxu0 0
      %5822 = vmatmul.mubr.bf16.gmra.mrb[0].mxu0 %v5292
      %v5823 = vpop.f32.mrb[0].mxu0
      %v5824 = vadd.f32 %v5152, %v5823
      %v5825 = vpop.f32.mrb[0].mxu0
      %v5826 = vpop.f32.mrb[0].mxu0
      %v5827 = vadd.f32 %v5152, %v5826
      %v5828 = vpop.f32.mrb[0].mxu0
      %5829 = vmatprep.mubr.bf16.mxu0 0
      %5830 = vmatmul.mubr.bf16.gmra.mrb[0].mxu0 %v5294
      %v5831 = vpop.f32.mrb[0].mxu0
      %v5832 = vadd.f32 %v5152, %v5831
      %v5833 = vpop.f32.mrb[0].mxu0
      %v5834 = vpop.f32.mrb[0].mxu0
      %v5835 = vadd.f32 %v5152, %v5834
      %v5836 = vpop.f32.mrb[0].mxu0
      %5837 = vmatprep.mubr.bf16.mxu0 0
      %5838 = vmatmul.mubr.bf16.gmra.mrb[0].mxu0 %v5296
      %v5839 = vpop.f32.mrb[0].mxu0
      %v5840 = vadd.f32 %v5152, %v5839
      %v5841 = vpop.f32.mrb[0].mxu0
      %v5842 = vpop.f32.mrb[0].mxu0
      %v5843 = vadd.f32 %v5152, %v5842
      %v5844 = vpop.f32.mrb[0].mxu0
      %5845 = vdwg.mxu0
      %v5846 = vmax.f32 %v5336, 0.0
      %v5847 = vmax.f32 %v5339, 0.0
      %v5848 = vmax.f32 %v5344, 0.0
      %v5849 = vmax.f32 %v5347, 0.0
      %v5850 = vmax.f32 %v5352, 0.0
      %v5851 = vmax.f32 %v5355, 0.0
      %v5852 = vmax.f32 %v5360, 0.0
      %v5853 = vmax.f32 %v5363, 0.0
      %v5854 = vmax.f32 %v5368, 0.0
      %v5855 = vmax.f32 %v5371, 0.0
      %v5856 = vmax.f32 %v5376, 0.0
      %v5857 = vmax.f32 %v5379, 0.0
      %v5858 = vmax.f32 %v5384, 0.0
      %v5859 = vmax.f32 %v5387, 0.0
      %v5860 = vmax.f32 %v5392, 0.0
      %v5861 = vmax.f32 %v5395, 0.0
      %v5862 = vmax.f32 %v5400, 0.0
      %v5863 = vmax.f32 %v5403, 0.0
      %v5864 = vmax.f32 %v5408, 0.0
      %v5865 = vmax.f32 %v5411, 0.0
      %v5866 = vmax.f32 %v5416, 0.0
      %v5867 = vmax.f32 %v5419, 0.0
      %v5868 = vmax.f32 %v5424, 0.0
      %v5869 = vmax.f32 %v5427, 0.0
      %v5870 = vmax.f32 %v5432, 0.0
      %v5871 = vmax.f32 %v5435, 0.0
      %v5872 = vmax.f32 %v5440, 0.0
      %v5873 = vmax.f32 %v5443, 0.0
      %v5874 = vmax.f32 %v5448, 0.0
      %v5875 = vmax.f32 %v5451, 0.0
      %v5876 = vmax.f32 %v5456, 0.0
      %v5877 = vmax.f32 %v5459, 0.0
      %v5878 = vmax.f32 %v5464, 0.0
      %v5879 = vmax.f32 %v5467, 0.0
      %v5880 = vmax.f32 %v5472, 0.0
      %v5881 = vmax.f32 %v5475, 0.0
      %v5882 = vmax.f32 %v5480, 0.0
      %v5883 = vmax.f32 %v5483, 0.0
      %v5884 = vmax.f32 %v5488, 0.0
      %v5885 = vmax.f32 %v5491, 0.0
      %v5886 = vmax.f32 %v5496, 0.0
      %v5887 = vmax.f32 %v5499, 0.0
      %v5888 = vmax.f32 %v5504, 0.0
      %v5889 = vmax.f32 %v5507, 0.0
      %v5890 = vmax.f32 %v5512, 0.0
      %v5891 = vmax.f32 %v5515, 0.0
      %v5892 = vmax.f32 %v5520, 0.0
      %v5893 = vmax.f32 %v5523, 0.0
      %v5894 = vmax.f32 %v5528, 0.0
      %v5895 = vmax.f32 %v5531, 0.0
      %v5896 = vmax.f32 %v5536, 0.0
      %v5897 = vmax.f32 %v5539, 0.0
      %v5898 = vmax.f32 %v5544, 0.0
      %v5899 = vmax.f32 %v5547, 0.0
      %v5900 = vmax.f32 %v5552, 0.0
      %v5901 = vmax.f32 %v5555, 0.0
      %v5902 = vmax.f32 %v5560, 0.0
      %v5903 = vmax.f32 %v5563, 0.0
      %v5904 = vmax.f32 %v5568, 0.0
      %v5905 = vmax.f32 %v5571, 0.0
      %v5906 = vmax.f32 %v5576, 0.0
      %v5907 = vmax.f32 %v5579, 0.0
      %v5908 = vmax.f32 %v5584, 0.0
      %v5909 = vmax.f32 %v5587, 0.0
      %v5910 = vmax.f32 %v5592, 0.0
      %v5911 = vmax.f32 %v5595, 0.0
      %v5912 = vmax.f32 %v5600, 0.0
      %v5913 = vmax.f32 %v5603, 0.0
      %v5914 = vmax.f32 %v5608, 0.0
      %v5915 = vmax.f32 %v5611, 0.0
      %v5916 = vmax.f32 %v5616, 0.0
      %v5917 = vmax.f32 %v5619, 0.0
      %v5918 = vmax.f32 %v5624, 0.0
      %v5919 = vmax.f32 %v5627, 0.0
      %v5920 = vmax.f32 %v5632, 0.0
      %v5921 = vmax.f32 %v5635, 0.0
      %v5922 = vmax.f32 %v5640, 0.0
      %v5923 = vmax.f32 %v5643, 0.0
      %v5924 = vmax.f32 %v5648, 0.0
      %v5925 = vmax.f32 %v5651, 0.0
      %v5926 = vmax.f32 %v5656, 0.0
      %v5927 = vmax.f32 %v5659, 0.0
      %v5928 = vmax.f32 %v5664, 0.0
      %v5929 = vmax.f32 %v5667, 0.0
      %v5930 = vmax.f32 %v5672, 0.0
      %v5931 = vmax.f32 %v5675, 0.0
      %v5932 = vmax.f32 %v5680, 0.0
      %v5933 = vmax.f32 %v5683, 0.0
      %v5934 = vmax.f32 %v5688, 0.0
      %v5935 = vmax.f32 %v5691, 0.0
      %v5936 = vmax.f32 %v5696, 0.0
      %v5937 = vmax.f32 %v5699, 0.0
      %v5938 = vmax.f32 %v5704, 0.0
      %v5939 = vmax.f32 %v5707, 0.0
      %v5940 = vmax.f32 %v5712, 0.0
      %v5941 = vmax.f32 %v5715, 0.0
      %v5942 = vmax.f32 %v5720, 0.0
      %v5943 = vmax.f32 %v5723, 0.0
      %v5944 = vmax.f32 %v5728, 0.0
      %v5945 = vmax.f32 %v5731, 0.0
      %v5946 = vmax.f32 %v5736, 0.0
      %v5947 = vmax.f32 %v5739, 0.0
      %v5948 = vmax.f32 %v5744, 0.0
      %v5949 = vmax.f32 %v5747, 0.0
      %v5950 = vmax.f32 %v5752, 0.0
      %v5951 = vmax.f32 %v5755, 0.0
      %v5952 = vmax.f32 %v5760, 0.0
      %v5953 = vmax.f32 %v5763, 0.0
      %v5954 = vmax.f32 %v5768, 0.0
      %v5955 = vmax.f32 %v5771, 0.0
      %v5956 = vmax.f32 %v5776, 0.0
      %v5957 = vmax.f32 %v5779, 0.0
      %v5958 = vmax.f32 %v5784, 0.0
      %v5959 = vmax.f32 %v5787, 0.0
      %v5960 = vmax.f32 %v5792, 0.0
      %v5961 = vmax.f32 %v5795, 0.0
      %v5962 = vmax.f32 %v5800, 0.0
      %v5963 = vmax.f32 %v5803, 0.0
      %v5964 = vmax.f32 %v5808, 0.0
      %v5965 = vmax.f32 %v5811, 0.0
      %v5966 = vmax.f32 %v5816, 0.0
      %v5967 = vmax.f32 %v5819, 0.0
      %v5968 = vmax.f32 %v5824, 0.0
      %v5969 = vmax.f32 %v5827, 0.0
      %v5970 = vmax.f32 %v5832, 0.0
      %v5971 = vmax.f32 %v5835, 0.0
      %v5972 = vmax.f32 %v5840, 0.0
      %v5973 = vmax.f32 %v5843, 0.0
      %v5974 = vpack.c.bf16 %v5847, %v5846
      %v5975 = vpack.c.bf16 %v5849, %v5848
      %v5976 = vpack.c.bf16 %v5851, %v5850
      %v5977 = vpack.c.bf16 %v5853, %v5852
      %v5978 = vpack.c.bf16 %v5855, %v5854
      %v5979 = vpack.c.bf16 %v5857, %v5856
      %v5980 = vpack.c.bf16 %v5859, %v5858
      %v5981 = vpack.c.bf16 %v5861, %v5860
      %v5982 = vpack.c.bf16 %v5863, %v5862
      %v5983 = vpack.c.bf16 %v5865, %v5864
      %v5984 = vpack.c.bf16 %v5867, %v5866
      %v5985 = vpack.c.bf16 %v5869, %v5868
      %v5986 = vpack.c.bf16 %v5871, %v5870
      %v5987 = vpack.c.bf16 %v5873, %v5872
      %v5988 = vpack.c.bf16 %v5875, %v5874
      %v5989 = vpack.c.bf16 %v5877, %v5876
      %v5990 = vpack.c.bf16 %v5879, %v5878
      %v5991 = vpack.c.bf16 %v5881, %v5880
      %v5992 = vpack.c.bf16 %v5883, %v5882
      %v5993 = vpack.c.bf16 %v5885, %v5884
      %v5994 = vpack.c.bf16 %v5887, %v5886
      %v5995 = vpack.c.bf16 %v5889, %v5888
      %v5996 = vpack.c.bf16 %v5891, %v5890
      %v5997 = vpack.c.bf16 %v5893, %v5892
      %v5998 = vpack.c.bf16 %v5895, %v5894
      %v5999 = vpack.c.bf16 %v5897, %v5896
      %v6000 = vpack.c.bf16 %v5899, %v5898
      %v6001 = vpack.c.bf16 %v5901, %v5900
      %v6002 = vpack.c.bf16 %v5903, %v5902
      %v6003 = vpack.c.bf16 %v5905, %v5904
      %v6004 = vpack.c.bf16 %v5907, %v5906
      %v6005 = vpack.c.bf16 %v5909, %v5908
      %v6006 = vpack.c.bf16 %v5911, %v5910
      %v6007 = vpack.c.bf16 %v5913, %v5912
      %v6008 = vpack.c.bf16 %v5915, %v5914
      %v6009 = vpack.c.bf16 %v5917, %v5916
      %v6010 = vpack.c.bf16 %v5919, %v5918
      %v6011 = vpack.c.bf16 %v5921, %v5920
      %v6012 = vpack.c.bf16 %v5923, %v5922
      %v6013 = vpack.c.bf16 %v5925, %v5924
      %v6014 = vpack.c.bf16 %v5927, %v5926
      %v6015 = vpack.c.bf16 %v5929, %v5928
      %v6016 = vpack.c.bf16 %v5931, %v5930
      %v6017 = vpack.c.bf16 %v5933, %v5932
      %v6018 = vpack.c.bf16 %v5935, %v5934
      %v6019 = vpack.c.bf16 %v5937, %v5936
      %v6020 = vpack.c.bf16 %v5939, %v5938
      %v6021 = vpack.c.bf16 %v5941, %v5940
      %v6022 = vpack.c.bf16 %v5943, %v5942
      %v6023 = vpack.c.bf16 %v5945, %v5944
      %v6024 = vpack.c.bf16 %v5947, %v5946
      %v6025 = vpack.c.bf16 %v5949, %v5948
      %v6026 = vpack.c.bf16 %v5951, %v5950
      %v6027 = vpack.c.bf16 %v5953, %v5952
      %v6028 = vpack.c.bf16 %v5955, %v5954
      %v6029 = vpack.c.bf16 %v5957, %v5956
      %v6030 = vpack.c.bf16 %v5959, %v5958
      %v6031 = vpack.c.bf16 %v5961, %v5960
      %v6032 = vpack.c.bf16 %v5963, %v5962
      %v6033 = vpack.c.bf16 %v5965, %v5964
      %v6034 = vpack.c.bf16 %v5967, %v5966
      %v6035 = vpack.c.bf16 %v5969, %v5968
      %v6036 = vpack.c.bf16 %v5971, %v5970
      %v6037 = vpack.c.bf16 %v5973, %v5972
      %v6102 = vunpack.c.l.b16 %v5974
      %v6103 = vunpack.c.h.b16 %v5974
      %v6104 = vunpack.c.l.b16 %v5975
      %v6105 = vunpack.c.h.b16 %v5975
      %v6106 = vunpack.c.l.b16 %v5976
      %v6107 = vunpack.c.h.b16 %v5976
      %v6108 = vunpack.c.l.b16 %v5977
      %v6109 = vunpack.c.h.b16 %v5977
      %v6110 = vunpack.c.l.b16 %v5978
      %v6111 = vunpack.c.h.b16 %v5978
      %v6112 = vunpack.c.l.b16 %v5979
      %v6113 = vunpack.c.h.b16 %v5979
      %v6114 = vunpack.c.l.b16 %v5980
      %v6115 = vunpack.c.h.b16 %v5980
      %v6116 = vunpack.c.l.b16 %v5981
      %v6117 = vunpack.c.h.b16 %v5981
      %v6118 = vunpack.c.l.b16 %v5982
      %v6119 = vunpack.c.h.b16 %v5982
      %v6120 = vunpack.c.l.b16 %v5983
      %v6121 = vunpack.c.h.b16 %v5983
      %v6122 = vunpack.c.l.b16 %v5984
      %v6123 = vunpack.c.h.b16 %v5984
      %v6124 = vunpack.c.l.b16 %v5985
      %v6125 = vunpack.c.h.b16 %v5985
      %v6126 = vunpack.c.l.b16 %v5986
      %v6127 = vunpack.c.h.b16 %v5986
      %v6128 = vunpack.c.l.b16 %v5987
      %v6129 = vunpack.c.h.b16 %v5987
      %v6130 = vunpack.c.l.b16 %v5988
      %v6131 = vunpack.c.h.b16 %v5988
      %v6132 = vunpack.c.l.b16 %v5989
      %v6133 = vunpack.c.h.b16 %v5989
      %v6134 = vunpack.c.l.b16 %v5990
      %v6135 = vunpack.c.h.b16 %v5990
      %v6136 = vunpack.c.l.b16 %v5991
      %v6137 = vunpack.c.h.b16 %v5991
      %v6138 = vunpack.c.l.b16 %v5992
      %v6139 = vunpack.c.h.b16 %v5992
      %v6140 = vunpack.c.l.b16 %v5993
      %v6141 = vunpack.c.h.b16 %v5993
      %v6142 = vunpack.c.l.b16 %v5994
      %v6143 = vunpack.c.h.b16 %v5994
      %v6144 = vunpack.c.l.b16 %v5995
      %v6145 = vunpack.c.h.b16 %v5995
      %v6146 = vunpack.c.l.b16 %v5996
      %v6147 = vunpack.c.h.b16 %v5996
      %v6148 = vunpack.c.l.b16 %v5997
      %v6149 = vunpack.c.h.b16 %v5997
      %v6150 = vunpack.c.l.b16 %v5998
      %v6151 = vunpack.c.h.b16 %v5998
      %v6152 = vunpack.c.l.b16 %v5999
      %v6153 = vunpack.c.h.b16 %v5999
      %v6154 = vunpack.c.l.b16 %v6000
      %v6155 = vunpack.c.h.b16 %v6000
      %v6156 = vunpack.c.l.b16 %v6001
      %v6157 = vunpack.c.h.b16 %v6001
      %v6158 = vunpack.c.l.b16 %v6002
      %v6159 = vunpack.c.h.b16 %v6002
      %v6160 = vunpack.c.l.b16 %v6003
      %v6161 = vunpack.c.h.b16 %v6003
      %v6162 = vunpack.c.l.b16 %v6004
      %v6163 = vunpack.c.h.b16 %v6004
      %v6164 = vunpack.c.l.b16 %v6005
      %v6165 = vunpack.c.h.b16 %v6005
      %v6166 = vunpack.c.l.b16 %v6006
      %v6167 = vunpack.c.h.b16 %v6006
      %v6168 = vunpack.c.l.b16 %v6007
      %v6169 = vunpack.c.h.b16 %v6007
      %v6170 = vunpack.c.l.b16 %v6008
      %v6171 = vunpack.c.h.b16 %v6008
      %v6172 = vunpack.c.l.b16 %v6009
      %v6173 = vunpack.c.h.b16 %v6009
      %v6174 = vunpack.c.l.b16 %v6010
      %v6175 = vunpack.c.h.b16 %v6010
      %v6176 = vunpack.c.l.b16 %v6011
      %v6177 = vunpack.c.h.b16 %v6011
      %v6178 = vunpack.c.l.b16 %v6012
      %v6179 = vunpack.c.h.b16 %v6012
      %v6180 = vunpack.c.l.b16 %v6013
      %v6181 = vunpack.c.h.b16 %v6013
      %v6182 = vunpack.c.l.b16 %v6014
      %v6183 = vunpack.c.h.b16 %v6014
      %v6184 = vunpack.c.l.b16 %v6015
      %v6185 = vunpack.c.h.b16 %v6015
      %v6186 = vunpack.c.l.b16 %v6016
      %v6187 = vunpack.c.h.b16 %v6016
      %v6188 = vunpack.c.l.b16 %v6017
      %v6189 = vunpack.c.h.b16 %v6017
      %v6190 = vunpack.c.l.b16 %v6018
      %v6191 = vunpack.c.h.b16 %v6018
      %v6192 = vunpack.c.l.b16 %v6019
      %v6193 = vunpack.c.h.b16 %v6019
      %v6194 = vunpack.c.l.b16 %v6020
      %v6195 = vunpack.c.h.b16 %v6020
      %v6196 = vunpack.c.l.b16 %v6021
      %v6197 = vunpack.c.h.b16 %v6021
      %v6198 = vunpack.c.l.b16 %v6022
      %v6199 = vunpack.c.h.b16 %v6022
      %v6200 = vunpack.c.l.b16 %v6023
      %v6201 = vunpack.c.h.b16 %v6023
      %v6202 = vunpack.c.l.b16 %v6024
      %v6203 = vunpack.c.h.b16 %v6024
      %v6204 = vunpack.c.l.b16 %v6025
      %v6205 = vunpack.c.h.b16 %v6025
      %v6206 = vunpack.c.l.b16 %v6026
      %v6207 = vunpack.c.h.b16 %v6026
      %v6208 = vunpack.c.l.b16 %v6027
      %v6209 = vunpack.c.h.b16 %v6027
      %v6210 = vunpack.c.l.b16 %v6028
      %v6211 = vunpack.c.h.b16 %v6028
      %v6212 = vunpack.c.l.b16 %v6029
      %v6213 = vunpack.c.h.b16 %v6029
      %v6214 = vunpack.c.l.b16 %v6030
      %v6215 = vunpack.c.h.b16 %v6030
      %v6216 = vunpack.c.l.b16 %v6031
      %v6217 = vunpack.c.h.b16 %v6031
      %v6218 = vunpack.c.l.b16 %v6032
      %v6219 = vunpack.c.h.b16 %v6032
      %v6220 = vunpack.c.l.b16 %v6033
      %v6221 = vunpack.c.h.b16 %v6033
      %v6222 = vunpack.c.l.b16 %v6034
      %v6223 = vunpack.c.h.b16 %v6034
      %v6224 = vunpack.c.l.b16 %v6035
      %v6225 = vunpack.c.h.b16 %v6035
      %v6226 = vunpack.c.l.b16 %v6036
      %v6227 = vunpack.c.h.b16 %v6036
      %v6228 = vunpack.c.l.b16 %v6037
      %v6229 = vunpack.c.h.b16 %v6037
      %v6230 = vpack.c.b16 %v6102, %v6102
      %v6231 = vpack.c.b16 %v6103, %v6103
      %v6232 = vpack.c.b16 %v6104, %v6104
      %v6233 = vpack.c.b16 %v6105, %v6105
      %v6234 = vpack.c.b16 %v6106, %v6106
      %v6235 = vpack.c.b16 %v6107, %v6107
      %v6236 = vpack.c.b16 %v6108, %v6108
      %v6237 = vpack.c.b16 %v6109, %v6109
      %v6238 = vpack.c.b16 %v6110, %v6110
      %v6239 = vpack.c.b16 %v6111, %v6111
      %v6240 = vpack.c.b16 %v6112, %v6112
      %v6241 = vpack.c.b16 %v6113, %v6113
      %v6242 = vpack.c.b16 %v6114, %v6114
      %v6243 = vpack.c.b16 %v6115, %v6115
      %v6244 = vpack.c.b16 %v6116, %v6116
      %v6245 = vpack.c.b16 %v6117, %v6117
      %v6246 = vpack.c.b16 %v6118, %v6118
      %v6247 = vpack.c.b16 %v6119, %v6119
      %v6248 = vpack.c.b16 %v6120, %v6120
      %v6249 = vpack.c.b16 %v6121, %v6121
      %v6250 = vpack.c.b16 %v6122, %v6122
      %v6251 = vpack.c.b16 %v6123, %v6123
      %v6252 = vpack.c.b16 %v6124, %v6124
      %v6253 = vpack.c.b16 %v6125, %v6125
      %v6254 = vpack.c.b16 %v6126, %v6126
      %v6255 = vpack.c.b16 %v6127, %v6127
      %v6256 = vpack.c.b16 %v6128, %v6128
      %v6257 = vpack.c.b16 %v6129, %v6129
      %v6258 = vpack.c.b16 %v6130, %v6130
      %v6259 = vpack.c.b16 %v6131, %v6131
      %v6260 = vpack.c.b16 %v6132, %v6132
      %v6261 = vpack.c.b16 %v6133, %v6133
      %v6262 = vpack.c.b16 %v6134, %v6134
      %v6263 = vpack.c.b16 %v6135, %v6135
      %v6264 = vpack.c.b16 %v6136, %v6136
      %v6265 = vpack.c.b16 %v6137, %v6137
      %v6266 = vpack.c.b16 %v6138, %v6138
      %v6267 = vpack.c.b16 %v6139, %v6139
      %v6268 = vpack.c.b16 %v6140, %v6140
      %v6269 = vpack.c.b16 %v6141, %v6141
      %v6270 = vpack.c.b16 %v6142, %v6142
      %v6271 = vpack.c.b16 %v6143, %v6143
      %v6272 = vpack.c.b16 %v6144, %v6144
      %v6273 = vpack.c.b16 %v6145, %v6145
      %v6274 = vpack.c.b16 %v6146, %v6146
      %v6275 = vpack.c.b16 %v6147, %v6147
      %v6276 = vpack.c.b16 %v6148, %v6148
      %v6277 = vpack.c.b16 %v6149, %v6149
      %v6278 = vpack.c.b16 %v6150, %v6150
      %v6279 = vpack.c.b16 %v6151, %v6151
      %v6280 = vpack.c.b16 %v6152, %v6152
      %v6281 = vpack.c.b16 %v6153, %v6153
      %v6282 = vpack.c.b16 %v6154, %v6154
      %v6283 = vpack.c.b16 %v6155, %v6155
      %v6284 = vpack.c.b16 %v6156, %v6156
      %v6285 = vpack.c.b16 %v6157, %v6157
      %v6286 = vpack.c.b16 %v6158, %v6158
      %v6287 = vpack.c.b16 %v6159, %v6159
      %v6288 = vpack.c.b16 %v6160, %v6160
      %v6289 = vpack.c.b16 %v6161, %v6161
      %v6290 = vpack.c.b16 %v6162, %v6162
      %v6291 = vpack.c.b16 %v6163, %v6163
      %v6292 = vpack.c.b16 %v6164, %v6164
      %v6293 = vpack.c.b16 %v6165, %v6165
      %v6294 = vpack.c.b16 %v6166, %v6166
      %v6295 = vpack.c.b16 %v6167, %v6167
      %v6296 = vpack.c.b16 %v6168, %v6168
      %v6297 = vpack.c.b16 %v6169, %v6169
      %v6298 = vpack.c.b16 %v6170, %v6170
      %v6299 = vpack.c.b16 %v6171, %v6171
      %v6300 = vpack.c.b16 %v6172, %v6172
      %v6301 = vpack.c.b16 %v6173, %v6173
      %v6302 = vpack.c.b16 %v6174, %v6174
      %v6303 = vpack.c.b16 %v6175, %v6175
      %v6304 = vpack.c.b16 %v6176, %v6176
      %v6305 = vpack.c.b16 %v6177, %v6177
      %v6306 = vpack.c.b16 %v6178, %v6178
      %v6307 = vpack.c.b16 %v6179, %v6179
      %v6308 = vpack.c.b16 %v6180, %v6180
      %v6309 = vpack.c.b16 %v6181, %v6181
      %v6310 = vpack.c.b16 %v6182, %v6182
      %v6311 = vpack.c.b16 %v6183, %v6183
      %v6312 = vpack.c.b16 %v6184, %v6184
      %v6313 = vpack.c.b16 %v6185, %v6185
      %v6314 = vpack.c.b16 %v6186, %v6186
      %v6315 = vpack.c.b16 %v6187, %v6187
      %v6316 = vpack.c.b16 %v6188, %v6188
      %v6317 = vpack.c.b16 %v6189, %v6189
      %v6318 = vpack.c.b16 %v6190, %v6190
      %v6319 = vpack.c.b16 %v6191, %v6191
      %v6320 = vpack.c.b16 %v6192, %v6192
      %v6321 = vpack.c.b16 %v6193, %v6193
      %v6322 = vpack.c.b16 %v6194, %v6194
      %v6323 = vpack.c.b16 %v6195, %v6195
      %v6324 = vpack.c.b16 %v6196, %v6196
      %v6325 = vpack.c.b16 %v6197, %v6197
      %v6326 = vpack.c.b16 %v6198, %v6198
      %v6327 = vpack.c.b16 %v6199, %v6199
      %v6328 = vpack.c.b16 %v6200, %v6200
      %v6329 = vpack.c.b16 %v6201, %v6201
      %v6330 = vpack.c.b16 %v6202, %v6202
      %v6331 = vpack.c.b16 %v6203, %v6203
      %v6332 = vpack.c.b16 %v6204, %v6204
      %v6333 = vpack.c.b16 %v6205, %v6205
      %v6334 = vpack.c.b16 %v6206, %v6206
      %v6335 = vpack.c.b16 %v6207, %v6207
      %v6336 = vpack.c.b16 %v6208, %v6208
      %v6337 = vpack.c.b16 %v6209, %v6209
      %v6338 = vpack.c.b16 %v6210, %v6210
      %v6339 = vpack.c.b16 %v6211, %v6211
      %v6340 = vpack.c.b16 %v6212, %v6212
      %v6341 = vpack.c.b16 %v6213, %v6213
      %v6342 = vpack.c.b16 %v6214, %v6214
      %v6343 = vpack.c.b16 %v6215, %v6215
      %v6344 = vpack.c.b16 %v6216, %v6216
      %v6345 = vpack.c.b16 %v6217, %v6217
      %v6346 = vpack.c.b16 %v6218, %v6218
      %v6347 = vpack.c.b16 %v6219, %v6219
      %v6348 = vpack.c.b16 %v6220, %v6220
      %v6349 = vpack.c.b16 %v6221, %v6221
      %v6350 = vpack.c.b16 %v6222, %v6222
      %v6351 = vpack.c.b16 %v6223, %v6223
      %v6352 = vpack.c.b16 %v6224, %v6224
      %v6353 = vpack.c.b16 %v6225, %v6225
      %v6354 = vpack.c.b16 %v6226, %v6226
      %v6355 = vpack.c.b16 %v6227, %v6227
      %v6356 = vpack.c.b16 %v6228, %v6228
      %v6357 = vpack.c.b16 %v6229, %v6229
      %vm6486 = vcmask 257024
      %6487 = vst.msk [vmem:[%s224] sm:$0xf] %vm6486, %v6230
      %6488 = vst.msk [vmem:[%s224 + $0x4] sm:$0xf] %vm6486, %v6231
      %6489 = vst.msk [vmem:[%s224 + $0x8] sm:$0xf] %vm6486, %v6232
      %6490 = vst.msk [vmem:[%s224 + $0xc] sm:$0xf] %vm6486, %v6233
      %6491 = vst.msk [vmem:[%s224 + $0x10] sm:$0xf] %vm6486, %v6234
      %6492 = vst.msk [vmem:[%s224 + $0x14] sm:$0xf] %vm6486, %v6235
      %6493 = vst.msk [vmem:[%s224 + $0x18] sm:$0xf] %vm6486, %v6236
      %6494 = vst.msk [vmem:[%s224 + $0x1c] sm:$0xf] %vm6486, %v6237
      %6495 = vst.msk [vmem:[%s224 + $0x20] sm:$0xf] %vm6486, %v6238
      %6496 = vst.msk [vmem:[%s224 + $0x24] sm:$0xf] %vm6486, %v6239
      %6497 = vst.msk [vmem:[%s224 + $0x28] sm:$0xf] %vm6486, %v6240
      %6498 = vst.msk [vmem:[%s224 + $0x2c] sm:$0xf] %vm6486, %v6241
      %6499 = vst.msk [vmem:[%s224 + $0x30] sm:$0xf] %vm6486, %v6242
      %6500 = vst.msk [vmem:[%s224 + $0x34] sm:$0xf] %vm6486, %v6243
      %6501 = vst.msk [vmem:[%s224 + $0x38] sm:$0xf] %vm6486, %v6244
      %6502 = vst.msk [vmem:[%s224 + $0x3c] sm:$0xf] %vm6486, %v6245
      %6503 = vst.msk [vmem:[%s224 + $0x40] sm:$0xf] %vm6486, %v6246
      %6504 = vst.msk [vmem:[%s224 + $0x44] sm:$0xf] %vm6486, %v6247
      %6505 = vst.msk [vmem:[%s224 + $0x48] sm:$0xf] %vm6486, %v6248
      %6506 = vst.msk [vmem:[%s224 + $0x4c] sm:$0xf] %vm6486, %v6249
      %6507 = vst.msk [vmem:[%s224 + $0x50] sm:$0xf] %vm6486, %v6250
      %6508 = vst.msk [vmem:[%s224 + $0x54] sm:$0xf] %vm6486, %v6251
      %6509 = vst.msk [vmem:[%s224 + $0x58] sm:$0xf] %vm6486, %v6252
      %6510 = vst.msk [vmem:[%s224 + $0x5c] sm:$0xf] %vm6486, %v6253
      %6511 = vst.msk [vmem:[%s224 + $0x60] sm:$0xf] %vm6486, %v6254
      %6512 = vst.msk [vmem:[%s224 + $0x64] sm:$0xf] %vm6486, %v6255
      %6513 = vst.msk [vmem:[%s224 + $0x68] sm:$0xf] %vm6486, %v6256
      %6514 = vst.msk [vmem:[%s224 + $0x6c] sm:$0xf] %vm6486, %v6257
      %6515 = vst.msk [vmem:[%s224 + $0x70] sm:$0xf] %vm6486, %v6258
      %6516 = vst.msk [vmem:[%s224 + $0x74] sm:$0xf] %vm6486, %v6259
      %6517 = vst.msk [vmem:[%s224 + $0x78] sm:$0xf] %vm6486, %v6260
      %6518 = vst.msk [vmem:[%s224 + $0x7c] sm:$0xf] %vm6486, %v6261
      %6519 = vst.msk [vmem:[%s224 + $0x80] sm:$0xf] %vm6486, %v6262
      %6520 = vst.msk [vmem:[%s224 + $0x84] sm:$0xf] %vm6486, %v6263
      %6521 = vst.msk [vmem:[%s224 + $0x88] sm:$0xf] %vm6486, %v6264
      %6522 = vst.msk [vmem:[%s224 + $0x8c] sm:$0xf] %vm6486, %v6265
      %6523 = vst.msk [vmem:[%s224 + $0x90] sm:$0xf] %vm6486, %v6266
      %6524 = vst.msk [vmem:[%s224 + $0x94] sm:$0xf] %vm6486, %v6267
      %6525 = vst.msk [vmem:[%s224 + $0x98] sm:$0xf] %vm6486, %v6268
      %6526 = vst.msk [vmem:[%s224 + $0x9c] sm:$0xf] %vm6486, %v6269
      %6527 = vst.msk [vmem:[%s224 + $0xa0] sm:$0xf] %vm6486, %v6270
      %6528 = vst.msk [vmem:[%s224 + $0xa4] sm:$0xf] %vm6486, %v6271
      %6529 = vst.msk [vmem:[%s224 + $0xa8] sm:$0xf] %vm6486, %v6272
      %6530 = vst.msk [vmem:[%s224 + $0xac] sm:$0xf] %vm6486, %v6273
      %6531 = vst.msk [vmem:[%s224 + $0xb0] sm:$0xf] %vm6486, %v6274
      %6532 = vst.msk [vmem:[%s224 + $0xb4] sm:$0xf] %vm6486, %v6275
      %6533 = vst.msk [vmem:[%s224 + $0xb8] sm:$0xf] %vm6486, %v6276
      %6534 = vst.msk [vmem:[%s224 + $0xbc] sm:$0xf] %vm6486, %v6277
      %6535 = vst.msk [vmem:[%s224 + $0xc0] sm:$0xf] %vm6486, %v6278
      %6536 = vst.msk [vmem:[%s224 + $0xc4] sm:$0xf] %vm6486, %v6279
      %6537 = vst.msk [vmem:[%s224 + $0xc8] sm:$0xf] %vm6486, %v6280
      %6538 = vst.msk [vmem:[%s224 + $0xcc] sm:$0xf] %vm6486, %v6281
      %6539 = vst.msk [vmem:[%s224 + $0xd0] sm:$0xf] %vm6486, %v6282
      %6540 = vst.msk [vmem:[%s224 + $0xd4] sm:$0xf] %vm6486, %v6283
      %6541 = vst.msk [vmem:[%s224 + $0xd8] sm:$0xf] %vm6486, %v6284
      %6542 = vst.msk [vmem:[%s224 + $0xdc] sm:$0xf] %vm6486, %v6285
      %6543 = vst.msk [vmem:[%s224 + $0xe0] sm:$0xf] %vm6486, %v6286
      %6544 = vst.msk [vmem:[%s224 + $0xe4] sm:$0xf] %vm6486, %v6287
      %6545 = vst.msk [vmem:[%s224 + $0xe8] sm:$0xf] %vm6486, %v6288
      %6546 = vst.msk [vmem:[%s224 + $0xec] sm:$0xf] %vm6486, %v6289
      %6547 = vst.msk [vmem:[%s224 + $0xf0] sm:$0xf] %vm6486, %v6290
      %6548 = vst.msk [vmem:[%s224 + $0xf4] sm:$0xf] %vm6486, %v6291
      %6549 = vst.msk [vmem:[%s224 + $0xf8] sm:$0xf] %vm6486, %v6292
      %6550 = vst.msk [vmem:[%s224 + $0xfc] sm:$0xf] %vm6486, %v6293
      %6551 = vst.msk [vmem:[%s224 + $0x100] sm:$0xf] %vm6486, %v6294
      %6552 = vst.msk [vmem:[%s224 + $0x104] sm:$0xf] %vm6486, %v6295
      %6553 = vst.msk [vmem:[%s224 + $0x108] sm:$0xf] %vm6486, %v6296
      %6554 = vst.msk [vmem:[%s224 + $0x10c] sm:$0xf] %vm6486, %v6297
      %6555 = vst.msk [vmem:[%s224 + $0x110] sm:$0xf] %vm6486, %v6298
      %6556 = vst.msk [vmem:[%s224 + $0x114] sm:$0xf] %vm6486, %v6299
      %6557 = vst.msk [vmem:[%s224 + $0x118] sm:$0xf] %vm6486, %v6300
      %6558 = vst.msk [vmem:[%s224 + $0x11c] sm:$0xf] %vm6486, %v6301
      %6559 = vst.msk [vmem:[%s224 + $0x120] sm:$0xf] %vm6486, %v6302
      %6560 = vst.msk [vmem:[%s224 + $0x124] sm:$0xf] %vm6486, %v6303
      %6561 = vst.msk [vmem:[%s224 + $0x128] sm:$0xf] %vm6486, %v6304
      %6562 = vst.msk [vmem:[%s224 + $0x12c] sm:$0xf] %vm6486, %v6305
      %6563 = vst.msk [vmem:[%s224 + $0x130] sm:$0xf] %vm6486, %v6306
      %6564 = vst.msk [vmem:[%s224 + $0x134] sm:$0xf] %vm6486, %v6307
      %6565 = vst.msk [vmem:[%s224 + $0x138] sm:$0xf] %vm6486, %v6308
      %6566 = vst.msk [vmem:[%s224 + $0x13c] sm:$0xf] %vm6486, %v6309
      %6567 = vst.msk [vmem:[%s224 + $0x140] sm:$0xf] %vm6486, %v6310
      %6568 = vst.msk [vmem:[%s224 + $0x144] sm:$0xf] %vm6486, %v6311
      %6569 = vst.msk [vmem:[%s224 + $0x148] sm:$0xf] %vm6486, %v6312
      %6570 = vst.msk [vmem:[%s224 + $0x14c] sm:$0xf] %vm6486, %v6313
      %6571 = vst.msk [vmem:[%s224 + $0x150] sm:$0xf] %vm6486, %v6314
      %6572 = vst.msk [vmem:[%s224 + $0x154] sm:$0xf] %vm6486, %v6315
      %6573 = vst.msk [vmem:[%s224 + $0x158] sm:$0xf] %vm6486, %v6316
      %6574 = vst.msk [vmem:[%s224 + $0x15c] sm:$0xf] %vm6486, %v6317
      %6575 = vst.msk [vmem:[%s224 + $0x160] sm:$0xf] %vm6486, %v6318
      %6576 = vst.msk [vmem:[%s224 + $0x164] sm:$0xf] %vm6486, %v6319
      %6577 = vst.msk [vmem:[%s224 + $0x168] sm:$0xf] %vm6486, %v6320
      %6578 = vst.msk [vmem:[%s224 + $0x16c] sm:$0xf] %vm6486, %v6321
      %6579 = vst.msk [vmem:[%s224 + $0x170] sm:$0xf] %vm6486, %v6322
      %6580 = vst.msk [vmem:[%s224 + $0x174] sm:$0xf] %vm6486, %v6323
      %6581 = vst.msk [vmem:[%s224 + $0x178] sm:$0xf] %vm6486, %v6324
      %6582 = vst.msk [vmem:[%s224 + $0x17c] sm:$0xf] %vm6486, %v6325
      %6583 = vst.msk [vmem:[%s224 + $0x180] sm:$0xf] %vm6486, %v6326
      %6584 = vst.msk [vmem:[%s224 + $0x184] sm:$0xf] %vm6486, %v6327
      %6585 = vst.msk [vmem:[%s224 + $0x188] sm:$0xf] %vm6486, %v6328
      %6586 = vst.msk [vmem:[%s224 + $0x18c] sm:$0xf] %vm6486, %v6329
      %6587 = vst.msk [vmem:[%s224 + $0x190] sm:$0xf] %vm6486, %v6330
      %6588 = vst.msk [vmem:[%s224 + $0x194] sm:$0xf] %vm6486, %v6331
      %6589 = vst.msk [vmem:[%s224 + $0x198] sm:$0xf] %vm6486, %v6332
      %6590 = vst.msk [vmem:[%s224 + $0x19c] sm:$0xf] %vm6486, %v6333
      %6591 = vst.msk [vmem:[%s224 + $0x1a0] sm:$0xf] %vm6486, %v6334
      %6592 = vst.msk [vmem:[%s224 + $0x1a4] sm:$0xf] %vm6486, %v6335
      %6593 = vst.msk [vmem:[%s224 + $0x1a8] sm:$0xf] %vm6486, %v6336
      %6594 = vst.msk [vmem:[%s224 + $0x1ac] sm:$0xf] %vm6486, %v6337
      %6595 = vst.msk [vmem:[%s224 + $0x1b0] sm:$0xf] %vm6486, %v6338
      %6596 = vst.msk [vmem:[%s224 + $0x1b4] sm:$0xf] %vm6486, %v6339
      %6597 = vst.msk [vmem:[%s224 + $0x1b8] sm:$0xf] %vm6486, %v6340
      %6598 = vst.msk [vmem:[%s224 + $0x1bc] sm:$0xf] %vm6486, %v6341
      %6599 = vst.msk [vmem:[%s224 + $0x1c0] sm:$0xf] %vm6486, %v6342
      %6600 = vst.msk [vmem:[%s224 + $0x1c4] sm:$0xf] %vm6486, %v6343
      %6601 = vst.msk [vmem:[%s224 + $0x1c8] sm:$0xf] %vm6486, %v6344
      %6602 = vst.msk [vmem:[%s224 + $0x1cc] sm:$0xf] %vm6486, %v6345
      %6603 = vst.msk [vmem:[%s224 + $0x1d0] sm:$0xf] %vm6486, %v6346
      %6604 = vst.msk [vmem:[%s224 + $0x1d4] sm:$0xf] %vm6486, %v6347
      %6605 = vst.msk [vmem:[%s224 + $0x1d8] sm:$0xf] %vm6486, %v6348
      %6606 = vst.msk [vmem:[%s224 + $0x1dc] sm:$0xf] %vm6486, %v6349
      %6607 = vst.msk [vmem:[%s224 + $0x1e0] sm:$0xf] %vm6486, %v6350
      %6608 = vst.msk [vmem:[%s224 + $0x1e4] sm:$0xf] %vm6486, %v6351
      %6609 = vst.msk [vmem:[%s224 + $0x1e8] sm:$0xf] %vm6486, %v6352
      %6610 = vst.msk [vmem:[%s224 + $0x1ec] sm:$0xf] %vm6486, %v6353
      %6611 = vst.msk [vmem:[%s224 + $0x1f0] sm:$0xf] %vm6486, %v6354
      %6612 = vst.msk [vmem:[%s224 + $0x1f4] sm:$0xf] %vm6486, %v6355
      %6613 = vst.msk [vmem:[%s224 + $0x1f8] sm:$0xf] %vm6486, %v6356
      %6614 = vst.msk [vmem:[%s224 + $0x1fc] sm:$0xf] %vm6486, %v6357
      %p6615 = scmp.lt.s32.totalorder %s16, 1
      %s6616 = scalar_select %p6615, %s16, 1
      %s6617 = smul.addr %s6616, 128
      %s6618 = smul.addr %s6617, 4
      %s6619 = scalar_lea.vmem %s5, %s6618
      // Predicated region
      $region41: #{tpu_custom_call.1} parent=39 // pred_check
        %p6620 = pneg %p144
      $region42: #{tpu_custom_call.1} parent=39 // pred_check_branch
        %6622 = sbr.rel (%p6620) target = $region44
      $region43: #{tpu_custom_call.1} parent=39 // pred_region
        _
      $region44: #{tpu_custom_call.1} parent=39 // pred_fallthru
        _
    $region40: #{tpu_custom_call.1} parent=5 // pred_fallthru
      _
    %p6623 = scmp.le.s32.totalorder 2, %s11
    // Predicated region
    $region45: #{tpu_custom_call.1} parent=5 // pred_check
      %p6624 = pneg %p6623
    $region46: #{tpu_custom_call.1} parent=5 // pred_check_branch
      %6626 = sbr.rel (%p6624) target = $region48
    $region47: #{tpu_custom_call.1} parent=5 // pred_region
      %s6627 = ssub.s32 %s11, 2
      // Predicated region
      $region49: #{tpu_custom_call.1} parent=47 // pred_check
        %p6628 = pneg %p150
      $region50: #{tpu_custom_call.1} parent=47 // pred_check_branch
        %6630 = sbr.rel (%p6628) target = $region52
      $region51: #{tpu_custom_call.1} parent=47 // pred_region
        %p6631 = scmp.lt.s32.totalorder %s17, 1
        %s6632 = scalar_select %p6631, %s17, 1
        %s6633 = smul.addr %s6632, 128
        %s6634 = smul.addr %s6633, 4
        %s6635 = scalar_lea.vmem %s5, %s6634
      $region52: #{tpu_custom_call.1} parent=47 // pred_fallthru
        _
    $region48: #{tpu_custom_call.1} parent=5 // pred_fallthru
      _
  $region6: #{tpu_custom_call.1} parent=0 // loop_footer
    %s15 = sadd.s32 1, %s11
  $region7: #{tpu_custom_call.1} parent=0 // loop_footer_branch
    %10 = sbr.rel target = $region3
  $region8: #{tpu_custom_call.1} parent=0 // loop_exit
    _

</llo_original>
